<compile_context>
chip_gen: v7x
topology: tpu7x:2x2x1
jax: 0.10.0
libtpu: 0.0.40
codegen_flags: <defaults>
</compile_context>

<pallas_src>
import jax
import jax.numpy as jnp
from jax.experimental import pallas as pl
from jax.experimental.pallas import tpu as pltpu


def _upsample2x_kernel(x_ref, row_exp_ref, col_exp_ref, o_ref):
    # x_ref: (tm, tw)   row_exp_ref: (2*tm, tm)   col_exp_ref: (tw, 2*tw)
    # o_ref: (2*tm, 2*tw)
    v = x_ref[...].astype(jnp.float32)
    # Width doubling: (tm, tw) @ (tw, 2*tw) -> (tm, 2*tw)
    w = jnp.dot(v, col_exp_ref[...],
                precision=jax.lax.Precision.HIGHEST,
                preferred_element_type=jnp.float32)
    # Height doubling: (2*tm, tm) @ (tm, 2*tw) -> (2*tm, 2*tw)
    y = jnp.dot(row_exp_ref[...], w,
                precision=jax.lax.Precision.HIGHEST,
                preferred_element_type=jnp.float32)
    o_ref[...] = y.astype(o_ref.dtype)


def _pick_tile(n, cap, align):
    """Largest divisor of n that is <= cap, preferring multiples of `align`."""
    cap = min(cap, n)
    best, best_aligned = 1, None
    for d in range(1, cap + 1):
        if n % d == 0:
            best = d
            if d % align == 0:
                best_aligned = d
    return best_aligned if best_aligned is not None else best


def _expander(n, repeat_axis):
    # 0/1 matrix that duplicates every row (axis=0) or column (axis=1) of the
    # operand it multiplies: E = repeat(I_n, 2, axis).
    return jnp.repeat(jnp.eye(n, dtype=jnp.float32), 2, axis=repeat_axis)


def upsample_nearest2x(x, *, row_tile_cap=256, col_tile_cap=256):
    """Nearest-neighbor 2x spatial upsample of an NCHW tensor."""
    N, C, H, W = x.shape
    M = N * C * H
    x2 = x.reshape(M, W)

    tm = _pick_tile(M, row_tile_cap, 8)     # sublane tile (rows of X2)
    tw = _pick_tile(W, col_tile_cap, 128)   # lane tile (cols of X2)

    row_exp = _expander(tm, 0)              # (2*tm, tm)
    col_exp = _expander(tw, 1)              # (tw, 2*tw)

    grid = (M // tm, W // tw)
    elem = x.dtype.itemsize
    cost = pl.CostEstimate(
        flops=grid[0] * grid[1]
        * (2 * tm * tw * (2 * tw) + 2 * (2 * tm) * tm * (2 * tw)),
        transcendentals=0,
        bytes_accessed=5 * M * W * elem + (row_exp.size + col_exp.size) * 4,
    )

    out2 = pl.pallas_call(
        _upsample2x_kernel,
        out_shape=jax.ShapeDtypeStruct((2 * M, 2 * W), x.dtype),
        grid_spec=pltpu.PrefetchScalarGridSpec(
            num_scalar_prefetch=0,
            grid=grid,
            in_specs=[
                pl.BlockSpec((tm, tw), lambda i, j: (i, j)),
                pl.BlockSpec((2 * tm, tm), lambda i, j: (0, 0)),  # resident
                pl.BlockSpec((tw, 2 * tw), lambda i, j: (0, 0)),  # resident
            ],
            out_specs=pl.BlockSpec((2 * tm, 2 * tw), lambda i, j: (i, j)),
        ),
        compiler_params=pltpu.CompilerParams(
            dimension_semantics=("parallel", "parallel"),
            vmem_limit_bytes=32 * 1024 * 1024,
        ),
        cost_estimate=cost,
    )(x2, row_exp, col_exp)

    return out2.reshape(N, C, 2 * H, 2 * W)


def upsample_forward(x, *, mode="nearest", use_conv=False):
    """Forward pass of the PyTorch `Upsample` module (default config)."""
    assert mode == "nearest", "only mode='nearest' is implemented"
    y = upsample_nearest2x(x)
    if use_conv:
        # TODO(synk): optional `x + conv3x3(x)` residual branch not implemented;
        # the module default (use_conv=False) — and zero_conv=True init — both
        # reduce to the plain nearest upsample.
        raise NotImplementedError("use_conv=True path not implemented")
    return y


def _reference(x):
    # Nearest 2x upsample, identical to F.interpolate(x, scale_factor=2,
    # mode='nearest') for NCHW inputs.
    return jnp.repeat(jnp.repeat(x, 2, axis=2), 2, axis=3)


if __name__ == "__main__":
    key = jax.random.PRNGKey(0)
    N, C, H, W = 2, 4, 16, 16
    x = jax.random.normal(key, (N, C, H, W), dtype=jnp.float32)

    out = upsample_forward(x)
    out = jax.block_until_ready(out)

    ref = _reference(x)
    assert out.shape == (N, C, 2 * H, 2 * W)
    assert bool(jnp.allclose(out, ref, atol=1e-6, rtol=1e-6)), "mismatch vs reference"
    print("KERNEL_OK")
</pallas_src>

<mosaic_0001>
module attributes {stable_mosaic.version = 11 : i64} {
  func.func @_upsample2x_kernel(%arg0: i32, %arg1: i32, %arg2: memref<128x16xf32, #tpu.memory_space<vmem>>, %arg3: memref<256x128xf32, #tpu.memory_space<vmem>>, %arg4: memref<16x32xf32, #tpu.memory_space<vmem>>, %arg5: memref<256x32xf32, #tpu.memory_space<vmem>>) attributes {dimension_semantics = [#tpu.dimension_semantics<parallel>, #tpu.dimension_semantics<parallel>], iteration_bounds = array<i64: 1, 1>, scalar_prefetch = 0 : i64, scratch_operands = 0 : i64, tpu.core_type = #tpu.core_type<tc>, window_params = [{transform_indices = @transform_0, window_bounds = array<i64: 128, 16>}, {pipeline_mode = #tpu.pipeline_mode<synchronous>, transform_indices = @transform_1, window_bounds = array<i64: 256, 128>}, {pipeline_mode = #tpu.pipeline_mode<synchronous>, transform_indices = @transform_2, window_bounds = array<i64: 16, 32>}, {transform_indices = @transform_3, window_bounds = array<i64: 256, 32>}]} {
    %c0 = arith.constant 0 : index
    %c0_0 = arith.constant 0 : index
    %0 = vector.load %arg2[%c0, %c0_0] : memref<128x16xf32, #tpu.memory_space<vmem>>, vector<128x16xf32>
    %c0_1 = arith.constant 0 : index
    %c0_2 = arith.constant 0 : index
    %1 = vector.load %arg4[%c0_1, %c0_2] : memref<16x32xf32, #tpu.memory_space<vmem>>, vector<16x32xf32>
    %cst = arith.constant dense<0.000000e+00> : vector<128x32xf32>
    %2 = tpu.matmul %0, %1, %cst {dimension_numbers = #tpu.dot_dimension_numbers<[1], [0], [0], [1], [0, 0, 1, 1], [], []>, precision = #tpu.contract_precision<fp32>} : vector<128x16xf32>, vector<16x32xf32>, vector<128x32xf32> -> vector<128x32xf32>
    %c0_3 = arith.constant 0 : index
    %c0_4 = arith.constant 0 : index
    %3 = vector.load %arg3[%c0_3, %c0_4] : memref<256x128xf32, #tpu.memory_space<vmem>>, vector<256x128xf32>
    %cst_5 = arith.constant dense<0.000000e+00> : vector<256x32xf32>
    %4 = tpu.matmul %3, %2, %cst_5 {dimension_numbers = #tpu.dot_dimension_numbers<[1], [0], [0], [1], [0, 0, 1, 1], [], []>, precision = #tpu.contract_precision<fp32>} : vector<256x128xf32>, vector<128x32xf32>, vector<256x32xf32> -> vector<256x32xf32>
    %c0_6 = arith.constant 0 : index
    %c0_7 = arith.constant 0 : index
    %5 = vector.load %arg5[%c0_6, %c0_7] : memref<256x32xf32, #tpu.memory_space<vmem>>, vector<256x32xf32>
    tpu.vector_store %arg5[%c0_6, %c0_7], %4 {strides = array<i32>} : memref<256x32xf32, #tpu.memory_space<vmem>>, vector<256x32xf32>,
    return
  }
  func.func @transform_0(%arg0: i32, %arg1: i32) -> (i32, i32) {
    %c0_i32 = arith.constant 0 : i32
    return %arg0, %arg1 : i32, i32
  }
  func.func @transform_1(%arg0: i32, %arg1: i32) -> (i32, i32) {
    %c0_i32 = arith.constant 0 : i32
    %c0_i32_0 = arith.constant 0 : i32
    %c0_i32_1 = arith.constant 0 : i32
    return %c0_i32, %c0_i32_0 : i32, i32
  }
  func.func @transform_2(%arg0: i32, %arg1: i32) -> (i32, i32) {
    %c0_i32 = arith.constant 0 : i32
    %c0_i32_0 = arith.constant 0 : i32
    %c0_i32_1 = arith.constant 0 : i32
    return %c0_i32, %c0_i32_0 : i32, i32
  }
  func.func @transform_3(%arg0: i32, %arg1: i32) -> (i32, i32) {
    %c0_i32 = arith.constant 0 : i32
    return %arg0, %arg1 : i32, i32
  }
}

</mosaic_0001>

<llo_original>
// kernel: tpu_custom_call.1
$region0: #{tpu_custom_call.1}
  #allocation0 [shape = 'u32[]', space=smem, size = 0x4, offset = 0x4, fixed_abs, tag = 'smem constant byte address 0x4 - core index']
  #allocation1 [shape = 'u32[144,128]{1,0:T(1,128)}', space=vmem, size = 0x12000, scoped, tag = 'internal scratch']
  %s0 = inlined_call_operand.vmem [shape: f32[128,16], index: 0, kind: input, shape index: {}]
  %s1 = inlined_call_operand.hbm [shape: f32[256,128], index: 1, kind: input, shape index: {}]
  %s2 = inlined_call_operand.vmem [shape: f32[16,32], index: 2, kind: input, shape index: {}]
  %s3 = inlined_call_operand.vmem [shape: f32[256,32], index: 3, kind: output, shape index: {}]
  %s4 = sld [smem:[#allocation0]]
  $region26: #{tpu_custom_call.1} parent=0
    _
  %s6 = ssub.s32 1, %s4
  %s7 = scalar_select 0, %s6, %s4
  $region1: #{tpu_custom_call.1} parent=0
    #allocation2 [shape = 'u8[131072]{0}', space=vmem, size = 0x20000, scoped, tag = 'input window, operand 1, single buffered']
    #allocation3 [shape = 's32[1]{0}', space=sflag, size = 0x4, scoped, tag = 'scoped memory for tpu_custom_call.1']
    %8 = vsyncpa [#allocation3], 0
    // Predicated region
    $region2: #{tpu_custom_call.1} parent=1 // pred_check
      _
    $region3: #{tpu_custom_call.1} parent=1 // pred_check_branch
      %10 = sbr.rel (0) target = $region5
    $region4: #{tpu_custom_call.1} parent=1 // pred_region
      _
    $region5: #{tpu_custom_call.1} parent=1 // pred_fallthru
      _
    // Predicated region
    $region6: #{tpu_custom_call.1} parent=1 // pred_check
      _
    $region7: #{tpu_custom_call.1} parent=1 // pred_check_branch
      %12 = sbr.rel (0) target = $region9
    $region8: #{tpu_custom_call.1} parent=1 // pred_region
      %s14 = ssub.s32 4096, 4096
      %15 = vsyncadd [#allocation3], %s14
      %s16 = sshll.u32 [#allocation2], 4
      %s17 = int_to_ptr.vmem [resolvable:$true] %s16
      %22 = dma.hbm_to_vmem [thread:$0]  %s1, 4096, %s17, [#allocation3], 128, 128, 8
    $region9: #{tpu_custom_call.1} parent=1 // pred_fallthru
      _
    // Predicated region
    $region10: #{tpu_custom_call.1} parent=1 // pred_check
      _
    $region11: #{tpu_custom_call.1} parent=1 // pred_check_branch
      %24 = sbr.rel (0) target = $region13
    $region12: #{tpu_custom_call.1} parent=1 // pred_region
      _
    $region13: #{tpu_custom_call.1} parent=1 // pred_fallthru
      _
    // Predicated region
    $region14: #{tpu_custom_call.1} parent=1 // pred_check
      _
    $region15: #{tpu_custom_call.1} parent=1 // pred_check_branch
      %26 = sbr.rel (0) target = $region17
    $region16: #{tpu_custom_call.1} parent=1 // pred_region
      %27 = dma.done [#allocation3], 4096
    $region17: #{tpu_custom_call.1} parent=1 // pred_fallthru
      _
    %v28 = vld [vmem:[%s0] sm:$0xff]
    %v29 = vld [vmem:[%s0 + $0x8] sm:$0xff]
    %v30 = vld [vmem:[%s0 + $0x10] sm:$0xff]
    %v31 = vld [vmem:[%s0 + $0x18] sm:$0xff]
    %v32 = vld [vmem:[%s0 + $0x20] sm:$0xff]
    %v33 = vld [vmem:[%s0 + $0x28] sm:$0xff]
    %v34 = vld [vmem:[%s0 + $0x30] sm:$0xff]
    %v35 = vld [vmem:[%s0 + $0x38] sm:$0xff]
    %v36 = vld [vmem:[%s0 + $0x40] sm:$0xff]
    %v37 = vld [vmem:[%s0 + $0x48] sm:$0xff]
    %v38 = vld [vmem:[%s0 + $0x50] sm:$0xff]
    %v39 = vld [vmem:[%s0 + $0x58] sm:$0xff]
    %v40 = vld [vmem:[%s0 + $0x60] sm:$0xff]
    %v41 = vld [vmem:[%s0 + $0x68] sm:$0xff]
    %v42 = vld [vmem:[%s0 + $0x70] sm:$0xff]
    %v43 = vld [vmem:[%s0 + $0x78] sm:$0xff]
    %v44 = vld [vmem:[%s2] sm:$0xff]
    %v45 = vld [vmem:[%s2 + $0x8] sm:$0xff]
    %vm46 = vcmask 130048
    %v48 = vsel %vm46, %v28, 0
    %v51 = vsel %vm46, %v29, 0
    %v54 = vsel %vm46, %v30, 0
    %v57 = vsel %vm46, %v31, 0
    %v60 = vsel %vm46, %v32, 0
    %v63 = vsel %vm46, %v33, 0
    %v66 = vsel %vm46, %v34, 0
    %v69 = vsel %vm46, %v35, 0
    %v72 = vsel %vm46, %v36, 0
    %v75 = vsel %vm46, %v37, 0
    %v78 = vsel %vm46, %v38, 0
    %v81 = vsel %vm46, %v39, 0
    %v84 = vsel %vm46, %v40, 0
    %v87 = vsel %vm46, %v41, 0
    %v90 = vsel %vm46, %v42, 0
    %v93 = vsel %vm46, %v43, 0
    %95 = vmatprep.subr.mxu0 0.0
    %v96 = vand.u32 %v44, 4294901760
    %97 = vmatpush1.msra.mxu0 %v96
    %98 = vmatprep.subr.mxu0 0.0
    %v99 = vand.u32 %v45, 4294901760
    %100 = vmatpush1.msra.mxu0 %v99
    %101 = vmatprep.subr.mxu0 0.0
    %102 = vmatpush1.msra.mxu0 0.0
    %103 = vmatprep.subr.mxu0 0.0
    %104 = vmatpush1.msra.mxu0 0.0
    %105 = vmatprep.subr.mxu0 0.0
    %106 = vmatpush1.msra.mxu0 0.0
    %107 = vmatprep.subr.mxu0 0.0
    %108 = vmatpush1.msra.mxu0 0.0
    %109 = vmatprep.subr.mxu0 0.0
    %110 = vmatpush1.msra.mxu0 0.0
    %111 = vmatprep.subr.mxu0 0.0
    %112 = vmatpush1.msra.mxu0 0.0
    %113 = vmatprep.subr.mxu0 0.0
    %114 = vmatpush1.msra.mxu0 0.0
    %115 = vmatprep.subr.mxu0 0.0
    %116 = vmatpush1.msra.mxu0 0.0
    %117 = vmatprep.subr.mxu0 0.0
    %118 = vmatpush1.msra.mxu0 0.0
    %119 = vmatprep.subr.mxu0 0.0
    %120 = vmatpush1.msra.mxu0 0.0
    %121 = vmatprep.subr.mxu0 0.0
    %122 = vmatpush1.msra.mxu0 0.0
    %123 = vmatprep.subr.mxu0 0.0
    %124 = vmatpush1.msra.mxu0 0.0
    %125 = vmatprep.subr.mxu0 0.0
    %126 = vmatpush1.msra.mxu0 0.0
    %127 = vmatprep.subr.mxu0 0.0
    %128 = vmatpush1.msra.mxu0 0.0
    %129 = vmatprep.subr.mxu0 0.0
    %130 = vmatpush1.msra.mxu0 0.0
    %131 = vmatprep.subr.mxu0 0.0
    %132 = vmatpush1.msra.mxu0 0.0
    %133 = vmatprep.subr.mxu0 0.0
    %134 = vmatpush1.msra.mxu0 0.0
    %135 = vmatprep.subr.mxu0 0.0
    %136 = vmatpush1.msra.mxu0 0.0
    %137 = vmatprep.subr.mxu0 0.0
    %138 = vmatpush1.msra.mxu0 0.0
    %139 = vmatprep.subr.mxu0 0.0
    %140 = vmatpush1.msra.mxu0 0.0
    %141 = vmatprep.subr.mxu0 0.0
    %142 = vmatpush1.msra.mxu0 0.0
    %143 = vmatprep.subr.mxu0 0.0
    %144 = vmatpush1.msra.mxu0 0.0
    %145 = vmatprep.subr.mxu0 0.0
    %146 = vmatpush1.msra.mxu0 0.0
    %147 = vmatprep.subr.mxu0 0.0
    %148 = vmatpush1.msra.mxu0 0.0
    %149 = vmatprep.subr.mxu0 0.0
    %150 = vmatpush1.msra.mxu0 0.0
    %151 = vmatprep.subr.mxu0 0.0
    %152 = vmatpush1.msra.mxu0 0.0
    %153 = vmatprep.subr.mxu0 0.0
    %154 = vmatpush1.msra.mxu0 0.0
    %155 = vmatprep.subr.mxu0 0.0
    %156 = vmatpush1.msra.mxu0 0.0
    %157 = vmatprep.subr.mxu0 0.0
    %158 = vmatpush1.msra.mxu0 0.0
    %159 = vmatprep.subr.mxu0 0.0
    %160 = vmatpush1.msra.mxu0 0.0
    %161 = vmatprep.mubr.f32.mxu0 0.0
    %v162 = vand.u32 %v48, 4294901760
    %v163 = vsub.f32 %v48, %v162
    %v164 = vand.u32 %v163, 4294901760
    %v165 = vsub.f32 %v163, %v164
    %v166 = vand.u32 %v165, 4294901760
    %167 = vmatmul.mubr.f32.gmra.mrb[0].mxu0 %v166
    %v168 = vpop.f32.mrb[0].mxu0
    %v169 = vadd.f32 0.0, %v168
    %v170 = vpop.f32.mrb[0].mxu0
    %171 = vmatprep.mubr.f32.mxu0 0.0
    %v172 = vand.u32 %v51, 4294901760
    %v173 = vsub.f32 %v51, %v172
    %v174 = vand.u32 %v173, 4294901760
    %v175 = vsub.f32 %v173, %v174
    %v176 = vand.u32 %v175, 4294901760
    %177 = vmatmul.mubr.f32.gmra.mrb[0].mxu0 %v176
    %v178 = vpop.f32.mrb[0].mxu0
    %v179 = vadd.f32 0.0, %v178
    %v180 = vpop.f32.mrb[0].mxu0
    %181 = vmatprep.mubr.f32.mxu0 0.0
    %v182 = vand.u32 %v54, 4294901760
    %v183 = vsub.f32 %v54, %v182
    %v184 = vand.u32 %v183, 4294901760
    %v185 = vsub.f32 %v183, %v184
    %v186 = vand.u32 %v185, 4294901760
    %187 = vmatmul.mubr.f32.gmra.mrb[0].mxu0 %v186
    %v188 = vpop.f32.mrb[0].mxu0
    %v189 = vadd.f32 0.0, %v188
    %v190 = vpop.f32.mrb[0].mxu0
    %191 = vmatprep.mubr.f32.mxu0 0.0
    %v192 = vand.u32 %v57, 4294901760
    %v193 = vsub.f32 %v57, %v192
    %v194 = vand.u32 %v193, 4294901760
    %v195 = vsub.f32 %v193, %v194
    %v196 = vand.u32 %v195, 4294901760
    %197 = vmatmul.mubr.f32.gmra.mrb[0].mxu0 %v196
    %v198 = vpop.f32.mrb[0].mxu0
    %v199 = vadd.f32 0.0, %v198
    %v200 = vpop.f32.mrb[0].mxu0
    %201 = vmatprep.mubr.f32.mxu0 0.0
    %v202 = vand.u32 %v60, 4294901760
    %v203 = vsub.f32 %v60, %v202
    %v204 = vand.u32 %v203, 4294901760
    %v205 = vsub.f32 %v203, %v204
    %v206 = vand.u32 %v205, 4294901760
    %207 = vmatmul.mubr.f32.gmra.mrb[0].mxu0 %v206
    %v208 = vpop.f32.mrb[0].mxu0
    %v209 = vadd.f32 0.0, %v208
    %v210 = vpop.f32.mrb[0].mxu0
    %211 = vmatprep.mubr.f32.mxu0 0.0
    %v212 = vand.u32 %v63, 4294901760
    %v213 = vsub.f32 %v63, %v212
    %v214 = vand.u32 %v213, 4294901760
    %v215 = vsub.f32 %v213, %v214
    %v216 = vand.u32 %v215, 4294901760
    %217 = vmatmul.mubr.f32.gmra.mrb[0].mxu0 %v216
    %v218 = vpop.f32.mrb[0].mxu0
    %v219 = vadd.f32 0.0, %v218
    %v220 = vpop.f32.mrb[0].mxu0
    %221 = vmatprep.mubr.f32.mxu0 0.0
    %v222 = vand.u32 %v66, 4294901760
    %v223 = vsub.f32 %v66, %v222
    %v224 = vand.u32 %v223, 4294901760
    %v225 = vsub.f32 %v223, %v224
    %v226 = vand.u32 %v225, 4294901760
    %227 = vmatmul.mubr.f32.gmra.mrb[0].mxu0 %v226
    %v228 = vpop.f32.mrb[0].mxu0
    %v229 = vadd.f32 0.0, %v228
    %v230 = vpop.f32.mrb[0].mxu0
    %231 = vmatprep.mubr.f32.mxu0 0.0
    %v232 = vand.u32 %v69, 4294901760
    %v233 = vsub.f32 %v69, %v232
    %v234 = vand.u32 %v233, 4294901760
    %v235 = vsub.f32 %v233, %v234
    %v236 = vand.u32 %v235, 4294901760
    %237 = vmatmul.mubr.f32.gmra.mrb[0].mxu0 %v236
    %v238 = vpop.f32.mrb[0].mxu0
    %v239 = vadd.f32 0.0, %v238
    %v240 = vpop.f32.mrb[0].mxu0
    %241 = vmatprep.mubr.f32.mxu0 0.0
    %v242 = vand.u32 %v72, 4294901760
    %v243 = vsub.f32 %v72, %v242
    %v244 = vand.u32 %v243, 4294901760
    %v245 = vsub.f32 %v243, %v244
    %v246 = vand.u32 %v245, 4294901760
    %247 = vmatmul.mubr.f32.gmra.mrb[0].mxu0 %v246
    %v248 = vpop.f32.mrb[0].mxu0
    %v249 = vadd.f32 0.0, %v248
    %v250 = vpop.f32.mrb[0].mxu0
    %251 = vmatprep.mubr.f32.mxu0 0.0
    %v252 = vand.u32 %v75, 4294901760
    %v253 = vsub.f32 %v75, %v252
    %v254 = vand.u32 %v253, 4294901760
    %v255 = vsub.f32 %v253, %v254
    %v256 = vand.u32 %v255, 4294901760
    %257 = vmatmul.mubr.f32.gmra.mrb[0].mxu0 %v256
    %v258 = vpop.f32.mrb[0].mxu0
    %v259 = vadd.f32 0.0, %v258
    %v260 = vpop.f32.mrb[0].mxu0
    %261 = vmatprep.mubr.f32.mxu0 0.0
    %v262 = vand.u32 %v78, 4294901760
    %v263 = vsub.f32 %v78, %v262
    %v264 = vand.u32 %v263, 4294901760
    %v265 = vsub.f32 %v263, %v264
    %v266 = vand.u32 %v265, 4294901760
    %267 = vmatmul.mubr.f32.gmra.mrb[0].mxu0 %v266
    %v268 = vpop.f32.mrb[0].mxu0
    %v269 = vadd.f32 0.0, %v268
    %v270 = vpop.f32.mrb[0].mxu0
    %271 = vmatprep.mubr.f32.mxu0 0.0
    %v272 = vand.u32 %v81, 4294901760
    %v273 = vsub.f32 %v81, %v272
    %v274 = vand.u32 %v273, 4294901760
    %v275 = vsub.f32 %v273, %v274
    %v276 = vand.u32 %v275, 4294901760
    %277 = vmatmul.mubr.f32.gmra.mrb[0].mxu0 %v276
    %v278 = vpop.f32.mrb[0].mxu0
    %v279 = vadd.f32 0.0, %v278
    %v280 = vpop.f32.mrb[0].mxu0
    %281 = vmatprep.mubr.f32.mxu0 0.0
    %v282 = vand.u32 %v84, 4294901760
    %v283 = vsub.f32 %v84, %v282
    %v284 = vand.u32 %v283, 4294901760
    %v285 = vsub.f32 %v283, %v284
    %v286 = vand.u32 %v285, 4294901760
    %287 = vmatmul.mubr.f32.gmra.mrb[0].mxu0 %v286
    %v288 = vpop.f32.mrb[0].mxu0
    %v289 = vadd.f32 0.0, %v288
    %v290 = vpop.f32.mrb[0].mxu0
    %291 = vmatprep.mubr.f32.mxu0 0.0
    %v292 = vand.u32 %v87, 4294901760
    %v293 = vsub.f32 %v87, %v292
    %v294 = vand.u32 %v293, 4294901760
    %v295 = vsub.f32 %v293, %v294
    %v296 = vand.u32 %v295, 4294901760
    %297 = vmatmul.mubr.f32.gmra.mrb[0].mxu0 %v296
    %v298 = vpop.f32.mrb[0].mxu0
    %v299 = vadd.f32 0.0, %v298
    %v300 = vpop.f32.mrb[0].mxu0
    %301 = vmatprep.mubr.f32.mxu0 0.0
    %v302 = vand.u32 %v90, 4294901760
    %v303 = vsub.f32 %v90, %v302
    %v304 = vand.u32 %v303, 4294901760
    %v305 = vsub.f32 %v303, %v304
    %v306 = vand.u32 %v305, 4294901760
    %307 = vmatmul.mubr.f32.gmra.mrb[0].mxu0 %v306
    %v308 = vpop.f32.mrb[0].mxu0
    %v309 = vadd.f32 0.0, %v308
    %v310 = vpop.f32.mrb[0].mxu0
    %311 = vmatprep.mubr.f32.mxu0 0.0
    %v312 = vand.u32 %v93, 4294901760
    %v313 = vsub.f32 %v93, %v312
    %v314 = vand.u32 %v313, 4294901760
    %v315 = vsub.f32 %v313, %v314
    %v316 = vand.u32 %v315, 4294901760
    %317 = vmatmul.mubr.f32.gmra.mrb[0].mxu0 %v316
    %v318 = vpop.f32.mrb[0].mxu0
    %v319 = vadd.f32 0.0, %v318
    %v320 = vpop.f32.mrb[0].mxu0
    %321 = vdwg.mxu0
    %322 = vmatprep.subr.mxu0 0.0
    %v323 = vand.u32 %v44, 4294901760
    %v324 = vsub.f32 %v44, %v323
    %v325 = vand.u32 %v324, 4294901760
    %v326 = vsub.f32 %v324, %v325
    %v327 = vand.u32 %v326, 4294901760
    %328 = vmatpush1.msra.mxu0 %v327
    %329 = vmatprep.subr.mxu0 0.0
    %v330 = vand.u32 %v45, 4294901760
    %v331 = vsub.f32 %v45, %v330
    %v332 = vand.u32 %v331, 4294901760
    %v333 = vsub.f32 %v331, %v332
    %v334 = vand.u32 %v333, 4294901760
    %335 = vmatpush1.msra.mxu0 %v334
    %336 = vmatprep.subr.mxu0 0.0
    %337 = vmatpush1.msra.mxu0 0.0
    %338 = vmatprep.subr.mxu0 0.0
    %339 = vmatpush1.msra.mxu0 0.0
    %340 = vmatprep.subr.mxu0 0.0
    %341 = vmatpush1.msra.mxu0 0.0
    %342 = vmatprep.subr.mxu0 0.0
    %343 = vmatpush1.msra.mxu0 0.0
    %344 = vmatprep.subr.mxu0 0.0
    %345 = vmatpush1.msra.mxu0 0.0
    %346 = vmatprep.subr.mxu0 0.0
    %347 = vmatpush1.msra.mxu0 0.0
    %348 = vmatprep.subr.mxu0 0.0
    %349 = vmatpush1.msra.mxu0 0.0
    %350 = vmatprep.subr.mxu0 0.0
    %351 = vmatpush1.msra.mxu0 0.0
    %352 = vmatprep.subr.mxu0 0.0
    %353 = vmatpush1.msra.mxu0 0.0
    %354 = vmatprep.subr.mxu0 0.0
    %355 = vmatpush1.msra.mxu0 0.0
    %356 = vmatprep.subr.mxu0 0.0
    %357 = vmatpush1.msra.mxu0 0.0
    %358 = vmatprep.subr.mxu0 0.0
    %359 = vmatpush1.msra.mxu0 0.0
    %360 = vmatprep.subr.mxu0 0.0
    %361 = vmatpush1.msra.mxu0 0.0
    %362 = vmatprep.subr.mxu0 0.0
    %363 = vmatpush1.msra.mxu0 0.0
    %364 = vmatprep.subr.mxu0 0.0
    %365 = vmatpush1.msra.mxu0 0.0
    %366 = vmatprep.subr.mxu0 0.0
    %367 = vmatpush1.msra.mxu0 0.0
    %368 = vmatprep.subr.mxu0 0.0
    %369 = vmatpush1.msra.mxu0 0.0
    %370 = vmatprep.subr.mxu0 0.0
    %371 = vmatpush1.msra.mxu0 0.0
    %372 = vmatprep.subr.mxu0 0.0
    %373 = vmatpush1.msra.mxu0 0.0
    %374 = vmatprep.subr.mxu0 0.0
    %375 = vmatpush1.msra.mxu0 0.0
    %376 = vmatprep.subr.mxu0 0.0
    %377 = vmatpush1.msra.mxu0 0.0
    %378 = vmatprep.subr.mxu0 0.0
    %379 = vmatpush1.msra.mxu0 0.0
    %380 = vmatprep.subr.mxu0 0.0
    %381 = vmatpush1.msra.mxu0 0.0
    %382 = vmatprep.subr.mxu0 0.0
    %383 = vmatpush1.msra.mxu0 0.0
    %384 = vmatprep.subr.mxu0 0.0
    %385 = vmatpush1.msra.mxu0 0.0
    %386 = vmatprep.subr.mxu0 0.0
    %387 = vmatpush1.msra.mxu0 0.0
    %388 = vmatprep.subr.mxu0 0.0
    %389 = vmatpush1.msra.mxu0 0.0
    %390 = vmatprep.subr.mxu0 0.0
    %391 = vmatpush1.msra.mxu0 0.0
    %392 = vmatprep.subr.mxu0 0.0
    %393 = vmatpush1.msra.mxu0 0.0
    %394 = vmatprep.subr.mxu0 0.0
    %395 = vmatpush1.msra.mxu0 0.0
    %396 = vmatprep.mubr.f32.mxu0 0.0
    %v397 = vand.u32 %v48, 4294901760
    %398 = vmatmul.mubr.f32.gmra.mrb[0].mxu0 %v397
    %v399 = vpop.f32.mrb[0].mxu0
    %v400 = vadd.f32 %v169, %v399
    %v401 = vpop.f32.mrb[0].mxu0
    %402 = vmatprep.mubr.f32.mxu0 0.0
    %v403 = vand.u32 %v51, 4294901760
    %404 = vmatmul.mubr.f32.gmra.mrb[0].mxu0 %v403
    %v405 = vpop.f32.mrb[0].mxu0
    %v406 = vadd.f32 %v179, %v405
    %v407 = vpop.f32.mrb[0].mxu0
    %408 = vmatprep.mubr.f32.mxu0 0.0
    %v409 = vand.u32 %v54, 4294901760
    %410 = vmatmul.mubr.f32.gmra.mrb[0].mxu0 %v409
    %v411 = vpop.f32.mrb[0].mxu0
    %v412 = vadd.f32 %v189, %v411
    %v413 = vpop.f32.mrb[0].mxu0
    %414 = vmatprep.mubr.f32.mxu0 0.0
    %v415 = vand.u32 %v57, 4294901760
    %416 = vmatmul.mubr.f32.gmra.mrb[0].mxu0 %v415
    %v417 = vpop.f32.mrb[0].mxu0
    %v418 = vadd.f32 %v199, %v417
    %v419 = vpop.f32.mrb[0].mxu0
    %420 = vmatprep.mubr.f32.mxu0 0.0
    %v421 = vand.u32 %v60, 4294901760
    %422 = vmatmul.mubr.f32.gmra.mrb[0].mxu0 %v421
    %v423 = vpop.f32.mrb[0].mxu0
    %v424 = vadd.f32 %v209, %v423
    %v425 = vpop.f32.mrb[0].mxu0
    %426 = vmatprep.mubr.f32.mxu0 0.0
    %v427 = vand.u32 %v63, 4294901760
    %428 = vmatmul.mubr.f32.gmra.mrb[0].mxu0 %v427
    %v429 = vpop.f32.mrb[0].mxu0
    %v430 = vadd.f32 %v219, %v429
    %v431 = vpop.f32.mrb[0].mxu0
    %432 = vmatprep.mubr.f32.mxu0 0.0
    %v433 = vand.u32 %v66, 4294901760
    %434 = vmatmul.mubr.f32.gmra.mrb[0].mxu0 %v433
    %v435 = vpop.f32.mrb[0].mxu0
    %v436 = vadd.f32 %v229, %v435
    %v437 = vpop.f32.mrb[0].mxu0
    %438 = vmatprep.mubr.f32.mxu0 0.0
    %v439 = vand.u32 %v69, 4294901760
    %440 = vmatmul.mubr.f32.gmra.mrb[0].mxu0 %v439
    %v441 = vpop.f32.mrb[0].mxu0
    %v442 = vadd.f32 %v239, %v441
    %v443 = vpop.f32.mrb[0].mxu0
    %444 = vmatprep.mubr.f32.mxu0 0.0
    %v445 = vand.u32 %v72, 4294901760
    %446 = vmatmul.mubr.f32.gmra.mrb[0].mxu0 %v445
    %v447 = vpop.f32.mrb[0].mxu0
    %v448 = vadd.f32 %v249, %v447
    %v449 = vpop.f32.mrb[0].mxu0
    %450 = vmatprep.mubr.f32.mxu0 0.0
    %v451 = vand.u32 %v75, 4294901760
    %452 = vmatmul.mubr.f32.gmra.mrb[0].mxu0 %v451
    %v453 = vpop.f32.mrb[0].mxu0
    %v454 = vadd.f32 %v259, %v453
    %v455 = vpop.f32.mrb[0].mxu0
    %456 = vmatprep.mubr.f32.mxu0 0.0
    %v457 = vand.u32 %v78, 4294901760
    %458 = vmatmul.mubr.f32.gmra.mrb[0].mxu0 %v457
    %v459 = vpop.f32.mrb[0].mxu0
    %v460 = vadd.f32 %v269, %v459
    %v461 = vpop.f32.mrb[0].mxu0
    %462 = vmatprep.mubr.f32.mxu0 0.0
    %v463 = vand.u32 %v81, 4294901760
    %464 = vmatmul.mubr.f32.gmra.mrb[0].mxu0 %v463
    %v465 = vpop.f32.mrb[0].mxu0
    %v466 = vadd.f32 %v279, %v465
    %v467 = vpop.f32.mrb[0].mxu0
    %468 = vmatprep.mubr.f32.mxu0 0.0
    %v469 = vand.u32 %v84, 4294901760
    %470 = vmatmul.mubr.f32.gmra.mrb[0].mxu0 %v469
    %v471 = vpop.f32.mrb[0].mxu0
    %v472 = vadd.f32 %v289, %v471
    %v473 = vpop.f32.mrb[0].mxu0
    %474 = vmatprep.mubr.f32.mxu0 0.0
    %v475 = vand.u32 %v87, 4294901760
    %476 = vmatmul.mubr.f32.gmra.mrb[0].mxu0 %v475
    %v477 = vpop.f32.mrb[0].mxu0
    %v478 = vadd.f32 %v299, %v477
    %v479 = vpop.f32.mrb[0].mxu0
    %480 = vmatprep.mubr.f32.mxu0 0.0
    %v481 = vand.u32 %v90, 4294901760
    %482 = vmatmul.mubr.f32.gmra.mrb[0].mxu0 %v481
    %v483 = vpop.f32.mrb[0].mxu0
    %v484 = vadd.f32 %v309, %v483
    %v485 = vpop.f32.mrb[0].mxu0
    %486 = vmatprep.mubr.f32.mxu0 0.0
    %v487 = vand.u32 %v93, 4294901760
    %488 = vmatmul.mubr.f32.gmra.mrb[0].mxu0 %v487
    %v489 = vpop.f32.mrb[0].mxu0
    %v490 = vadd.f32 %v319, %v489
    %v491 = vpop.f32.mrb[0].mxu0
    %492 = vdwg.mxu0
    %493 = vmatprep.subr.mxu0 0.0
    %v494 = vand.u32 %v44, 4294901760
    %v495 = vsub.f32 %v44, %v494
    %496 = vmatpush1.msra.mxu0 %v495
    %497 = vmatprep.subr.mxu0 0.0
    %v498 = vand.u32 %v45, 4294901760
    %v499 = vsub.f32 %v45, %v498
    %500 = vmatpush1.msra.mxu0 %v499
    %501 = vmatprep.subr.mxu0 0.0
    %502 = vmatpush1.msra.mxu0 0.0
    %503 = vmatprep.subr.mxu0 0.0
    %504 = vmatpush1.msra.mxu0 0.0
    %505 = vmatprep.subr.mxu0 0.0
    %506 = vmatpush1.msra.mxu0 0.0
    %507 = vmatprep.subr.mxu0 0.0
    %508 = vmatpush1.msra.mxu0 0.0
    %509 = vmatprep.subr.mxu0 0.0
    %510 = vmatpush1.msra.mxu0 0.0
    %511 = vmatprep.subr.mxu0 0.0
    %512 = vmatpush1.msra.mxu0 0.0
    %513 = vmatprep.subr.mxu0 0.0
    %514 = vmatpush1.msra.mxu0 0.0
    %515 = vmatprep.subr.mxu0 0.0
    %516 = vmatpush1.msra.mxu0 0.0
    %517 = vmatprep.subr.mxu0 0.0
    %518 = vmatpush1.msra.mxu0 0.0
    %519 = vmatprep.subr.mxu0 0.0
    %520 = vmatpush1.msra.mxu0 0.0
    %521 = vmatprep.subr.mxu0 0.0
    %522 = vmatpush1.msra.mxu0 0.0
    %523 = vmatprep.subr.mxu0 0.0
    %524 = vmatpush1.msra.mxu0 0.0
    %525 = vmatprep.subr.mxu0 0.0
    %526 = vmatpush1.msra.mxu0 0.0
    %527 = vmatprep.subr.mxu0 0.0
    %528 = vmatpush1.msra.mxu0 0.0
    %529 = vmatprep.subr.mxu0 0.0
    %530 = vmatpush1.msra.mxu0 0.0
    %531 = vmatprep.subr.mxu0 0.0
    %532 = vmatpush1.msra.mxu0 0.0
    %533 = vmatprep.subr.mxu0 0.0
    %534 = vmatpush1.msra.mxu0 0.0
    %535 = vmatprep.subr.mxu0 0.0
    %536 = vmatpush1.msra.mxu0 0.0
    %537 = vmatprep.subr.mxu0 0.0
    %538 = vmatpush1.msra.mxu0 0.0
    %539 = vmatprep.subr.mxu0 0.0
    %540 = vmatpush1.msra.mxu0 0.0
    %541 = vmatprep.subr.mxu0 0.0
    %542 = vmatpush1.msra.mxu0 0.0
    %543 = vmatprep.subr.mxu0 0.0
    %544 = vmatpush1.msra.mxu0 0.0
    %545 = vmatprep.subr.mxu0 0.0
    %546 = vmatpush1.msra.mxu0 0.0
    %547 = vmatprep.subr.mxu0 0.0
    %548 = vmatpush1.msra.mxu0 0.0
    %549 = vmatprep.subr.mxu0 0.0
    %550 = vmatpush1.msra.mxu0 0.0
    %551 = vmatprep.subr.mxu0 0.0
    %552 = vmatpush1.msra.mxu0 0.0
    %553 = vmatprep.subr.mxu0 0.0
    %554 = vmatpush1.msra.mxu0 0.0
    %555 = vmatprep.subr.mxu0 0.0
    %556 = vmatpush1.msra.mxu0 0.0
    %557 = vmatprep.subr.mxu0 0.0
    %558 = vmatpush1.msra.mxu0 0.0
    %559 = vmatprep.subr.mxu0 0.0
    %560 = vmatpush1.msra.mxu0 0.0
    %561 = vmatprep.mubr.f32.mxu0 0.0
    %v562 = vand.u32 %v48, 4294901760
    %v563 = vsub.f32 %v48, %v562
    %564 = vmatmul.mubr.f32.gmra.mrb[0].mxu0 %v563
    %v565 = vpop.f32.mrb[0].mxu0
    %v566 = vadd.f32 %v400, %v565
    %v567 = vpop.f32.mrb[0].mxu0
    %568 = vmatprep.mubr.f32.mxu0 0.0
    %v569 = vand.u32 %v51, 4294901760
    %v570 = vsub.f32 %v51, %v569
    %571 = vmatmul.mubr.f32.gmra.mrb[0].mxu0 %v570
    %v572 = vpop.f32.mrb[0].mxu0
    %v573 = vadd.f32 %v406, %v572
    %v574 = vpop.f32.mrb[0].mxu0
    %575 = vmatprep.mubr.f32.mxu0 0.0
    %v576 = vand.u32 %v54, 4294901760
    %v577 = vsub.f32 %v54, %v576
    %578 = vmatmul.mubr.f32.gmra.mrb[0].mxu0 %v577
    %v579 = vpop.f32.mrb[0].mxu0
    %v580 = vadd.f32 %v412, %v579
    %v581 = vpop.f32.mrb[0].mxu0
    %582 = vmatprep.mubr.f32.mxu0 0.0
    %v583 = vand.u32 %v57, 4294901760
    %v584 = vsub.f32 %v57, %v583
    %585 = vmatmul.mubr.f32.gmra.mrb[0].mxu0 %v584
    %v586 = vpop.f32.mrb[0].mxu0
    %v587 = vadd.f32 %v418, %v586
    %v588 = vpop.f32.mrb[0].mxu0
    %589 = vmatprep.mubr.f32.mxu0 0.0
    %v590 = vand.u32 %v60, 4294901760
    %v591 = vsub.f32 %v60, %v590
    %592 = vmatmul.mubr.f32.gmra.mrb[0].mxu0 %v591
    %v593 = vpop.f32.mrb[0].mxu0
    %v594 = vadd.f32 %v424, %v593
    %v595 = vpop.f32.mrb[0].mxu0
    %596 = vmatprep.mubr.f32.mxu0 0.0
    %v597 = vand.u32 %v63, 4294901760
    %v598 = vsub.f32 %v63, %v597
    %599 = vmatmul.mubr.f32.gmra.mrb[0].mxu0 %v598
    %v600 = vpop.f32.mrb[0].mxu0
    %v601 = vadd.f32 %v430, %v600
    %v602 = vpop.f32.mrb[0].mxu0
    %603 = vmatprep.mubr.f32.mxu0 0.0
    %v604 = vand.u32 %v66, 4294901760
    %v605 = vsub.f32 %v66, %v604
    %606 = vmatmul.mubr.f32.gmra.mrb[0].mxu0 %v605
    %v607 = vpop.f32.mrb[0].mxu0
    %v608 = vadd.f32 %v436, %v607
    %v609 = vpop.f32.mrb[0].mxu0
    %610 = vmatprep.mubr.f32.mxu0 0.0
    %v611 = vand.u32 %v69, 4294901760
    %v612 = vsub.f32 %v69, %v611
    %613 = vmatmul.mubr.f32.gmra.mrb[0].mxu0 %v612
    %v614 = vpop.f32.mrb[0].mxu0
    %v615 = vadd.f32 %v442, %v614
    %v616 = vpop.f32.mrb[0].mxu0
    %617 = vmatprep.mubr.f32.mxu0 0.0
    %v618 = vand.u32 %v72, 4294901760
    %v619 = vsub.f32 %v72, %v618
    %620 = vmatmul.mubr.f32.gmra.mrb[0].mxu0 %v619
    %v621 = vpop.f32.mrb[0].mxu0
    %v622 = vadd.f32 %v448, %v621
    %v623 = vpop.f32.mrb[0].mxu0
    %624 = vmatprep.mubr.f32.mxu0 0.0
    %v625 = vand.u32 %v75, 4294901760
    %v626 = vsub.f32 %v75, %v625
    %627 = vmatmul.mubr.f32.gmra.mrb[0].mxu0 %v626
    %v628 = vpop.f32.mrb[0].mxu0
    %v629 = vadd.f32 %v454, %v628
    %v630 = vpop.f32.mrb[0].mxu0
    %631 = vmatprep.mubr.f32.mxu0 0.0
    %v632 = vand.u32 %v78, 4294901760
    %v633 = vsub.f32 %v78, %v632
    %634 = vmatmul.mubr.f32.gmra.mrb[0].mxu0 %v633
    %v635 = vpop.f32.mrb[0].mxu0
    %v636 = vadd.f32 %v460, %v635
    %v637 = vpop.f32.mrb[0].mxu0
    %638 = vmatprep.mubr.f32.mxu0 0.0
    %v639 = vand.u32 %v81, 4294901760
    %v640 = vsub.f32 %v81, %v639
    %641 = vmatmul.mubr.f32.gmra.mrb[0].mxu0 %v640
    %v642 = vpop.f32.mrb[0].mxu0
    %v643 = vadd.f32 %v466, %v642
    %v644 = vpop.f32.mrb[0].mxu0
    %645 = vmatprep.mubr.f32.mxu0 0.0
    %v646 = vand.u32 %v84, 4294901760
    %v647 = vsub.f32 %v84, %v646
    %648 = vmatmul.mubr.f32.gmra.mrb[0].mxu0 %v647
    %v649 = vpop.f32.mrb[0].mxu0
    %v650 = vadd.f32 %v472, %v649
    %v651 = vpop.f32.mrb[0].mxu0
    %652 = vmatprep.mubr.f32.mxu0 0.0
    %v653 = vand.u32 %v87, 4294901760
    %v654 = vsub.f32 %v87, %v653
    %655 = vmatmul.mubr.f32.gmra.mrb[0].mxu0 %v654
    %v656 = vpop.f32.mrb[0].mxu0
    %v657 = vadd.f32 %v478, %v656
    %v658 = vpop.f32.mrb[0].mxu0
    %659 = vmatprep.mubr.f32.mxu0 0.0
    %v660 = vand.u32 %v90, 4294901760
    %v661 = vsub.f32 %v90, %v660
    %662 = vmatmul.mubr.f32.gmra.mrb[0].mxu0 %v661
    %v663 = vpop.f32.mrb[0].mxu0
    %v664 = vadd.f32 %v484, %v663
    %v665 = vpop.f32.mrb[0].mxu0
    %666 = vmatprep.mubr.f32.mxu0 0.0
    %v667 = vand.u32 %v93, 4294901760
    %v668 = vsub.f32 %v93, %v667
    %669 = vmatmul.mubr.f32.gmra.mrb[0].mxu0 %v668
    %v670 = vpop.f32.mrb[0].mxu0
    %v671 = vadd.f32 %v490, %v670
    %v672 = vpop.f32.mrb[0].mxu0
    %673 = vdwg.mxu0
    %674 = vmatprep.subr.mxu0 0.0
    %v675 = vand.u32 %v44, 4294901760
    %676 = vmatpush1.msra.mxu0 %v675
    %677 = vmatprep.subr.mxu0 0.0
    %v678 = vand.u32 %v45, 4294901760
    %679 = vmatpush1.msra.mxu0 %v678
    %680 = vmatprep.subr.mxu0 0.0
    %681 = vmatpush1.msra.mxu0 0.0
    %682 = vmatprep.subr.mxu0 0.0
    %683 = vmatpush1.msra.mxu0 0.0
    %684 = vmatprep.subr.mxu0 0.0
    %685 = vmatpush1.msra.mxu0 0.0
    %686 = vmatprep.subr.mxu0 0.0
    %687 = vmatpush1.msra.mxu0 0.0
    %688 = vmatprep.subr.mxu0 0.0
    %689 = vmatpush1.msra.mxu0 0.0
    %690 = vmatprep.subr.mxu0 0.0
    %691 = vmatpush1.msra.mxu0 0.0
    %692 = vmatprep.subr.mxu0 0.0
    %693 = vmatpush1.msra.mxu0 0.0
    %694 = vmatprep.subr.mxu0 0.0
    %695 = vmatpush1.msra.mxu0 0.0
    %696 = vmatprep.subr.mxu0 0.0
    %697 = vmatpush1.msra.mxu0 0.0
    %698 = vmatprep.subr.mxu0 0.0
    %699 = vmatpush1.msra.mxu0 0.0
    %700 = vmatprep.subr.mxu0 0.0
    %701 = vmatpush1.msra.mxu0 0.0
    %702 = vmatprep.subr.mxu0 0.0
    %703 = vmatpush1.msra.mxu0 0.0
    %704 = vmatprep.subr.mxu0 0.0
    %705 = vmatpush1.msra.mxu0 0.0
    %706 = vmatprep.subr.mxu0 0.0
    %707 = vmatpush1.msra.mxu0 0.0
    %708 = vmatprep.subr.mxu0 0.0
    %709 = vmatpush1.msra.mxu0 0.0
    %710 = vmatprep.subr.mxu0 0.0
    %711 = vmatpush1.msra.mxu0 0.0
    %712 = vmatprep.subr.mxu0 0.0
    %713 = vmatpush1.msra.mxu0 0.0
    %714 = vmatprep.subr.mxu0 0.0
    %715 = vmatpush1.msra.mxu0 0.0
    %716 = vmatprep.subr.mxu0 0.0
    %717 = vmatpush1.msra.mxu0 0.0
    %718 = vmatprep.subr.mxu0 0.0
    %719 = vmatpush1.msra.mxu0 0.0
    %720 = vmatprep.subr.mxu0 0.0
    %721 = vmatpush1.msra.mxu0 0.0
    %722 = vmatprep.subr.mxu0 0.0
    %723 = vmatpush1.msra.mxu0 0.0
    %724 = vmatprep.subr.mxu0 0.0
    %725 = vmatpush1.msra.mxu0 0.0
    %726 = vmatprep.subr.mxu0 0.0
    %727 = vmatpush1.msra.mxu0 0.0
    %728 = vmatprep.subr.mxu0 0.0
    %729 = vmatpush1.msra.mxu0 0.0
    %730 = vmatprep.subr.mxu0 0.0
    %731 = vmatpush1.msra.mxu0 0.0
    %732 = vmatprep.subr.mxu0 0.0
    %733 = vmatpush1.msra.mxu0 0.0
    %734 = vmatprep.subr.mxu0 0.0
    %735 = vmatpush1.msra.mxu0 0.0
    %736 = vmatprep.subr.mxu0 0.0
    %737 = vmatpush1.msra.mxu0 0.0
    %738 = vmatprep.subr.mxu0 0.0
    %739 = vmatpush1.msra.mxu0 0.0
    %740 = vmatprep.mubr.f32.mxu0 0.0
    %v741 = vand.u32 %v48, 4294901760
    %v742 = vsub.f32 %v48, %v741
    %v743 = vand.u32 %v742, 4294901760
    %744 = vmatmul.mubr.f32.gmra.mrb[0].mxu0 %v743
    %v745 = vpop.f32.mrb[0].mxu0
    %v746 = vadd.f32 %v566, %v745
    %v747 = vpop.f32.mrb[0].mxu0
    %748 = vmatprep.mubr.f32.mxu0 0.0
    %v749 = vand.u32 %v51, 4294901760
    %v750 = vsub.f32 %v51, %v749
    %v751 = vand.u32 %v750, 4294901760
    %752 = vmatmul.mubr.f32.gmra.mrb[0].mxu0 %v751
    %v753 = vpop.f32.mrb[0].mxu0
    %v754 = vadd.f32 %v573, %v753
    %v755 = vpop.f32.mrb[0].mxu0
    %756 = vmatprep.mubr.f32.mxu0 0.0
    %v757 = vand.u32 %v54, 4294901760
    %v758 = vsub.f32 %v54, %v757
    %v759 = vand.u32 %v758, 4294901760
    %760 = vmatmul.mubr.f32.gmra.mrb[0].mxu0 %v759
    %v761 = vpop.f32.mrb[0].mxu0
    %v762 = vadd.f32 %v580, %v761
    %v763 = vpop.f32.mrb[0].mxu0
    %764 = vmatprep.mubr.f32.mxu0 0.0
    %v765 = vand.u32 %v57, 4294901760
    %v766 = vsub.f32 %v57, %v765
    %v767 = vand.u32 %v766, 4294901760
    %768 = vmatmul.mubr.f32.gmra.mrb[0].mxu0 %v767
    %v769 = vpop.f32.mrb[0].mxu0
    %v770 = vadd.f32 %v587, %v769
    %v771 = vpop.f32.mrb[0].mxu0
    %772 = vmatprep.mubr.f32.mxu0 0.0
    %v773 = vand.u32 %v60, 4294901760
    %v774 = vsub.f32 %v60, %v773
    %v775 = vand.u32 %v774, 4294901760
    %776 = vmatmul.mubr.f32.gmra.mrb[0].mxu0 %v775
    %v777 = vpop.f32.mrb[0].mxu0
    %v778 = vadd.f32 %v594, %v777
    %v779 = vpop.f32.mrb[0].mxu0
    %780 = vmatprep.mubr.f32.mxu0 0.0
    %v781 = vand.u32 %v63, 4294901760
    %v782 = vsub.f32 %v63, %v781
    %v783 = vand.u32 %v782, 4294901760
    %784 = vmatmul.mubr.f32.gmra.mrb[0].mxu0 %v783
    %v785 = vpop.f32.mrb[0].mxu0
    %v786 = vadd.f32 %v601, %v785
    %v787 = vpop.f32.mrb[0].mxu0
    %788 = vmatprep.mubr.f32.mxu0 0.0
    %v789 = vand.u32 %v66, 4294901760
    %v790 = vsub.f32 %v66, %v789
    %v791 = vand.u32 %v790, 4294901760
    %792 = vmatmul.mubr.f32.gmra.mrb[0].mxu0 %v791
    %v793 = vpop.f32.mrb[0].mxu0
    %v794 = vadd.f32 %v608, %v793
    %v795 = vpop.f32.mrb[0].mxu0
    %796 = vmatprep.mubr.f32.mxu0 0.0
    %v797 = vand.u32 %v69, 4294901760
    %v798 = vsub.f32 %v69, %v797
    %v799 = vand.u32 %v798, 4294901760
    %800 = vmatmul.mubr.f32.gmra.mrb[0].mxu0 %v799
    %v801 = vpop.f32.mrb[0].mxu0
    %v802 = vadd.f32 %v615, %v801
    %v803 = vpop.f32.mrb[0].mxu0
    %804 = vmatprep.mubr.f32.mxu0 0.0
    %v805 = vand.u32 %v72, 4294901760
    %v806 = vsub.f32 %v72, %v805
    %v807 = vand.u32 %v806, 4294901760
    %808 = vmatmul.mubr.f32.gmra.mrb[0].mxu0 %v807
    %v809 = vpop.f32.mrb[0].mxu0
    %v810 = vadd.f32 %v622, %v809
    %v811 = vpop.f32.mrb[0].mxu0
    %812 = vmatprep.mubr.f32.mxu0 0.0
    %v813 = vand.u32 %v75, 4294901760
    %v814 = vsub.f32 %v75, %v813
    %v815 = vand.u32 %v814, 4294901760
    %816 = vmatmul.mubr.f32.gmra.mrb[0].mxu0 %v815
    %v817 = vpop.f32.mrb[0].mxu0
    %v818 = vadd.f32 %v629, %v817
    %v819 = vpop.f32.mrb[0].mxu0
    %820 = vmatprep.mubr.f32.mxu0 0.0
    %v821 = vand.u32 %v78, 4294901760
    %v822 = vsub.f32 %v78, %v821
    %v823 = vand.u32 %v822, 4294901760
    %824 = vmatmul.mubr.f32.gmra.mrb[0].mxu0 %v823
    %v825 = vpop.f32.mrb[0].mxu0
    %v826 = vadd.f32 %v636, %v825
    %v827 = vpop.f32.mrb[0].mxu0
    %828 = vmatprep.mubr.f32.mxu0 0.0
    %v829 = vand.u32 %v81, 4294901760
    %v830 = vsub.f32 %v81, %v829
    %v831 = vand.u32 %v830, 4294901760
    %832 = vmatmul.mubr.f32.gmra.mrb[0].mxu0 %v831
    %v833 = vpop.f32.mrb[0].mxu0
    %v834 = vadd.f32 %v643, %v833
    %v835 = vpop.f32.mrb[0].mxu0
    %836 = vmatprep.mubr.f32.mxu0 0.0
    %v837 = vand.u32 %v84, 4294901760
    %v838 = vsub.f32 %v84, %v837
    %v839 = vand.u32 %v838, 4294901760
    %840 = vmatmul.mubr.f32.gmra.mrb[0].mxu0 %v839
    %v841 = vpop.f32.mrb[0].mxu0
    %v842 = vadd.f32 %v650, %v841
    %v843 = vpop.f32.mrb[0].mxu0
    %844 = vmatprep.mubr.f32.mxu0 0.0
    %v845 = vand.u32 %v87, 4294901760
    %v846 = vsub.f32 %v87, %v845
    %v847 = vand.u32 %v846, 4294901760
    %848 = vmatmul.mubr.f32.gmra.mrb[0].mxu0 %v847
    %v849 = vpop.f32.mrb[0].mxu0
    %v850 = vadd.f32 %v657, %v849
    %v851 = vpop.f32.mrb[0].mxu0
    %852 = vmatprep.mubr.f32.mxu0 0.0
    %v853 = vand.u32 %v90, 4294901760
    %v854 = vsub.f32 %v90, %v853
    %v855 = vand.u32 %v854, 4294901760
    %856 = vmatmul.mubr.f32.gmra.mrb[0].mxu0 %v855
    %v857 = vpop.f32.mrb[0].mxu0
    %v858 = vadd.f32 %v664, %v857
    %v859 = vpop.f32.mrb[0].mxu0
    %860 = vmatprep.mubr.f32.mxu0 0.0
    %v861 = vand.u32 %v93, 4294901760
    %v862 = vsub.f32 %v93, %v861
    %v863 = vand.u32 %v862, 4294901760
    %864 = vmatmul.mubr.f32.gmra.mrb[0].mxu0 %v863
    %v865 = vpop.f32.mrb[0].mxu0
    %v866 = vadd.f32 %v671, %v865
    %v867 = vpop.f32.mrb[0].mxu0
    %868 = vdwg.mxu0
    %869 = vmatprep.subr.mxu0 0.0
    %v870 = vand.u32 %v44, 4294901760
    %v871 = vsub.f32 %v44, %v870
    %v872 = vand.u32 %v871, 4294901760
    %873 = vmatpush1.msra.mxu0 %v872
    %874 = vmatprep.subr.mxu0 0.0
    %v875 = vand.u32 %v45, 4294901760
    %v876 = vsub.f32 %v45, %v875
    %v877 = vand.u32 %v876, 4294901760
    %878 = vmatpush1.msra.mxu0 %v877
    %879 = vmatprep.subr.mxu0 0.0
    %880 = vmatpush1.msra.mxu0 0.0
    %881 = vmatprep.subr.mxu0 0.0
    %882 = vmatpush1.msra.mxu0 0.0
    %883 = vmatprep.subr.mxu0 0.0
    %884 = vmatpush1.msra.mxu0 0.0
    %885 = vmatprep.subr.mxu0 0.0
    %886 = vmatpush1.msra.mxu0 0.0
    %887 = vmatprep.subr.mxu0 0.0
    %888 = vmatpush1.msra.mxu0 0.0
    %889 = vmatprep.subr.mxu0 0.0
    %890 = vmatpush1.msra.mxu0 0.0
    %891 = vmatprep.subr.mxu0 0.0
    %892 = vmatpush1.msra.mxu0 0.0
    %893 = vmatprep.subr.mxu0 0.0
    %894 = vmatpush1.msra.mxu0 0.0
    %895 = vmatprep.subr.mxu0 0.0
    %896 = vmatpush1.msra.mxu0 0.0
    %897 = vmatprep.subr.mxu0 0.0
    %898 = vmatpush1.msra.mxu0 0.0
    %899 = vmatprep.subr.mxu0 0.0
    %900 = vmatpush1.msra.mxu0 0.0
    %901 = vmatprep.subr.mxu0 0.0
    %902 = vmatpush1.msra.mxu0 0.0
    %903 = vmatprep.subr.mxu0 0.0
    %904 = vmatpush1.msra.mxu0 0.0
    %905 = vmatprep.subr.mxu0 0.0
    %906 = vmatpush1.msra.mxu0 0.0
    %907 = vmatprep.subr.mxu0 0.0
    %908 = vmatpush1.msra.mxu0 0.0
    %909 = vmatprep.subr.mxu0 0.0
    %910 = vmatpush1.msra.mxu0 0.0
    %911 = vmatprep.subr.mxu0 0.0
    %912 = vmatpush1.msra.mxu0 0.0
    %913 = vmatprep.subr.mxu0 0.0
    %914 = vmatpush1.msra.mxu0 0.0
    %915 = vmatprep.subr.mxu0 0.0
    %916 = vmatpush1.msra.mxu0 0.0
    %917 = vmatprep.subr.mxu0 0.0
    %918 = vmatpush1.msra.mxu0 0.0
    %919 = vmatprep.subr.mxu0 0.0
    %920 = vmatpush1.msra.mxu0 0.0
    %921 = vmatprep.subr.mxu0 0.0
    %922 = vmatpush1.msra.mxu0 0.0
    %923 = vmatprep.subr.mxu0 0.0
    %924 = vmatpush1.msra.mxu0 0.0
    %925 = vmatprep.subr.mxu0 0.0
    %926 = vmatpush1.msra.mxu0 0.0
    %927 = vmatprep.subr.mxu0 0.0
    %928 = vmatpush1.msra.mxu0 0.0
    %929 = vmatprep.subr.mxu0 0.0
    %930 = vmatpush1.msra.mxu0 0.0
    %931 = vmatprep.subr.mxu0 0.0
    %932 = vmatpush1.msra.mxu0 0.0
    %933 = vmatprep.subr.mxu0 0.0
    %934 = vmatpush1.msra.mxu0 0.0
    %935 = vmatprep.subr.mxu0 0.0
    %936 = vmatpush1.msra.mxu0 0.0
    %937 = vmatprep.subr.mxu0 0.0
    %938 = vmatpush1.msra.mxu0 0.0
    %939 = vmatprep.mubr.f32.mxu0 0.0
    %v940 = vand.u32 %v48, 4294901760
    %941 = vmatmul.mubr.f32.gmra.mrb[0].mxu0 %v940
    %v942 = vpop.f32.mrb[0].mxu0
    %v943 = vadd.f32 %v746, %v942
    %v944 = vpop.f32.mrb[0].mxu0
    %945 = vmatprep.mubr.f32.mxu0 0.0
    %v946 = vand.u32 %v51, 4294901760
    %947 = vmatmul.mubr.f32.gmra.mrb[0].mxu0 %v946
    %v948 = vpop.f32.mrb[0].mxu0
    %v949 = vadd.f32 %v754, %v948
    %v950 = vpop.f32.mrb[0].mxu0
    %951 = vmatprep.mubr.f32.mxu0 0.0
    %v952 = vand.u32 %v54, 4294901760
    %953 = vmatmul.mubr.f32.gmra.mrb[0].mxu0 %v952
    %v954 = vpop.f32.mrb[0].mxu0
    %v955 = vadd.f32 %v762, %v954
    %v956 = vpop.f32.mrb[0].mxu0
    %957 = vmatprep.mubr.f32.mxu0 0.0
    %v958 = vand.u32 %v57, 4294901760
    %959 = vmatmul.mubr.f32.gmra.mrb[0].mxu0 %v958
    %v960 = vpop.f32.mrb[0].mxu0
    %v961 = vadd.f32 %v770, %v960
    %v962 = vpop.f32.mrb[0].mxu0
    %963 = vmatprep.mubr.f32.mxu0 0.0
    %v964 = vand.u32 %v60, 4294901760
    %965 = vmatmul.mubr.f32.gmra.mrb[0].mxu0 %v964
    %v966 = vpop.f32.mrb[0].mxu0
    %v967 = vadd.f32 %v778, %v966
    %v968 = vpop.f32.mrb[0].mxu0
    %969 = vmatprep.mubr.f32.mxu0 0.0
    %v970 = vand.u32 %v63, 4294901760
    %971 = vmatmul.mubr.f32.gmra.mrb[0].mxu0 %v970
    %v972 = vpop.f32.mrb[0].mxu0
    %v973 = vadd.f32 %v786, %v972
    %v974 = vpop.f32.mrb[0].mxu0
    %975 = vmatprep.mubr.f32.mxu0 0.0
    %v976 = vand.u32 %v66, 4294901760
    %977 = vmatmul.mubr.f32.gmra.mrb[0].mxu0 %v976
    %v978 = vpop.f32.mrb[0].mxu0
    %v979 = vadd.f32 %v794, %v978
    %v980 = vpop.f32.mrb[0].mxu0
    %981 = vmatprep.mubr.f32.mxu0 0.0
    %v982 = vand.u32 %v69, 4294901760
    %983 = vmatmul.mubr.f32.gmra.mrb[0].mxu0 %v982
    %v984 = vpop.f32.mrb[0].mxu0
    %v985 = vadd.f32 %v802, %v984
    %v986 = vpop.f32.mrb[0].mxu0
    %987 = vmatprep.mubr.f32.mxu0 0.0
    %v988 = vand.u32 %v72, 4294901760
    %989 = vmatmul.mubr.f32.gmra.mrb[0].mxu0 %v988
    %v990 = vpop.f32.mrb[0].mxu0
    %v991 = vadd.f32 %v810, %v990
    %v992 = vpop.f32.mrb[0].mxu0
    %993 = vmatprep.mubr.f32.mxu0 0.0
    %v994 = vand.u32 %v75, 4294901760
    %995 = vmatmul.mubr.f32.gmra.mrb[0].mxu0 %v994
    %v996 = vpop.f32.mrb[0].mxu0
    %v997 = vadd.f32 %v818, %v996
    %v998 = vpop.f32.mrb[0].mxu0
    %999 = vmatprep.mubr.f32.mxu0 0.0
    %v1000 = vand.u32 %v78, 4294901760
    %1001 = vmatmul.mubr.f32.gmra.mrb[0].mxu0 %v1000
    %v1002 = vpop.f32.mrb[0].mxu0
    %v1003 = vadd.f32 %v826, %v1002
    %v1004 = vpop.f32.mrb[0].mxu0
    %1005 = vmatprep.mubr.f32.mxu0 0.0
    %v1006 = vand.u32 %v81, 4294901760
    %1007 = vmatmul.mubr.f32.gmra.mrb[0].mxu0 %v1006
    %v1008 = vpop.f32.mrb[0].mxu0
    %v1009 = vadd.f32 %v834, %v1008
    %v1010 = vpop.f32.mrb[0].mxu0
    %1011 = vmatprep.mubr.f32.mxu0 0.0
    %v1012 = vand.u32 %v84, 4294901760
    %1013 = vmatmul.mubr.f32.gmra.mrb[0].mxu0 %v1012
    %v1014 = vpop.f32.mrb[0].mxu0
    %v1015 = vadd.f32 %v842, %v1014
    %v1016 = vpop.f32.mrb[0].mxu0
    %1017 = vmatprep.mubr.f32.mxu0 0.0
    %v1018 = vand.u32 %v87, 4294901760
    %1019 = vmatmul.mubr.f32.gmra.mrb[0].mxu0 %v1018
    %v1020 = vpop.f32.mrb[0].mxu0
    %v1021 = vadd.f32 %v850, %v1020
    %v1022 = vpop.f32.mrb[0].mxu0
    %1023 = vmatprep.mubr.f32.mxu0 0.0
    %v1024 = vand.u32 %v90, 4294901760
    %1025 = vmatmul.mubr.f32.gmra.mrb[0].mxu0 %v1024
    %v1026 = vpop.f32.mrb[0].mxu0
    %v1027 = vadd.f32 %v858, %v1026
    %v1028 = vpop.f32.mrb[0].mxu0
    %1029 = vmatprep.mubr.f32.mxu0 0.0
    %v1030 = vand.u32 %v93, 4294901760
    %1031 = vmatmul.mubr.f32.gmra.mrb[0].mxu0 %v1030
    %v1032 = vpop.f32.mrb[0].mxu0
    %v1033 = vadd.f32 %v866, %v1032
    %v1034 = vpop.f32.mrb[0].mxu0
    %1035 = vdwg.mxu0
    %1036 = vmatprep.subr.mxu0 0.0
    %v1037 = vand.u32 %v44, 4294901760
    %1038 = vmatpush1.msra.mxu0 %v1037
    %1039 = vmatprep.subr.mxu0 0.0
    %v1040 = vand.u32 %v45, 4294901760
    %1041 = vmatpush1.msra.mxu0 %v1040
    %1042 = vmatprep.subr.mxu0 0.0
    %1043 = vmatpush1.msra.mxu0 0.0
    %1044 = vmatprep.subr.mxu0 0.0
    %1045 = vmatpush1.msra.mxu0 0.0
    %1046 = vmatprep.subr.mxu0 0.0
    %1047 = vmatpush1.msra.mxu0 0.0
    %1048 = vmatprep.subr.mxu0 0.0
    %1049 = vmatpush1.msra.mxu0 0.0
    %1050 = vmatprep.subr.mxu0 0.0
    %1051 = vmatpush1.msra.mxu0 0.0
    %1052 = vmatprep.subr.mxu0 0.0
    %1053 = vmatpush1.msra.mxu0 0.0
    %1054 = vmatprep.subr.mxu0 0.0
    %1055 = vmatpush1.msra.mxu0 0.0
    %1056 = vmatprep.subr.mxu0 0.0
    %1057 = vmatpush1.msra.mxu0 0.0
    %1058 = vmatprep.subr.mxu0 0.0
    %1059 = vmatpush1.msra.mxu0 0.0
    %1060 = vmatprep.subr.mxu0 0.0
    %1061 = vmatpush1.msra.mxu0 0.0
    %1062 = vmatprep.subr.mxu0 0.0
    %1063 = vmatpush1.msra.mxu0 0.0
    %1064 = vmatprep.subr.mxu0 0.0
    %1065 = vmatpush1.msra.mxu0 0.0
    %1066 = vmatprep.subr.mxu0 0.0
    %1067 = vmatpush1.msra.mxu0 0.0
    %1068 = vmatprep.subr.mxu0 0.0
    %1069 = vmatpush1.msra.mxu0 0.0
    %1070 = vmatprep.subr.mxu0 0.0
    %1071 = vmatpush1.msra.mxu0 0.0
    %1072 = vmatprep.subr.mxu0 0.0
    %1073 = vmatpush1.msra.mxu0 0.0
    %1074 = vmatprep.subr.mxu0 0.0
    %1075 = vmatpush1.msra.mxu0 0.0
    %1076 = vmatprep.subr.mxu0 0.0
    %1077 = vmatpush1.msra.mxu0 0.0
    %1078 = vmatprep.subr.mxu0 0.0
    %1079 = vmatpush1.msra.mxu0 0.0
    %1080 = vmatprep.subr.mxu0 0.0
    %1081 = vmatpush1.msra.mxu0 0.0
    %1082 = vmatprep.subr.mxu0 0.0
    %1083 = vmatpush1.msra.mxu0 0.0
    %1084 = vmatprep.subr.mxu0 0.0
    %1085 = vmatpush1.msra.mxu0 0.0
    %1086 = vmatprep.subr.mxu0 0.0
    %1087 = vmatpush1.msra.mxu0 0.0
    %1088 = vmatprep.subr.mxu0 0.0
    %1089 = vmatpush1.msra.mxu0 0.0
    %1090 = vmatprep.subr.mxu0 0.0
    %1091 = vmatpush1.msra.mxu0 0.0
    %1092 = vmatprep.subr.mxu0 0.0
    %1093 = vmatpush1.msra.mxu0 0.0
    %1094 = vmatprep.subr.mxu0 0.0
    %1095 = vmatpush1.msra.mxu0 0.0
    %1096 = vmatprep.subr.mxu0 0.0
    %1097 = vmatpush1.msra.mxu0 0.0
    %1098 = vmatprep.subr.mxu0 0.0
    %1099 = vmatpush1.msra.mxu0 0.0
    %1100 = vmatprep.subr.mxu0 0.0
    %1101 = vmatpush1.msra.mxu0 0.0
    %1102 = vmatprep.mubr.f32.mxu0 0.0
    %v1103 = vand.u32 %v48, 4294901760
    %1104 = vmatmul.mubr.f32.gmra.mrb[0].mxu0 %v1103
    %v1105 = vpop.f32.mrb[0].mxu0
    %v1106 = vadd.f32 %v943, %v1105
    %v1107 = vpop.f32.mrb[0].mxu0
    %1108 = vmatprep.mubr.f32.mxu0 0.0
    %v1109 = vand.u32 %v51, 4294901760
    %1110 = vmatmul.mubr.f32.gmra.mrb[0].mxu0 %v1109
    %v1111 = vpop.f32.mrb[0].mxu0
    %v1112 = vadd.f32 %v949, %v1111
    %v1113 = vpop.f32.mrb[0].mxu0
    %1114 = vmatprep.mubr.f32.mxu0 0.0
    %v1115 = vand.u32 %v54, 4294901760
    %1116 = vmatmul.mubr.f32.gmra.mrb[0].mxu0 %v1115
    %v1117 = vpop.f32.mrb[0].mxu0
    %v1118 = vadd.f32 %v955, %v1117
    %v1119 = vpop.f32.mrb[0].mxu0
    %1120 = vmatprep.mubr.f32.mxu0 0.0
    %v1121 = vand.u32 %v57, 4294901760
    %1122 = vmatmul.mubr.f32.gmra.mrb[0].mxu0 %v1121
    %v1123 = vpop.f32.mrb[0].mxu0
    %v1124 = vadd.f32 %v961, %v1123
    %v1125 = vpop.f32.mrb[0].mxu0
    %1126 = vmatprep.mubr.f32.mxu0 0.0
    %v1127 = vand.u32 %v60, 4294901760
    %1128 = vmatmul.mubr.f32.gmra.mrb[0].mxu0 %v1127
    %v1129 = vpop.f32.mrb[0].mxu0
    %v1130 = vadd.f32 %v967, %v1129
    %v1131 = vpop.f32.mrb[0].mxu0
    %1132 = vmatprep.mubr.f32.mxu0 0.0
    %v1133 = vand.u32 %v63, 4294901760
    %1134 = vmatmul.mubr.f32.gmra.mrb[0].mxu0 %v1133
    %v1135 = vpop.f32.mrb[0].mxu0
    %v1136 = vadd.f32 %v973, %v1135
    %v1137 = vpop.f32.mrb[0].mxu0
    %1138 = vmatprep.mubr.f32.mxu0 0.0
    %v1139 = vand.u32 %v66, 4294901760
    %1140 = vmatmul.mubr.f32.gmra.mrb[0].mxu0 %v1139
    %v1141 = vpop.f32.mrb[0].mxu0
    %v1142 = vadd.f32 %v979, %v1141
    %v1143 = vpop.f32.mrb[0].mxu0
    %1144 = vmatprep.mubr.f32.mxu0 0.0
    %v1145 = vand.u32 %v69, 4294901760
    %1146 = vmatmul.mubr.f32.gmra.mrb[0].mxu0 %v1145
    %v1147 = vpop.f32.mrb[0].mxu0
    %v1148 = vadd.f32 %v985, %v1147
    %v1149 = vpop.f32.mrb[0].mxu0
    %1150 = vmatprep.mubr.f32.mxu0 0.0
    %v1151 = vand.u32 %v72, 4294901760
    %1152 = vmatmul.mubr.f32.gmra.mrb[0].mxu0 %v1151
    %v1153 = vpop.f32.mrb[0].mxu0
    %v1154 = vadd.f32 %v991, %v1153
    %v1155 = vpop.f32.mrb[0].mxu0
    %1156 = vmatprep.mubr.f32.mxu0 0.0
    %v1157 = vand.u32 %v75, 4294901760
    %1158 = vmatmul.mubr.f32.gmra.mrb[0].mxu0 %v1157
    %v1159 = vpop.f32.mrb[0].mxu0
    %v1160 = vadd.f32 %v997, %v1159
    %v1161 = vpop.f32.mrb[0].mxu0
    %1162 = vmatprep.mubr.f32.mxu0 0.0
    %v1163 = vand.u32 %v78, 4294901760
    %1164 = vmatmul.mubr.f32.gmra.mrb[0].mxu0 %v1163
    %v1165 = vpop.f32.mrb[0].mxu0
    %v1166 = vadd.f32 %v1003, %v1165
    %v1167 = vpop.f32.mrb[0].mxu0
    %1168 = vmatprep.mubr.f32.mxu0 0.0
    %v1169 = vand.u32 %v81, 4294901760
    %1170 = vmatmul.mubr.f32.gmra.mrb[0].mxu0 %v1169
    %v1171 = vpop.f32.mrb[0].mxu0
    %v1172 = vadd.f32 %v1009, %v1171
    %v1173 = vpop.f32.mrb[0].mxu0
    %1174 = vmatprep.mubr.f32.mxu0 0.0
    %v1175 = vand.u32 %v84, 4294901760
    %1176 = vmatmul.mubr.f32.gmra.mrb[0].mxu0 %v1175
    %v1177 = vpop.f32.mrb[0].mxu0
    %v1178 = vadd.f32 %v1015, %v1177
    %v1179 = vpop.f32.mrb[0].mxu0
    %1180 = vmatprep.mubr.f32.mxu0 0.0
    %v1181 = vand.u32 %v87, 4294901760
    %1182 = vmatmul.mubr.f32.gmra.mrb[0].mxu0 %v1181
    %v1183 = vpop.f32.mrb[0].mxu0
    %v1184 = vadd.f32 %v1021, %v1183
    %v1185 = vpop.f32.mrb[0].mxu0
    %1186 = vmatprep.mubr.f32.mxu0 0.0
    %v1187 = vand.u32 %v90, 4294901760
    %1188 = vmatmul.mubr.f32.gmra.mrb[0].mxu0 %v1187
    %v1189 = vpop.f32.mrb[0].mxu0
    %v1190 = vadd.f32 %v1027, %v1189
    %v1191 = vpop.f32.mrb[0].mxu0
    %1192 = vmatprep.mubr.f32.mxu0 0.0
    %v1193 = vand.u32 %v93, 4294901760
    %1194 = vmatmul.mubr.f32.gmra.mrb[0].mxu0 %v1193
    %v1195 = vpop.f32.mrb[0].mxu0
    %v1196 = vadd.f32 %v1033, %v1195
    %v1197 = vpop.f32.mrb[0].mxu0
    %1198 = vdwg.mxu0
    %v1199 = vld [vmem:[#allocation2] sm:$0xff]
    %v1200 = vld [vmem:[#allocation2 + $0x8] sm:$0xff]
    %v1201 = vld [vmem:[#allocation2 + $0x10] sm:$0xff]
    %v1202 = vld [vmem:[#allocation2 + $0x18] sm:$0xff]
    %v1203 = vld [vmem:[#allocation2 + $0x20] sm:$0xff]
    %v1204 = vld [vmem:[#allocation2 + $0x28] sm:$0xff]
    %v1205 = vld [vmem:[#allocation2 + $0x30] sm:$0xff]
    %v1206 = vld [vmem:[#allocation2 + $0x38] sm:$0xff]
    %v1207 = vld [vmem:[#allocation2 + $0x40] sm:$0xff]
    %v1208 = vld [vmem:[#allocation2 + $0x48] sm:$0xff]
    %v1209 = vld [vmem:[#allocation2 + $0x50] sm:$0xff]
    %v1210 = vld [vmem:[#allocation2 + $0x58] sm:$0xff]
    %v1211 = vld [vmem:[#allocation2 + $0x60] sm:$0xff]
    %v1212 = vld [vmem:[#allocation2 + $0x68] sm:$0xff]
    %v1213 = vld [vmem:[#allocation2 + $0x70] sm:$0xff]
    %v1214 = vld [vmem:[#allocation2 + $0x78] sm:$0xff]
    %v1215 = vld [vmem:[#allocation2 + $0x80] sm:$0xff]
    %v1216 = vld [vmem:[#allocation2 + $0x88] sm:$0xff]
    %v1217 = vld [vmem:[#allocation2 + $0x90] sm:$0xff]
    %v1218 = vld [vmem:[#allocation2 + $0x98] sm:$0xff]
    %v1219 = vld [vmem:[#allocation2 + $0xa0] sm:$0xff]
    %v1220 = vld [vmem:[#allocation2 + $0xa8] sm:$0xff]
    %v1221 = vld [vmem:[#allocation2 + $0xb0] sm:$0xff]
    %v1222 = vld [vmem:[#allocation2 + $0xb8] sm:$0xff]
    %v1223 = vld [vmem:[#allocation2 + $0xc0] sm:$0xff]
    %v1224 = vld [vmem:[#allocation2 + $0xc8] sm:$0xff]
    %v1225 = vld [vmem:[#allocation2 + $0xd0] sm:$0xff]
    %v1226 = vld [vmem:[#allocation2 + $0xd8] sm:$0xff]
    %v1227 = vld [vmem:[#allocation2 + $0xe0] sm:$0xff]
    %v1228 = vld [vmem:[#allocation2 + $0xe8] sm:$0xff]
    %v1229 = vld [vmem:[#allocation2 + $0xf0] sm:$0xff]
    %v1230 = vld [vmem:[#allocation2 + $0xf8] sm:$0xff]
    %1231 = vmatprep.subr.mxu0 0.0
    %v1232 = vand.u32 %v1106, 4294901760
    %1233 = vmatpush1.msra.mxu0 %v1232
    %1234 = vmatprep.subr.mxu0 0.0
    %v1235 = vand.u32 %v1112, 4294901760
    %1236 = vmatpush1.msra.mxu0 %v1235
    %1237 = vmatprep.subr.mxu0 0.0
    %v1238 = vand.u32 %v1118, 4294901760
    %1239 = vmatpush1.msra.mxu0 %v1238
    %1240 = vmatprep.subr.mxu0 0.0
    %v1241 = vand.u32 %v1124, 4294901760
    %1242 = vmatpush1.msra.mxu0 %v1241
    %1243 = vmatprep.subr.mxu0 0.0
    %v1244 = vand.u32 %v1130, 4294901760
    %1245 = vmatpush1.msra.mxu0 %v1244
    %1246 = vmatprep.subr.mxu0 0.0
    %v1247 = vand.u32 %v1136, 4294901760
    %1248 = vmatpush1.msra.mxu0 %v1247
    %1249 = vmatprep.subr.mxu0 0.0
    %v1250 = vand.u32 %v1142, 4294901760
    %1251 = vmatpush1.msra.mxu0 %v1250
    %1252 = vmatprep.subr.mxu0 0.0
    %v1253 = vand.u32 %v1148, 4294901760
    %1254 = vmatpush1.msra.mxu0 %v1253
    %1255 = vmatprep.subr.mxu0 0.0
    %v1256 = vand.u32 %v1154, 4294901760
    %1257 = vmatpush1.msra.mxu0 %v1256
    %1258 = vmatprep.subr.mxu0 0.0
    %v1259 = vand.u32 %v1160, 4294901760
    %1260 = vmatpush1.msra.mxu0 %v1259
    %1261 = vmatprep.subr.mxu0 0.0
    %v1262 = vand.u32 %v1166, 4294901760
    %1263 = vmatpush1.msra.mxu0 %v1262
    %1264 = vmatprep.subr.mxu0 0.0
    %v1265 = vand.u32 %v1172, 4294901760
    %1266 = vmatpush1.msra.mxu0 %v1265
    %1267 = vmatprep.subr.mxu0 0.0
    %v1268 = vand.u32 %v1178, 4294901760
    %1269 = vmatpush1.msra.mxu0 %v1268
    %1270 = vmatprep.subr.mxu0 0.0
    %v1271 = vand.u32 %v1184, 4294901760
    %1272 = vmatpush1.msra.mxu0 %v1271
    %1273 = vmatprep.subr.mxu0 0.0
    %v1274 = vand.u32 %v1190, 4294901760
    %1275 = vmatpush1.msra.mxu0 %v1274
    %1276 = vmatprep.subr.mxu0 0.0
    %v1277 = vand.u32 %v1196, 4294901760
    %1278 = vmatpush1.msra.mxu0 %v1277
    %1279 = vmatprep.subr.mxu0 0.0
    %1280 = vmatpush1.msra.mxu0 0.0
    %1281 = vmatprep.subr.mxu0 0.0
    %1282 = vmatpush1.msra.mxu0 0.0
    %1283 = vmatprep.subr.mxu0 0.0
    %1284 = vmatpush1.msra.mxu0 0.0
    %1285 = vmatprep.subr.mxu0 0.0
    %1286 = vmatpush1.msra.mxu0 0.0
    %1287 = vmatprep.subr.mxu0 0.0
    %1288 = vmatpush1.msra.mxu0 0.0
    %1289 = vmatprep.subr.mxu0 0.0
    %1290 = vmatpush1.msra.mxu0 0.0
    %1291 = vmatprep.subr.mxu0 0.0
    %1292 = vmatpush1.msra.mxu0 0.0
    %1293 = vmatprep.subr.mxu0 0.0
    %1294 = vmatpush1.msra.mxu0 0.0
    %1295 = vmatprep.subr.mxu0 0.0
    %1296 = vmatpush1.msra.mxu0 0.0
    %1297 = vmatprep.subr.mxu0 0.0
    %1298 = vmatpush1.msra.mxu0 0.0
    %1299 = vmatprep.subr.mxu0 0.0
    %1300 = vmatpush1.msra.mxu0 0.0
    %1301 = vmatprep.subr.mxu0 0.0
    %1302 = vmatpush1.msra.mxu0 0.0
    %1303 = vmatprep.subr.mxu0 0.0
    %1304 = vmatpush1.msra.mxu0 0.0
    %1305 = vmatprep.subr.mxu0 0.0
    %1306 = vmatpush1.msra.mxu0 0.0
    %1307 = vmatprep.subr.mxu0 0.0
    %1308 = vmatpush1.msra.mxu0 0.0
    %1309 = vmatprep.subr.mxu0 0.0
    %1310 = vmatpush1.msra.mxu0 0.0
    %1311 = vmatprep.mubr.f32.mxu0 0.0
    %v1312 = vand.u32 %v1199, 4294901760
    %v1313 = vsub.f32 %v1199, %v1312
    %v1314 = vand.u32 %v1313, 4294901760
    %v1315 = vsub.f32 %v1313, %v1314
    %v1316 = vand.u32 %v1315, 4294901760
    %1317 = vmatmul.mubr.f32.gmra.mrb[0].mxu0 %v1316
    %v1318 = vpop.f32.mrb[0].mxu0
    %v1319 = vadd.f32 0.0, %v1318
    %v1320 = vpop.f32.mrb[0].mxu0
    %1321 = vmatprep.mubr.f32.mxu0 0.0
    %v1322 = vand.u32 %v1200, 4294901760
    %v1323 = vsub.f32 %v1200, %v1322
    %v1324 = vand.u32 %v1323, 4294901760
    %v1325 = vsub.f32 %v1323, %v1324
    %v1326 = vand.u32 %v1325, 4294901760
    %1327 = vmatmul.mubr.f32.gmra.mrb[0].mxu0 %v1326
    %v1328 = vpop.f32.mrb[0].mxu0
    %v1329 = vadd.f32 0.0, %v1328
    %v1330 = vpop.f32.mrb[0].mxu0
    %1331 = vmatprep.mubr.f32.mxu0 0.0
    %v1332 = vand.u32 %v1201, 4294901760
    %v1333 = vsub.f32 %v1201, %v1332
    %v1334 = vand.u32 %v1333, 4294901760
    %v1335 = vsub.f32 %v1333, %v1334
    %v1336 = vand.u32 %v1335, 4294901760
    %1337 = vmatmul.mubr.f32.gmra.mrb[0].mxu0 %v1336
    %v1338 = vpop.f32.mrb[0].mxu0
    %v1339 = vadd.f32 0.0, %v1338
    %v1340 = vpop.f32.mrb[0].mxu0
    %1341 = vmatprep.mubr.f32.mxu0 0.0
    %v1342 = vand.u32 %v1202, 4294901760
    %v1343 = vsub.f32 %v1202, %v1342
    %v1344 = vand.u32 %v1343, 4294901760
    %v1345 = vsub.f32 %v1343, %v1344
    %v1346 = vand.u32 %v1345, 4294901760
    %1347 = vmatmul.mubr.f32.gmra.mrb[0].mxu0 %v1346
    %v1348 = vpop.f32.mrb[0].mxu0
    %v1349 = vadd.f32 0.0, %v1348
    %v1350 = vpop.f32.mrb[0].mxu0
    %1351 = vmatprep.mubr.f32.mxu0 0.0
    %v1352 = vand.u32 %v1203, 4294901760
    %v1353 = vsub.f32 %v1203, %v1352
    %v1354 = vand.u32 %v1353, 4294901760
    %v1355 = vsub.f32 %v1353, %v1354
    %v1356 = vand.u32 %v1355, 4294901760
    %1357 = vmatmul.mubr.f32.gmra.mrb[0].mxu0 %v1356
    %v1358 = vpop.f32.mrb[0].mxu0
    %v1359 = vadd.f32 0.0, %v1358
    %v1360 = vpop.f32.mrb[0].mxu0
    %1361 = vmatprep.mubr.f32.mxu0 0.0
    %v1362 = vand.u32 %v1204, 4294901760
    %v1363 = vsub.f32 %v1204, %v1362
    %v1364 = vand.u32 %v1363, 4294901760
    %v1365 = vsub.f32 %v1363, %v1364
    %v1366 = vand.u32 %v1365, 4294901760
    %1367 = vmatmul.mubr.f32.gmra.mrb[0].mxu0 %v1366
    %v1368 = vpop.f32.mrb[0].mxu0
    %v1369 = vadd.f32 0.0, %v1368
    %v1370 = vpop.f32.mrb[0].mxu0
    %1371 = vmatprep.mubr.f32.mxu0 0.0
    %v1372 = vand.u32 %v1205, 4294901760
    %v1373 = vsub.f32 %v1205, %v1372
    %v1374 = vand.u32 %v1373, 4294901760
    %v1375 = vsub.f32 %v1373, %v1374
    %v1376 = vand.u32 %v1375, 4294901760
    %1377 = vmatmul.mubr.f32.gmra.mrb[0].mxu0 %v1376
    %v1378 = vpop.f32.mrb[0].mxu0
    %v1379 = vadd.f32 0.0, %v1378
    %v1380 = vpop.f32.mrb[0].mxu0
    %1381 = vmatprep.mubr.f32.mxu0 0.0
    %v1382 = vand.u32 %v1206, 4294901760
    %v1383 = vsub.f32 %v1206, %v1382
    %v1384 = vand.u32 %v1383, 4294901760
    %v1385 = vsub.f32 %v1383, %v1384
    %v1386 = vand.u32 %v1385, 4294901760
    %1387 = vmatmul.mubr.f32.gmra.mrb[0].mxu0 %v1386
    %v1388 = vpop.f32.mrb[0].mxu0
    %v1389 = vadd.f32 0.0, %v1388
    %v1390 = vpop.f32.mrb[0].mxu0
    %1391 = vmatprep.mubr.f32.mxu0 0.0
    %v1392 = vand.u32 %v1207, 4294901760
    %v1393 = vsub.f32 %v1207, %v1392
    %v1394 = vand.u32 %v1393, 4294901760
    %v1395 = vsub.f32 %v1393, %v1394
    %v1396 = vand.u32 %v1395, 4294901760
    %1397 = vmatmul.mubr.f32.gmra.mrb[0].mxu0 %v1396
    %v1398 = vpop.f32.mrb[0].mxu0
    %v1399 = vadd.f32 0.0, %v1398
    %v1400 = vpop.f32.mrb[0].mxu0
    %1401 = vmatprep.mubr.f32.mxu0 0.0
    %v1402 = vand.u32 %v1208, 4294901760
    %v1403 = vsub.f32 %v1208, %v1402
    %v1404 = vand.u32 %v1403, 4294901760
    %v1405 = vsub.f32 %v1403, %v1404
    %v1406 = vand.u32 %v1405, 4294901760
    %1407 = vmatmul.mubr.f32.gmra.mrb[0].mxu0 %v1406
    %v1408 = vpop.f32.mrb[0].mxu0
    %v1409 = vadd.f32 0.0, %v1408
    %v1410 = vpop.f32.mrb[0].mxu0
    %1411 = vmatprep.mubr.f32.mxu0 0.0
    %v1412 = vand.u32 %v1209, 4294901760
    %v1413 = vsub.f32 %v1209, %v1412
    %v1414 = vand.u32 %v1413, 4294901760
    %v1415 = vsub.f32 %v1413, %v1414
    %v1416 = vand.u32 %v1415, 4294901760
    %1417 = vmatmul.mubr.f32.gmra.mrb[0].mxu0 %v1416
    %v1418 = vpop.f32.mrb[0].mxu0
    %v1419 = vadd.f32 0.0, %v1418
    %v1420 = vpop.f32.mrb[0].mxu0
    %1421 = vmatprep.mubr.f32.mxu0 0.0
    %v1422 = vand.u32 %v1210, 4294901760
    %v1423 = vsub.f32 %v1210, %v1422
    %v1424 = vand.u32 %v1423, 4294901760
    %v1425 = vsub.f32 %v1423, %v1424
    %v1426 = vand.u32 %v1425, 4294901760
    %1427 = vmatmul.mubr.f32.gmra.mrb[0].mxu0 %v1426
    %v1428 = vpop.f32.mrb[0].mxu0
    %v1429 = vadd.f32 0.0, %v1428
    %v1430 = vpop.f32.mrb[0].mxu0
    %1431 = vmatprep.mubr.f32.mxu0 0.0
    %v1432 = vand.u32 %v1211, 4294901760
    %v1433 = vsub.f32 %v1211, %v1432
    %v1434 = vand.u32 %v1433, 4294901760
    %v1435 = vsub.f32 %v1433, %v1434
    %v1436 = vand.u32 %v1435, 4294901760
    %1437 = vmatmul.mubr.f32.gmra.mrb[0].mxu0 %v1436
    %v1438 = vpop.f32.mrb[0].mxu0
    %v1439 = vadd.f32 0.0, %v1438
    %v1440 = vpop.f32.mrb[0].mxu0
    %1441 = vmatprep.mubr.f32.mxu0 0.0
    %v1442 = vand.u32 %v1212, 4294901760
    %v1443 = vsub.f32 %v1212, %v1442
    %v1444 = vand.u32 %v1443, 4294901760
    %v1445 = vsub.f32 %v1443, %v1444
    %v1446 = vand.u32 %v1445, 4294901760
    %1447 = vmatmul.mubr.f32.gmra.mrb[0].mxu0 %v1446
    %v1448 = vpop.f32.mrb[0].mxu0
    %v1449 = vadd.f32 0.0, %v1448
    %v1450 = vpop.f32.mrb[0].mxu0
    %1451 = vmatprep.mubr.f32.mxu0 0.0
    %v1452 = vand.u32 %v1213, 4294901760
    %v1453 = vsub.f32 %v1213, %v1452
    %v1454 = vand.u32 %v1453, 4294901760
    %v1455 = vsub.f32 %v1453, %v1454
    %v1456 = vand.u32 %v1455, 4294901760
    %1457 = vmatmul.mubr.f32.gmra.mrb[0].mxu0 %v1456
    %v1458 = vpop.f32.mrb[0].mxu0
    %v1459 = vadd.f32 0.0, %v1458
    %v1460 = vpop.f32.mrb[0].mxu0
    %1461 = vmatprep.mubr.f32.mxu0 0.0
    %v1462 = vand.u32 %v1214, 4294901760
    %v1463 = vsub.f32 %v1214, %v1462
    %v1464 = vand.u32 %v1463, 4294901760
    %v1465 = vsub.f32 %v1463, %v1464
    %v1466 = vand.u32 %v1465, 4294901760
    %1467 = vmatmul.mubr.f32.gmra.mrb[0].mxu0 %v1466
    %v1468 = vpop.f32.mrb[0].mxu0
    %v1469 = vadd.f32 0.0, %v1468
    %v1470 = vpop.f32.mrb[0].mxu0
    %1471 = vmatprep.mubr.f32.mxu0 0.0
    %v1472 = vand.u32 %v1215, 4294901760
    %v1473 = vsub.f32 %v1215, %v1472
    %v1474 = vand.u32 %v1473, 4294901760
    %v1475 = vsub.f32 %v1473, %v1474
    %v1476 = vand.u32 %v1475, 4294901760
    %1477 = vmatmul.mubr.f32.gmra.mrb[0].mxu0 %v1476
    %v1478 = vpop.f32.mrb[0].mxu0
    %v1479 = vadd.f32 0.0, %v1478
    %v1480 = vpop.f32.mrb[0].mxu0
    %1481 = vmatprep.mubr.f32.mxu0 0.0
    %v1482 = vand.u32 %v1216, 4294901760
    %v1483 = vsub.f32 %v1216, %v1482
    %v1484 = vand.u32 %v1483, 4294901760
    %v1485 = vsub.f32 %v1483, %v1484
    %v1486 = vand.u32 %v1485, 4294901760
    %1487 = vmatmul.mubr.f32.gmra.mrb[0].mxu0 %v1486
    %v1488 = vpop.f32.mrb[0].mxu0
    %v1489 = vadd.f32 0.0, %v1488
    %v1490 = vpop.f32.mrb[0].mxu0
    %1491 = vmatprep.mubr.f32.mxu0 0.0
    %v1492 = vand.u32 %v1217, 4294901760
    %v1493 = vsub.f32 %v1217, %v1492
    %v1494 = vand.u32 %v1493, 4294901760
    %v1495 = vsub.f32 %v1493, %v1494
    %v1496 = vand.u32 %v1495, 4294901760
    %1497 = vmatmul.mubr.f32.gmra.mrb[0].mxu0 %v1496
    %v1498 = vpop.f32.mrb[0].mxu0
    %v1499 = vadd.f32 0.0, %v1498
    %v1500 = vpop.f32.mrb[0].mxu0
    %1501 = vmatprep.mubr.f32.mxu0 0.0
    %v1502 = vand.u32 %v1218, 4294901760
    %v1503 = vsub.f32 %v1218, %v1502
    %v1504 = vand.u32 %v1503, 4294901760
    %v1505 = vsub.f32 %v1503, %v1504
    %v1506 = vand.u32 %v1505, 4294901760
    %1507 = vmatmul.mubr.f32.gmra.mrb[0].mxu0 %v1506
    %v1508 = vpop.f32.mrb[0].mxu0
    %v1509 = vadd.f32 0.0, %v1508
    %v1510 = vpop.f32.mrb[0].mxu0
    %1511 = vmatprep.mubr.f32.mxu0 0.0
    %v1512 = vand.u32 %v1219, 4294901760
    %v1513 = vsub.f32 %v1219, %v1512
    %v1514 = vand.u32 %v1513, 4294901760
    %v1515 = vsub.f32 %v1513, %v1514
    %v1516 = vand.u32 %v1515, 4294901760
    %1517 = vmatmul.mubr.f32.gmra.mrb[0].mxu0 %v1516
    %v1518 = vpop.f32.mrb[0].mxu0
    %v1519 = vadd.f32 0.0, %v1518
    %v1520 = vpop.f32.mrb[0].mxu0
    %1521 = vmatprep.mubr.f32.mxu0 0.0
    %v1522 = vand.u32 %v1220, 4294901760
    %v1523 = vsub.f32 %v1220, %v1522
    %v1524 = vand.u32 %v1523, 4294901760
    %v1525 = vsub.f32 %v1523, %v1524
    %v1526 = vand.u32 %v1525, 4294901760
    %1527 = vmatmul.mubr.f32.gmra.mrb[0].mxu0 %v1526
    %v1528 = vpop.f32.mrb[0].mxu0
    %v1529 = vadd.f32 0.0, %v1528
    %v1530 = vpop.f32.mrb[0].mxu0
    %1531 = vmatprep.mubr.f32.mxu0 0.0
    %v1532 = vand.u32 %v1221, 4294901760
    %v1533 = vsub.f32 %v1221, %v1532
    %v1534 = vand.u32 %v1533, 4294901760
    %v1535 = vsub.f32 %v1533, %v1534
    %v1536 = vand.u32 %v1535, 4294901760
    %1537 = vmatmul.mubr.f32.gmra.mrb[0].mxu0 %v1536
    %v1538 = vpop.f32.mrb[0].mxu0
    %v1539 = vadd.f32 0.0, %v1538
    %v1540 = vpop.f32.mrb[0].mxu0
    %1541 = vmatprep.mubr.f32.mxu0 0.0
    %v1542 = vand.u32 %v1222, 4294901760
    %v1543 = vsub.f32 %v1222, %v1542
    %v1544 = vand.u32 %v1543, 4294901760
    %v1545 = vsub.f32 %v1543, %v1544
    %v1546 = vand.u32 %v1545, 4294901760
    %1547 = vmatmul.mubr.f32.gmra.mrb[0].mxu0 %v1546
    %v1548 = vpop.f32.mrb[0].mxu0
    %v1549 = vadd.f32 0.0, %v1548
    %v1550 = vpop.f32.mrb[0].mxu0
    %1551 = vmatprep.mubr.f32.mxu0 0.0
    %v1552 = vand.u32 %v1223, 4294901760
    %v1553 = vsub.f32 %v1223, %v1552
    %v1554 = vand.u32 %v1553, 4294901760
    %v1555 = vsub.f32 %v1553, %v1554
    %v1556 = vand.u32 %v1555, 4294901760
    %1557 = vmatmul.mubr.f32.gmra.mrb[0].mxu0 %v1556
    %v1558 = vpop.f32.mrb[0].mxu0
    %v1559 = vadd.f32 0.0, %v1558
    %v1560 = vpop.f32.mrb[0].mxu0
    %1561 = vmatprep.mubr.f32.mxu0 0.0
    %v1562 = vand.u32 %v1224, 4294901760
    %v1563 = vsub.f32 %v1224, %v1562
    %v1564 = vand.u32 %v1563, 4294901760
    %v1565 = vsub.f32 %v1563, %v1564
    %v1566 = vand.u32 %v1565, 4294901760
    %1567 = vmatmul.mubr.f32.gmra.mrb[0].mxu0 %v1566
    %v1568 = vpop.f32.mrb[0].mxu0
    %v1569 = vadd.f32 0.0, %v1568
    %v1570 = vpop.f32.mrb[0].mxu0
    %1571 = vmatprep.mubr.f32.mxu0 0.0
    %v1572 = vand.u32 %v1225, 4294901760
    %v1573 = vsub.f32 %v1225, %v1572
    %v1574 = vand.u32 %v1573, 4294901760
    %v1575 = vsub.f32 %v1573, %v1574
    %v1576 = vand.u32 %v1575, 4294901760
    %1577 = vmatmul.mubr.f32.gmra.mrb[0].mxu0 %v1576
    %v1578 = vpop.f32.mrb[0].mxu0
    %v1579 = vadd.f32 0.0, %v1578
    %v1580 = vpop.f32.mrb[0].mxu0
    %1581 = vmatprep.mubr.f32.mxu0 0.0
    %v1582 = vand.u32 %v1226, 4294901760
    %v1583 = vsub.f32 %v1226, %v1582
    %v1584 = vand.u32 %v1583, 4294901760
    %v1585 = vsub.f32 %v1583, %v1584
    %v1586 = vand.u32 %v1585, 4294901760
    %1587 = vmatmul.mubr.f32.gmra.mrb[0].mxu0 %v1586
    %v1588 = vpop.f32.mrb[0].mxu0
    %v1589 = vadd.f32 0.0, %v1588
    %v1590 = vpop.f32.mrb[0].mxu0
    %1591 = vmatprep.mubr.f32.mxu0 0.0
    %v1592 = vand.u32 %v1227, 4294901760
    %v1593 = vsub.f32 %v1227, %v1592
    %v1594 = vand.u32 %v1593, 4294901760
    %v1595 = vsub.f32 %v1593, %v1594
    %v1596 = vand.u32 %v1595, 4294901760
    %1597 = vmatmul.mubr.f32.gmra.mrb[0].mxu0 %v1596
    %v1598 = vpop.f32.mrb[0].mxu0
    %v1599 = vadd.f32 0.0, %v1598
    %v1600 = vpop.f32.mrb[0].mxu0
    %1601 = vmatprep.mubr.f32.mxu0 0.0
    %v1602 = vand.u32 %v1228, 4294901760
    %v1603 = vsub.f32 %v1228, %v1602
    %v1604 = vand.u32 %v1603, 4294901760
    %v1605 = vsub.f32 %v1603, %v1604
    %v1606 = vand.u32 %v1605, 4294901760
    %1607 = vmatmul.mubr.f32.gmra.mrb[0].mxu0 %v1606
    %v1608 = vpop.f32.mrb[0].mxu0
    %v1609 = vadd.f32 0.0, %v1608
    %v1610 = vpop.f32.mrb[0].mxu0
    %1611 = vmatprep.mubr.f32.mxu0 0.0
    %v1612 = vand.u32 %v1229, 4294901760
    %v1613 = vsub.f32 %v1229, %v1612
    %v1614 = vand.u32 %v1613, 4294901760
    %v1615 = vsub.f32 %v1613, %v1614
    %v1616 = vand.u32 %v1615, 4294901760
    %1617 = vmatmul.mubr.f32.gmra.mrb[0].mxu0 %v1616
    %v1618 = vpop.f32.mrb[0].mxu0
    %v1619 = vadd.f32 0.0, %v1618
    %v1620 = vpop.f32.mrb[0].mxu0
    %1621 = vmatprep.mubr.f32.mxu0 0.0
    %v1622 = vand.u32 %v1230, 4294901760
    %v1623 = vsub.f32 %v1230, %v1622
    %v1624 = vand.u32 %v1623, 4294901760
    %v1625 = vsub.f32 %v1623, %v1624
    %v1626 = vand.u32 %v1625, 4294901760
    %1627 = vmatmul.mubr.f32.gmra.mrb[0].mxu0 %v1626
    %v1628 = vpop.f32.mrb[0].mxu0
    %v1629 = vadd.f32 0.0, %v1628
    %v1630 = vpop.f32.mrb[0].mxu0
    %1631 = vdwg.mxu0
    %1632 = vmatprep.subr.mxu0 0.0
    %v1633 = vand.u32 %v1106, 4294901760
    %v1634 = vsub.f32 %v1106, %v1633
    %v1635 = vand.u32 %v1634, 4294901760
    %v1636 = vsub.f32 %v1634, %v1635
    %v1637 = vand.u32 %v1636, 4294901760
    %1638 = vmatpush1.msra.mxu0 %v1637
    %1639 = vmatprep.subr.mxu0 0.0
    %v1640 = vand.u32 %v1112, 4294901760
    %v1641 = vsub.f32 %v1112, %v1640
    %v1642 = vand.u32 %v1641, 4294901760
    %v1643 = vsub.f32 %v1641, %v1642
    %v1644 = vand.u32 %v1643, 4294901760
    %1645 = vmatpush1.msra.mxu0 %v1644
    %1646 = vmatprep.subr.mxu0 0.0
    %v1647 = vand.u32 %v1118, 4294901760
    %v1648 = vsub.f32 %v1118, %v1647
    %v1649 = vand.u32 %v1648, 4294901760
    %v1650 = vsub.f32 %v1648, %v1649
    %v1651 = vand.u32 %v1650, 4294901760
    %1652 = vmatpush1.msra.mxu0 %v1651
    %1653 = vmatprep.subr.mxu0 0.0
    %v1654 = vand.u32 %v1124, 4294901760
    %v1655 = vsub.f32 %v1124, %v1654
    %v1656 = vand.u32 %v1655, 4294901760
    %v1657 = vsub.f32 %v1655, %v1656
    %v1658 = vand.u32 %v1657, 4294901760
    %1659 = vmatpush1.msra.mxu0 %v1658
    %1660 = vmatprep.subr.mxu0 0.0
    %v1661 = vand.u32 %v1130, 4294901760
    %v1662 = vsub.f32 %v1130, %v1661
    %v1663 = vand.u32 %v1662, 4294901760
    %v1664 = vsub.f32 %v1662, %v1663
    %v1665 = vand.u32 %v1664, 4294901760
    %1666 = vmatpush1.msra.mxu0 %v1665
    %1667 = vmatprep.subr.mxu0 0.0
    %v1668 = vand.u32 %v1136, 4294901760
    %v1669 = vsub.f32 %v1136, %v1668
    %v1670 = vand.u32 %v1669, 4294901760
    %v1671 = vsub.f32 %v1669, %v1670
    %v1672 = vand.u32 %v1671, 4294901760
    %1673 = vmatpush1.msra.mxu0 %v1672
    %1674 = vmatprep.subr.mxu0 0.0
    %v1675 = vand.u32 %v1142, 4294901760
    %v1676 = vsub.f32 %v1142, %v1675
    %v1677 = vand.u32 %v1676, 4294901760
    %v1678 = vsub.f32 %v1676, %v1677
    %v1679 = vand.u32 %v1678, 4294901760
    %1680 = vmatpush1.msra.mxu0 %v1679
    %1681 = vmatprep.subr.mxu0 0.0
    %v1682 = vand.u32 %v1148, 4294901760
    %v1683 = vsub.f32 %v1148, %v1682
    %v1684 = vand.u32 %v1683, 4294901760
    %v1685 = vsub.f32 %v1683, %v1684
    %v1686 = vand.u32 %v1685, 4294901760
    %1687 = vmatpush1.msra.mxu0 %v1686
    %1688 = vmatprep.subr.mxu0 0.0
    %v1689 = vand.u32 %v1154, 4294901760
    %v1690 = vsub.f32 %v1154, %v1689
    %v1691 = vand.u32 %v1690, 4294901760
    %v1692 = vsub.f32 %v1690, %v1691
    %v1693 = vand.u32 %v1692, 4294901760
    %1694 = vmatpush1.msra.mxu0 %v1693
    %1695 = vmatprep.subr.mxu0 0.0
    %v1696 = vand.u32 %v1160, 4294901760
    %v1697 = vsub.f32 %v1160, %v1696
    %v1698 = vand.u32 %v1697, 4294901760
    %v1699 = vsub.f32 %v1697, %v1698
    %v1700 = vand.u32 %v1699, 4294901760
    %1701 = vmatpush1.msra.mxu0 %v1700
    %1702 = vmatprep.subr.mxu0 0.0
    %v1703 = vand.u32 %v1166, 4294901760
    %v1704 = vsub.f32 %v1166, %v1703
    %v1705 = vand.u32 %v1704, 4294901760
    %v1706 = vsub.f32 %v1704, %v1705
    %v1707 = vand.u32 %v1706, 4294901760
    %1708 = vmatpush1.msra.mxu0 %v1707
    %1709 = vmatprep.subr.mxu0 0.0
    %v1710 = vand.u32 %v1172, 4294901760
    %v1711 = vsub.f32 %v1172, %v1710
    %v1712 = vand.u32 %v1711, 4294901760
    %v1713 = vsub.f32 %v1711, %v1712
    %v1714 = vand.u32 %v1713, 4294901760
    %1715 = vmatpush1.msra.mxu0 %v1714
    %1716 = vmatprep.subr.mxu0 0.0
    %v1717 = vand.u32 %v1178, 4294901760
    %v1718 = vsub.f32 %v1178, %v1717
    %v1719 = vand.u32 %v1718, 4294901760
    %v1720 = vsub.f32 %v1718, %v1719
    %v1721 = vand.u32 %v1720, 4294901760
    %1722 = vmatpush1.msra.mxu0 %v1721
    %1723 = vmatprep.subr.mxu0 0.0
    %v1724 = vand.u32 %v1184, 4294901760
    %v1725 = vsub.f32 %v1184, %v1724
    %v1726 = vand.u32 %v1725, 4294901760
    %v1727 = vsub.f32 %v1725, %v1726
    %v1728 = vand.u32 %v1727, 4294901760
    %1729 = vmatpush1.msra.mxu0 %v1728
    %1730 = vmatprep.subr.mxu0 0.0
    %v1731 = vand.u32 %v1190, 4294901760
    %v1732 = vsub.f32 %v1190, %v1731
    %v1733 = vand.u32 %v1732, 4294901760
    %v1734 = vsub.f32 %v1732, %v1733
    %v1735 = vand.u32 %v1734, 4294901760
    %1736 = vmatpush1.msra.mxu0 %v1735
    %1737 = vmatprep.subr.mxu0 0.0
    %v1738 = vand.u32 %v1196, 4294901760
    %v1739 = vsub.f32 %v1196, %v1738
    %v1740 = vand.u32 %v1739, 4294901760
    %v1741 = vsub.f32 %v1739, %v1740
    %v1742 = vand.u32 %v1741, 4294901760
    %1743 = vmatpush1.msra.mxu0 %v1742
    %1744 = vmatprep.subr.mxu0 0.0
    %1745 = vmatpush1.msra.mxu0 0.0
    %1746 = vmatprep.subr.mxu0 0.0
    %1747 = vmatpush1.msra.mxu0 0.0
    %1748 = vmatprep.subr.mxu0 0.0
    %1749 = vmatpush1.msra.mxu0 0.0
    %1750 = vmatprep.subr.mxu0 0.0
    %1751 = vmatpush1.msra.mxu0 0.0
    %1752 = vmatprep.subr.mxu0 0.0
    %1753 = vmatpush1.msra.mxu0 0.0
    %1754 = vmatprep.subr.mxu0 0.0
    %1755 = vmatpush1.msra.mxu0 0.0
    %1756 = vmatprep.subr.mxu0 0.0
    %1757 = vmatpush1.msra.mxu0 0.0
    %1758 = vmatprep.subr.mxu0 0.0
    %1759 = vmatpush1.msra.mxu0 0.0
    %1760 = vmatprep.subr.mxu0 0.0
    %1761 = vmatpush1.msra.mxu0 0.0
    %1762 = vmatprep.subr.mxu0 0.0
    %1763 = vmatpush1.msra.mxu0 0.0
    %1764 = vmatprep.subr.mxu0 0.0
    %1765 = vmatpush1.msra.mxu0 0.0
    %1766 = vmatprep.subr.mxu0 0.0
    %1767 = vmatpush1.msra.mxu0 0.0
    %1768 = vmatprep.subr.mxu0 0.0
    %1769 = vmatpush1.msra.mxu0 0.0
    %1770 = vmatprep.subr.mxu0 0.0
    %1771 = vmatpush1.msra.mxu0 0.0
    %1772 = vmatprep.subr.mxu0 0.0
    %1773 = vmatpush1.msra.mxu0 0.0
    %1774 = vmatprep.subr.mxu0 0.0
    %1775 = vmatpush1.msra.mxu0 0.0
    %1776 = vmatprep.mubr.f32.mxu0 0.0
    %v1777 = vand.u32 %v1199, 4294901760
    %1778 = vmatmul.mubr.f32.gmra.mrb[0].mxu0 %v1777
    %v1779 = vpop.f32.mrb[0].mxu0
    %v1780 = vadd.f32 %v1319, %v1779
    %v1781 = vpop.f32.mrb[0].mxu0
    %1782 = vmatprep.mubr.f32.mxu0 0.0
    %v1783 = vand.u32 %v1200, 4294901760
    %1784 = vmatmul.mubr.f32.gmra.mrb[0].mxu0 %v1783
    %v1785 = vpop.f32.mrb[0].mxu0
    %v1786 = vadd.f32 %v1329, %v1785
    %v1787 = vpop.f32.mrb[0].mxu0
    %1788 = vmatprep.mubr.f32.mxu0 0.0
    %v1789 = vand.u32 %v1201, 4294901760
    %1790 = vmatmul.mubr.f32.gmra.mrb[0].mxu0 %v1789
    %v1791 = vpop.f32.mrb[0].mxu0
    %v1792 = vadd.f32 %v1339, %v1791
    %v1793 = vpop.f32.mrb[0].mxu0
    %1794 = vmatprep.mubr.f32.mxu0 0.0
    %v1795 = vand.u32 %v1202, 4294901760
    %1796 = vmatmul.mubr.f32.gmra.mrb[0].mxu0 %v1795
    %v1797 = vpop.f32.mrb[0].mxu0
    %v1798 = vadd.f32 %v1349, %v1797
    %v1799 = vpop.f32.mrb[0].mxu0
    %1800 = vmatprep.mubr.f32.mxu0 0.0
    %v1801 = vand.u32 %v1203, 4294901760
    %1802 = vmatmul.mubr.f32.gmra.mrb[0].mxu0 %v1801
    %v1803 = vpop.f32.mrb[0].mxu0
    %v1804 = vadd.f32 %v1359, %v1803
    %v1805 = vpop.f32.mrb[0].mxu0
    %1806 = vmatprep.mubr.f32.mxu0 0.0
    %v1807 = vand.u32 %v1204, 4294901760
    %1808 = vmatmul.mubr.f32.gmra.mrb[0].mxu0 %v1807
    %v1809 = vpop.f32.mrb[0].mxu0
    %v1810 = vadd.f32 %v1369, %v1809
    %v1811 = vpop.f32.mrb[0].mxu0
    %1812 = vmatprep.mubr.f32.mxu0 0.0
    %v1813 = vand.u32 %v1205, 4294901760
    %1814 = vmatmul.mubr.f32.gmra.mrb[0].mxu0 %v1813
    %v1815 = vpop.f32.mrb[0].mxu0
    %v1816 = vadd.f32 %v1379, %v1815
    %v1817 = vpop.f32.mrb[0].mxu0
    %1818 = vmatprep.mubr.f32.mxu0 0.0
    %v1819 = vand.u32 %v1206, 4294901760
    %1820 = vmatmul.mubr.f32.gmra.mrb[0].mxu0 %v1819
    %v1821 = vpop.f32.mrb[0].mxu0
    %v1822 = vadd.f32 %v1389, %v1821
    %v1823 = vpop.f32.mrb[0].mxu0
    %1824 = vmatprep.mubr.f32.mxu0 0.0
    %v1825 = vand.u32 %v1207, 4294901760
    %1826 = vmatmul.mubr.f32.gmra.mrb[0].mxu0 %v1825
    %v1827 = vpop.f32.mrb[0].mxu0
    %v1828 = vadd.f32 %v1399, %v1827
    %v1829 = vpop.f32.mrb[0].mxu0
    %1830 = vmatprep.mubr.f32.mxu0 0.0
    %v1831 = vand.u32 %v1208, 4294901760
    %1832 = vmatmul.mubr.f32.gmra.mrb[0].mxu0 %v1831
    %v1833 = vpop.f32.mrb[0].mxu0
    %v1834 = vadd.f32 %v1409, %v1833
    %v1835 = vpop.f32.mrb[0].mxu0
    %1836 = vmatprep.mubr.f32.mxu0 0.0
    %v1837 = vand.u32 %v1209, 4294901760
    %1838 = vmatmul.mubr.f32.gmra.mrb[0].mxu0 %v1837
    %v1839 = vpop.f32.mrb[0].mxu0
    %v1840 = vadd.f32 %v1419, %v1839
    %v1841 = vpop.f32.mrb[0].mxu0
    %1842 = vmatprep.mubr.f32.mxu0 0.0
    %v1843 = vand.u32 %v1210, 4294901760
    %1844 = vmatmul.mubr.f32.gmra.mrb[0].mxu0 %v1843
    %v1845 = vpop.f32.mrb[0].mxu0
    %v1846 = vadd.f32 %v1429, %v1845
    %v1847 = vpop.f32.mrb[0].mxu0
    %1848 = vmatprep.mubr.f32.mxu0 0.0
    %v1849 = vand.u32 %v1211, 4294901760
    %1850 = vmatmul.mubr.f32.gmra.mrb[0].mxu0 %v1849
    %v1851 = vpop.f32.mrb[0].mxu0
    %v1852 = vadd.f32 %v1439, %v1851
    %v1853 = vpop.f32.mrb[0].mxu0
    %1854 = vmatprep.mubr.f32.mxu0 0.0
    %v1855 = vand.u32 %v1212, 4294901760
    %1856 = vmatmul.mubr.f32.gmra.mrb[0].mxu0 %v1855
    %v1857 = vpop.f32.mrb[0].mxu0
    %v1858 = vadd.f32 %v1449, %v1857
    %v1859 = vpop.f32.mrb[0].mxu0
    %1860 = vmatprep.mubr.f32.mxu0 0.0
    %v1861 = vand.u32 %v1213, 4294901760
    %1862 = vmatmul.mubr.f32.gmra.mrb[0].mxu0 %v1861
    %v1863 = vpop.f32.mrb[0].mxu0
    %v1864 = vadd.f32 %v1459, %v1863
    %v1865 = vpop.f32.mrb[0].mxu0
    %1866 = vmatprep.mubr.f32.mxu0 0.0
    %v1867 = vand.u32 %v1214, 4294901760
    %1868 = vmatmul.mubr.f32.gmra.mrb[0].mxu0 %v1867
    %v1869 = vpop.f32.mrb[0].mxu0
    %v1870 = vadd.f32 %v1469, %v1869
    %v1871 = vpop.f32.mrb[0].mxu0
    %1872 = vmatprep.mubr.f32.mxu0 0.0
    %v1873 = vand.u32 %v1215, 4294901760
    %1874 = vmatmul.mubr.f32.gmra.mrb[0].mxu0 %v1873
    %v1875 = vpop.f32.mrb[0].mxu0
    %v1876 = vadd.f32 %v1479, %v1875
    %v1877 = vpop.f32.mrb[0].mxu0
    %1878 = vmatprep.mubr.f32.mxu0 0.0
    %v1879 = vand.u32 %v1216, 4294901760
    %1880 = vmatmul.mubr.f32.gmra.mrb[0].mxu0 %v1879
    %v1881 = vpop.f32.mrb[0].mxu0
    %v1882 = vadd.f32 %v1489, %v1881
    %v1883 = vpop.f32.mrb[0].mxu0
    %1884 = vmatprep.mubr.f32.mxu0 0.0
    %v1885 = vand.u32 %v1217, 4294901760
    %1886 = vmatmul.mubr.f32.gmra.mrb[0].mxu0 %v1885
    %v1887 = vpop.f32.mrb[0].mxu0
    %v1888 = vadd.f32 %v1499, %v1887
    %v1889 = vpop.f32.mrb[0].mxu0
    %1890 = vmatprep.mubr.f32.mxu0 0.0
    %v1891 = vand.u32 %v1218, 4294901760
    %1892 = vmatmul.mubr.f32.gmra.mrb[0].mxu0 %v1891
    %v1893 = vpop.f32.mrb[0].mxu0
    %v1894 = vadd.f32 %v1509, %v1893
    %v1895 = vpop.f32.mrb[0].mxu0
    %1896 = vmatprep.mubr.f32.mxu0 0.0
    %v1897 = vand.u32 %v1219, 4294901760
    %1898 = vmatmul.mubr.f32.gmra.mrb[0].mxu0 %v1897
    %v1899 = vpop.f32.mrb[0].mxu0
    %v1900 = vadd.f32 %v1519, %v1899
    %v1901 = vpop.f32.mrb[0].mxu0
    %1902 = vmatprep.mubr.f32.mxu0 0.0
    %v1903 = vand.u32 %v1220, 4294901760
    %1904 = vmatmul.mubr.f32.gmra.mrb[0].mxu0 %v1903
    %v1905 = vpop.f32.mrb[0].mxu0
    %v1906 = vadd.f32 %v1529, %v1905
    %v1907 = vpop.f32.mrb[0].mxu0
    %1908 = vmatprep.mubr.f32.mxu0 0.0
    %v1909 = vand.u32 %v1221, 4294901760
    %1910 = vmatmul.mubr.f32.gmra.mrb[0].mxu0 %v1909
    %v1911 = vpop.f32.mrb[0].mxu0
    %v1912 = vadd.f32 %v1539, %v1911
    %v1913 = vpop.f32.mrb[0].mxu0
    %1914 = vmatprep.mubr.f32.mxu0 0.0
    %v1915 = vand.u32 %v1222, 4294901760
    %1916 = vmatmul.mubr.f32.gmra.mrb[0].mxu0 %v1915
    %v1917 = vpop.f32.mrb[0].mxu0
    %v1918 = vadd.f32 %v1549, %v1917
    %v1919 = vpop.f32.mrb[0].mxu0
    %1920 = vmatprep.mubr.f32.mxu0 0.0
    %v1921 = vand.u32 %v1223, 4294901760
    %1922 = vmatmul.mubr.f32.gmra.mrb[0].mxu0 %v1921
    %v1923 = vpop.f32.mrb[0].mxu0
    %v1924 = vadd.f32 %v1559, %v1923
    %v1925 = vpop.f32.mrb[0].mxu0
    %1926 = vmatprep.mubr.f32.mxu0 0.0
    %v1927 = vand.u32 %v1224, 4294901760
    %1928 = vmatmul.mubr.f32.gmra.mrb[0].mxu0 %v1927
    %v1929 = vpop.f32.mrb[0].mxu0
    %v1930 = vadd.f32 %v1569, %v1929
    %v1931 = vpop.f32.mrb[0].mxu0
    %1932 = vmatprep.mubr.f32.mxu0 0.0
    %v1933 = vand.u32 %v1225, 4294901760
    %1934 = vmatmul.mubr.f32.gmra.mrb[0].mxu0 %v1933
    %v1935 = vpop.f32.mrb[0].mxu0
    %v1936 = vadd.f32 %v1579, %v1935
    %v1937 = vpop.f32.mrb[0].mxu0
    %1938 = vmatprep.mubr.f32.mxu0 0.0
    %v1939 = vand.u32 %v1226, 4294901760
    %1940 = vmatmul.mubr.f32.gmra.mrb[0].mxu0 %v1939
    %v1941 = vpop.f32.mrb[0].mxu0
    %v1942 = vadd.f32 %v1589, %v1941
    %v1943 = vpop.f32.mrb[0].mxu0
    %1944 = vmatprep.mubr.f32.mxu0 0.0
    %v1945 = vand.u32 %v1227, 4294901760
    %1946 = vmatmul.mubr.f32.gmra.mrb[0].mxu0 %v1945
    %v1947 = vpop.f32.mrb[0].mxu0
    %v1948 = vadd.f32 %v1599, %v1947
    %v1949 = vpop.f32.mrb[0].mxu0
    %1950 = vmatprep.mubr.f32.mxu0 0.0
    %v1951 = vand.u32 %v1228, 4294901760
    %1952 = vmatmul.mubr.f32.gmra.mrb[0].mxu0 %v1951
    %v1953 = vpop.f32.mrb[0].mxu0
    %v1954 = vadd.f32 %v1609, %v1953
    %v1955 = vpop.f32.mrb[0].mxu0
    %1956 = vmatprep.mubr.f32.mxu0 0.0
    %v1957 = vand.u32 %v1229, 4294901760
    %1958 = vmatmul.mubr.f32.gmra.mrb[0].mxu0 %v1957
    %v1959 = vpop.f32.mrb[0].mxu0
    %v1960 = vadd.f32 %v1619, %v1959
    %v1961 = vpop.f32.mrb[0].mxu0
    %1962 = vmatprep.mubr.f32.mxu0 0.0
    %v1963 = vand.u32 %v1230, 4294901760
    %1964 = vmatmul.mubr.f32.gmra.mrb[0].mxu0 %v1963
    %v1965 = vpop.f32.mrb[0].mxu0
    %v1966 = vadd.f32 %v1629, %v1965
    %v1967 = vpop.f32.mrb[0].mxu0
    %1968 = vdwg.mxu0
    %1969 = vmatprep.subr.mxu0 0.0
    %v1970 = vand.u32 %v1106, 4294901760
    %v1971 = vsub.f32 %v1106, %v1970
    %1972 = vmatpush1.msra.mxu0 %v1971
    %1973 = vmatprep.subr.mxu0 0.0
    %v1974 = vand.u32 %v1112, 4294901760
    %v1975 = vsub.f32 %v1112, %v1974
    %1976 = vmatpush1.msra.mxu0 %v1975
    %1977 = vmatprep.subr.mxu0 0.0
    %v1978 = vand.u32 %v1118, 4294901760
    %v1979 = vsub.f32 %v1118, %v1978
    %1980 = vmatpush1.msra.mxu0 %v1979
    %1981 = vmatprep.subr.mxu0 0.0
    %v1982 = vand.u32 %v1124, 4294901760
    %v1983 = vsub.f32 %v1124, %v1982
    %1984 = vmatpush1.msra.mxu0 %v1983
    %1985 = vmatprep.subr.mxu0 0.0
    %v1986 = vand.u32 %v1130, 4294901760
    %v1987 = vsub.f32 %v1130, %v1986
    %1988 = vmatpush1.msra.mxu0 %v1987
    %1989 = vmatprep.subr.mxu0 0.0
    %v1990 = vand.u32 %v1136, 4294901760
    %v1991 = vsub.f32 %v1136, %v1990
    %1992 = vmatpush1.msra.mxu0 %v1991
    %1993 = vmatprep.subr.mxu0 0.0
    %v1994 = vand.u32 %v1142, 4294901760
    %v1995 = vsub.f32 %v1142, %v1994
    %1996 = vmatpush1.msra.mxu0 %v1995
    %1997 = vmatprep.subr.mxu0 0.0
    %v1998 = vand.u32 %v1148, 4294901760
    %v1999 = vsub.f32 %v1148, %v1998
    %2000 = vmatpush1.msra.mxu0 %v1999
    %2001 = vmatprep.subr.mxu0 0.0
    %v2002 = vand.u32 %v1154, 4294901760
    %v2003 = vsub.f32 %v1154, %v2002
    %2004 = vmatpush1.msra.mxu0 %v2003
    %2005 = vmatprep.subr.mxu0 0.0
    %v2006 = vand.u32 %v1160, 4294901760
    %v2007 = vsub.f32 %v1160, %v2006
    %2008 = vmatpush1.msra.mxu0 %v2007
    %2009 = vmatprep.subr.mxu0 0.0
    %v2010 = vand.u32 %v1166, 4294901760
    %v2011 = vsub.f32 %v1166, %v2010
    %2012 = vmatpush1.msra.mxu0 %v2011
    %2013 = vmatprep.subr.mxu0 0.0
    %v2014 = vand.u32 %v1172, 4294901760
    %v2015 = vsub.f32 %v1172, %v2014
    %2016 = vmatpush1.msra.mxu0 %v2015
    %2017 = vmatprep.subr.mxu0 0.0
    %v2018 = vand.u32 %v1178, 4294901760
    %v2019 = vsub.f32 %v1178, %v2018
    %2020 = vmatpush1.msra.mxu0 %v2019
    %2021 = vmatprep.subr.mxu0 0.0
    %v2022 = vand.u32 %v1184, 4294901760
    %v2023 = vsub.f32 %v1184, %v2022
    %2024 = vmatpush1.msra.mxu0 %v2023
    %2025 = vmatprep.subr.mxu0 0.0
    %v2026 = vand.u32 %v1190, 4294901760
    %v2027 = vsub.f32 %v1190, %v2026
    %2028 = vmatpush1.msra.mxu0 %v2027
    %2029 = vmatprep.subr.mxu0 0.0
    %v2030 = vand.u32 %v1196, 4294901760
    %v2031 = vsub.f32 %v1196, %v2030
    %2032 = vmatpush1.msra.mxu0 %v2031
    %2033 = vmatprep.subr.mxu0 0.0
    %2034 = vmatpush1.msra.mxu0 0.0
    %2035 = vmatprep.subr.mxu0 0.0
    %2036 = vmatpush1.msra.mxu0 0.0
    %2037 = vmatprep.subr.mxu0 0.0
    %2038 = vmatpush1.msra.mxu0 0.0
    %2039 = vmatprep.subr.mxu0 0.0
    %2040 = vmatpush1.msra.mxu0 0.0
    %2041 = vmatprep.subr.mxu0 0.0
    %2042 = vmatpush1.msra.mxu0 0.0
    %2043 = vmatprep.subr.mxu0 0.0
    %2044 = vmatpush1.msra.mxu0 0.0
    %2045 = vmatprep.subr.mxu0 0.0
    %2046 = vmatpush1.msra.mxu0 0.0
    %2047 = vmatprep.subr.mxu0 0.0
    %2048 = vmatpush1.msra.mxu0 0.0
    %2049 = vmatprep.subr.mxu0 0.0
    %2050 = vmatpush1.msra.mxu0 0.0
    %2051 = vmatprep.subr.mxu0 0.0
    %2052 = vmatpush1.msra.mxu0 0.0
    %2053 = vmatprep.subr.mxu0 0.0
    %2054 = vmatpush1.msra.mxu0 0.0
    %2055 = vmatprep.subr.mxu0 0.0
    %2056 = vmatpush1.msra.mxu0 0.0
    %2057 = vmatprep.subr.mxu0 0.0
    %2058 = vmatpush1.msra.mxu0 0.0
    %2059 = vmatprep.subr.mxu0 0.0
    %2060 = vmatpush1.msra.mxu0 0.0
    %2061 = vmatprep.subr.mxu0 0.0
    %2062 = vmatpush1.msra.mxu0 0.0
    %2063 = vmatprep.subr.mxu0 0.0
    %2064 = vmatpush1.msra.mxu0 0.0
    %2065 = vmatprep.mubr.f32.mxu0 0.0
    %v2066 = vand.u32 %v1199, 4294901760
    %v2067 = vsub.f32 %v1199, %v2066
    %2068 = vmatmul.mubr.f32.gmra.mrb[0].mxu0 %v2067
    %v2069 = vpop.f32.mrb[0].mxu0
    %v2070 = vadd.f32 %v1780, %v2069
    %v2071 = vpop.f32.mrb[0].mxu0
    %2072 = vmatprep.mubr.f32.mxu0 0.0
    %v2073 = vand.u32 %v1200, 4294901760
    %v2074 = vsub.f32 %v1200, %v2073
    %2075 = vmatmul.mubr.f32.gmra.mrb[0].mxu0 %v2074
    %v2076 = vpop.f32.mrb[0].mxu0
    %v2077 = vadd.f32 %v1786, %v2076
    %v2078 = vpop.f32.mrb[0].mxu0
    %2079 = vmatprep.mubr.f32.mxu0 0.0
    %v2080 = vand.u32 %v1201, 4294901760
    %v2081 = vsub.f32 %v1201, %v2080
    %2082 = vmatmul.mubr.f32.gmra.mrb[0].mxu0 %v2081
    %v2083 = vpop.f32.mrb[0].mxu0
    %v2084 = vadd.f32 %v1792, %v2083
    %v2085 = vpop.f32.mrb[0].mxu0
    %2086 = vmatprep.mubr.f32.mxu0 0.0
    %v2087 = vand.u32 %v1202, 4294901760
    %v2088 = vsub.f32 %v1202, %v2087
    %2089 = vmatmul.mubr.f32.gmra.mrb[0].mxu0 %v2088
    %v2090 = vpop.f32.mrb[0].mxu0
    %v2091 = vadd.f32 %v1798, %v2090
    %v2092 = vpop.f32.mrb[0].mxu0
    %2093 = vmatprep.mubr.f32.mxu0 0.0
    %v2094 = vand.u32 %v1203, 4294901760
    %v2095 = vsub.f32 %v1203, %v2094
    %2096 = vmatmul.mubr.f32.gmra.mrb[0].mxu0 %v2095
    %v2097 = vpop.f32.mrb[0].mxu0
    %v2098 = vadd.f32 %v1804, %v2097
    %v2099 = vpop.f32.mrb[0].mxu0
    %2100 = vmatprep.mubr.f32.mxu0 0.0
    %v2101 = vand.u32 %v1204, 4294901760
    %v2102 = vsub.f32 %v1204, %v2101
    %2103 = vmatmul.mubr.f32.gmra.mrb[0].mxu0 %v2102
    %v2104 = vpop.f32.mrb[0].mxu0
    %v2105 = vadd.f32 %v1810, %v2104
    %v2106 = vpop.f32.mrb[0].mxu0
    %2107 = vmatprep.mubr.f32.mxu0 0.0
    %v2108 = vand.u32 %v1205, 4294901760
    %v2109 = vsub.f32 %v1205, %v2108
    %2110 = vmatmul.mubr.f32.gmra.mrb[0].mxu0 %v2109
    %v2111 = vpop.f32.mrb[0].mxu0
    %v2112 = vadd.f32 %v1816, %v2111
    %v2113 = vpop.f32.mrb[0].mxu0
    %2114 = vmatprep.mubr.f32.mxu0 0.0
    %v2115 = vand.u32 %v1206, 4294901760
    %v2116 = vsub.f32 %v1206, %v2115
    %2117 = vmatmul.mubr.f32.gmra.mrb[0].mxu0 %v2116
    %v2118 = vpop.f32.mrb[0].mxu0
    %v2119 = vadd.f32 %v1822, %v2118
    %v2120 = vpop.f32.mrb[0].mxu0
    %2121 = vmatprep.mubr.f32.mxu0 0.0
    %v2122 = vand.u32 %v1207, 4294901760
    %v2123 = vsub.f32 %v1207, %v2122
    %2124 = vmatmul.mubr.f32.gmra.mrb[0].mxu0 %v2123
    %v2125 = vpop.f32.mrb[0].mxu0
    %v2126 = vadd.f32 %v1828, %v2125
    %v2127 = vpop.f32.mrb[0].mxu0
    %2128 = vmatprep.mubr.f32.mxu0 0.0
    %v2129 = vand.u32 %v1208, 4294901760
    %v2130 = vsub.f32 %v1208, %v2129
    %2131 = vmatmul.mubr.f32.gmra.mrb[0].mxu0 %v2130
    %v2132 = vpop.f32.mrb[0].mxu0
    %v2133 = vadd.f32 %v1834, %v2132
    %v2134 = vpop.f32.mrb[0].mxu0
    %2135 = vmatprep.mubr.f32.mxu0 0.0
    %v2136 = vand.u32 %v1209, 4294901760
    %v2137 = vsub.f32 %v1209, %v2136
    %2138 = vmatmul.mubr.f32.gmra.mrb[0].mxu0 %v2137
    %v2139 = vpop.f32.mrb[0].mxu0
    %v2140 = vadd.f32 %v1840, %v2139
    %v2141 = vpop.f32.mrb[0].mxu0
    %2142 = vmatprep.mubr.f32.mxu0 0.0
    %v2143 = vand.u32 %v1210, 4294901760
    %v2144 = vsub.f32 %v1210, %v2143
    %2145 = vmatmul.mubr.f32.gmra.mrb[0].mxu0 %v2144
    %v2146 = vpop.f32.mrb[0].mxu0
    %v2147 = vadd.f32 %v1846, %v2146
    %v2148 = vpop.f32.mrb[0].mxu0
    %2149 = vmatprep.mubr.f32.mxu0 0.0
    %v2150 = vand.u32 %v1211, 4294901760
    %v2151 = vsub.f32 %v1211, %v2150
    %2152 = vmatmul.mubr.f32.gmra.mrb[0].mxu0 %v2151
    %v2153 = vpop.f32.mrb[0].mxu0
    %v2154 = vadd.f32 %v1852, %v2153
    %v2155 = vpop.f32.mrb[0].mxu0
    %2156 = vmatprep.mubr.f32.mxu0 0.0
    %v2157 = vand.u32 %v1212, 4294901760
    %v2158 = vsub.f32 %v1212, %v2157
    %2159 = vmatmul.mubr.f32.gmra.mrb[0].mxu0 %v2158
    %v2160 = vpop.f32.mrb[0].mxu0
    %v2161 = vadd.f32 %v1858, %v2160
    %v2162 = vpop.f32.mrb[0].mxu0
    %2163 = vmatprep.mubr.f32.mxu0 0.0
    %v2164 = vand.u32 %v1213, 4294901760
    %v2165 = vsub.f32 %v1213, %v2164
    %2166 = vmatmul.mubr.f32.gmra.mrb[0].mxu0 %v2165
    %v2167 = vpop.f32.mrb[0].mxu0
    %v2168 = vadd.f32 %v1864, %v2167
    %v2169 = vpop.f32.mrb[0].mxu0
    %2170 = vmatprep.mubr.f32.mxu0 0.0
    %v2171 = vand.u32 %v1214, 4294901760
    %v2172 = vsub.f32 %v1214, %v2171
    %2173 = vmatmul.mubr.f32.gmra.mrb[0].mxu0 %v2172
    %v2174 = vpop.f32.mrb[0].mxu0
    %v2175 = vadd.f32 %v1870, %v2174
    %v2176 = vpop.f32.mrb[0].mxu0
    %2177 = vmatprep.mubr.f32.mxu0 0.0
    %v2178 = vand.u32 %v1215, 4294901760
    %v2179 = vsub.f32 %v1215, %v2178
    %2180 = vmatmul.mubr.f32.gmra.mrb[0].mxu0 %v2179
    %v2181 = vpop.f32.mrb[0].mxu0
    %v2182 = vadd.f32 %v1876, %v2181
    %v2183 = vpop.f32.mrb[0].mxu0
    %2184 = vmatprep.mubr.f32.mxu0 0.0
    %v2185 = vand.u32 %v1216, 4294901760
    %v2186 = vsub.f32 %v1216, %v2185
    %2187 = vmatmul.mubr.f32.gmra.mrb[0].mxu0 %v2186
    %v2188 = vpop.f32.mrb[0].mxu0
    %v2189 = vadd.f32 %v1882, %v2188
    %v2190 = vpop.f32.mrb[0].mxu0
    %2191 = vmatprep.mubr.f32.mxu0 0.0
    %v2192 = vand.u32 %v1217, 4294901760
    %v2193 = vsub.f32 %v1217, %v2192
    %2194 = vmatmul.mubr.f32.gmra.mrb[0].mxu0 %v2193
    %v2195 = vpop.f32.mrb[0].mxu0
    %v2196 = vadd.f32 %v1888, %v2195
    %v2197 = vpop.f32.mrb[0].mxu0
    %2198 = vmatprep.mubr.f32.mxu0 0.0
    %v2199 = vand.u32 %v1218, 4294901760
    %v2200 = vsub.f32 %v1218, %v2199
    %2201 = vmatmul.mubr.f32.gmra.mrb[0].mxu0 %v2200
    %v2202 = vpop.f32.mrb[0].mxu0
    %v2203 = vadd.f32 %v1894, %v2202
    %v2204 = vpop.f32.mrb[0].mxu0
    %2205 = vmatprep.mubr.f32.mxu0 0.0
    %v2206 = vand.u32 %v1219, 4294901760
    %v2207 = vsub.f32 %v1219, %v2206
    %2208 = vmatmul.mubr.f32.gmra.mrb[0].mxu0 %v2207
    %v2209 = vpop.f32.mrb[0].mxu0
    %v2210 = vadd.f32 %v1900, %v2209
    %v2211 = vpop.f32.mrb[0].mxu0
    %2212 = vmatprep.mubr.f32.mxu0 0.0
    %v2213 = vand.u32 %v1220, 4294901760
    %v2214 = vsub.f32 %v1220, %v2213
    %2215 = vmatmul.mubr.f32.gmra.mrb[0].mxu0 %v2214
    %v2216 = vpop.f32.mrb[0].mxu0
    %v2217 = vadd.f32 %v1906, %v2216
    %v2218 = vpop.f32.mrb[0].mxu0
    %2219 = vmatprep.mubr.f32.mxu0 0.0
    %v2220 = vand.u32 %v1221, 4294901760
    %v2221 = vsub.f32 %v1221, %v2220
    %2222 = vmatmul.mubr.f32.gmra.mrb[0].mxu0 %v2221
    %v2223 = vpop.f32.mrb[0].mxu0
    %v2224 = vadd.f32 %v1912, %v2223
    %v2225 = vpop.f32.mrb[0].mxu0
    %2226 = vmatprep.mubr.f32.mxu0 0.0
    %v2227 = vand.u32 %v1222, 4294901760
    %v2228 = vsub.f32 %v1222, %v2227
    %2229 = vmatmul.mubr.f32.gmra.mrb[0].mxu0 %v2228
    %v2230 = vpop.f32.mrb[0].mxu0
    %v2231 = vadd.f32 %v1918, %v2230
    %v2232 = vpop.f32.mrb[0].mxu0
    %2233 = vmatprep.mubr.f32.mxu0 0.0
    %v2234 = vand.u32 %v1223, 4294901760
    %v2235 = vsub.f32 %v1223, %v2234
    %2236 = vmatmul.mubr.f32.gmra.mrb[0].mxu0 %v2235
    %v2237 = vpop.f32.mrb[0].mxu0
    %v2238 = vadd.f32 %v1924, %v2237
    %v2239 = vpop.f32.mrb[0].mxu0
    %2240 = vmatprep.mubr.f32.mxu0 0.0
    %v2241 = vand.u32 %v1224, 4294901760
    %v2242 = vsub.f32 %v1224, %v2241
    %2243 = vmatmul.mubr.f32.gmra.mrb[0].mxu0 %v2242
    %v2244 = vpop.f32.mrb[0].mxu0
    %v2245 = vadd.f32 %v1930, %v2244
    %v2246 = vpop.f32.mrb[0].mxu0
    %2247 = vmatprep.mubr.f32.mxu0 0.0
    %v2248 = vand.u32 %v1225, 4294901760
    %v2249 = vsub.f32 %v1225, %v2248
    %2250 = vmatmul.mubr.f32.gmra.mrb[0].mxu0 %v2249
    %v2251 = vpop.f32.mrb[0].mxu0
    %v2252 = vadd.f32 %v1936, %v2251
    %v2253 = vpop.f32.mrb[0].mxu0
    %2254 = vmatprep.mubr.f32.mxu0 0.0
    %v2255 = vand.u32 %v1226, 4294901760
    %v2256 = vsub.f32 %v1226, %v2255
    %2257 = vmatmul.mubr.f32.gmra.mrb[0].mxu0 %v2256
    %v2258 = vpop.f32.mrb[0].mxu0
    %v2259 = vadd.f32 %v1942, %v2258
    %v2260 = vpop.f32.mrb[0].mxu0
    %2261 = vmatprep.mubr.f32.mxu0 0.0
    %v2262 = vand.u32 %v1227, 4294901760
    %v2263 = vsub.f32 %v1227, %v2262
    %2264 = vmatmul.mubr.f32.gmra.mrb[0].mxu0 %v2263
    %v2265 = vpop.f32.mrb[0].mxu0
    %v2266 = vadd.f32 %v1948, %v2265
    %v2267 = vpop.f32.mrb[0].mxu0
    %2268 = vmatprep.mubr.f32.mxu0 0.0
    %v2269 = vand.u32 %v1228, 4294901760
    %v2270 = vsub.f32 %v1228, %v2269
    %2271 = vmatmul.mubr.f32.gmra.mrb[0].mxu0 %v2270
    %v2272 = vpop.f32.mrb[0].mxu0
    %v2273 = vadd.f32 %v1954, %v2272
    %v2274 = vpop.f32.mrb[0].mxu0
    %2275 = vmatprep.mubr.f32.mxu0 0.0
    %v2276 = vand.u32 %v1229, 4294901760
    %v2277 = vsub.f32 %v1229, %v2276
    %2278 = vmatmul.mubr.f32.gmra.mrb[0].mxu0 %v2277
    %v2279 = vpop.f32.mrb[0].mxu0
    %v2280 = vadd.f32 %v1960, %v2279
    %v2281 = vpop.f32.mrb[0].mxu0
    %2282 = vmatprep.mubr.f32.mxu0 0.0
    %v2283 = vand.u32 %v1230, 4294901760
    %v2284 = vsub.f32 %v1230, %v2283
    %2285 = vmatmul.mubr.f32.gmra.mrb[0].mxu0 %v2284
    %v2286 = vpop.f32.mrb[0].mxu0
    %v2287 = vadd.f32 %v1966, %v2286
    %v2288 = vpop.f32.mrb[0].mxu0
    %2289 = vdwg.mxu0
    %2290 = vmatprep.subr.mxu0 0.0
    %v2291 = vand.u32 %v1106, 4294901760
    %2292 = vmatpush1.msra.mxu0 %v2291
    %2293 = vmatprep.subr.mxu0 0.0
    %v2294 = vand.u32 %v1112, 4294901760
    %2295 = vmatpush1.msra.mxu0 %v2294
    %2296 = vmatprep.subr.mxu0 0.0
    %v2297 = vand.u32 %v1118, 4294901760
    %2298 = vmatpush1.msra.mxu0 %v2297
    %2299 = vmatprep.subr.mxu0 0.0
    %v2300 = vand.u32 %v1124, 4294901760
    %2301 = vmatpush1.msra.mxu0 %v2300
    %2302 = vmatprep.subr.mxu0 0.0
    %v2303 = vand.u32 %v1130, 4294901760
    %2304 = vmatpush1.msra.mxu0 %v2303
    %2305 = vmatprep.subr.mxu0 0.0
    %v2306 = vand.u32 %v1136, 4294901760
    %2307 = vmatpush1.msra.mxu0 %v2306
    %2308 = vmatprep.subr.mxu0 0.0
    %v2309 = vand.u32 %v1142, 4294901760
    %2310 = vmatpush1.msra.mxu0 %v2309
    %2311 = vmatprep.subr.mxu0 0.0
    %v2312 = vand.u32 %v1148, 4294901760
    %2313 = vmatpush1.msra.mxu0 %v2312
    %2314 = vmatprep.subr.mxu0 0.0
    %v2315 = vand.u32 %v1154, 4294901760
    %2316 = vmatpush1.msra.mxu0 %v2315
    %2317 = vmatprep.subr.mxu0 0.0
    %v2318 = vand.u32 %v1160, 4294901760
    %2319 = vmatpush1.msra.mxu0 %v2318
    %2320 = vmatprep.subr.mxu0 0.0
    %v2321 = vand.u32 %v1166, 4294901760
    %2322 = vmatpush1.msra.mxu0 %v2321
    %2323 = vmatprep.subr.mxu0 0.0
    %v2324 = vand.u32 %v1172, 4294901760
    %2325 = vmatpush1.msra.mxu0 %v2324
    %2326 = vmatprep.subr.mxu0 0.0
    %v2327 = vand.u32 %v1178, 4294901760
    %2328 = vmatpush1.msra.mxu0 %v2327
    %2329 = vmatprep.subr.mxu0 0.0
    %v2330 = vand.u32 %v1184, 4294901760
    %2331 = vmatpush1.msra.mxu0 %v2330
    %2332 = vmatprep.subr.mxu0 0.0
    %v2333 = vand.u32 %v1190, 4294901760
    %2334 = vmatpush1.msra.mxu0 %v2333
    %2335 = vmatprep.subr.mxu0 0.0
    %v2336 = vand.u32 %v1196, 4294901760
    %2337 = vmatpush1.msra.mxu0 %v2336
    %2338 = vmatprep.subr.mxu0 0.0
    %2339 = vmatpush1.msra.mxu0 0.0
    %2340 = vmatprep.subr.mxu0 0.0
    %2341 = vmatpush1.msra.mxu0 0.0
    %2342 = vmatprep.subr.mxu0 0.0
    %2343 = vmatpush1.msra.mxu0 0.0
    %2344 = vmatprep.subr.mxu0 0.0
    %2345 = vmatpush1.msra.mxu0 0.0
    %2346 = vmatprep.subr.mxu0 0.0
    %2347 = vmatpush1.msra.mxu0 0.0
    %2348 = vmatprep.subr.mxu0 0.0
    %2349 = vmatpush1.msra.mxu0 0.0
    %2350 = vmatprep.subr.mxu0 0.0
    %2351 = vmatpush1.msra.mxu0 0.0
    %2352 = vmatprep.subr.mxu0 0.0
    %2353 = vmatpush1.msra.mxu0 0.0
    %2354 = vmatprep.subr.mxu0 0.0
    %2355 = vmatpush1.msra.mxu0 0.0
    %2356 = vmatprep.subr.mxu0 0.0
    %2357 = vmatpush1.msra.mxu0 0.0
    %2358 = vmatprep.subr.mxu0 0.0
    %2359 = vmatpush1.msra.mxu0 0.0
    %2360 = vmatprep.subr.mxu0 0.0
    %2361 = vmatpush1.msra.mxu0 0.0
    %2362 = vmatprep.subr.mxu0 0.0
    %2363 = vmatpush1.msra.mxu0 0.0
    %2364 = vmatprep.subr.mxu0 0.0
    %2365 = vmatpush1.msra.mxu0 0.0
    %2366 = vmatprep.subr.mxu0 0.0
    %2367 = vmatpush1.msra.mxu0 0.0
    %2368 = vmatprep.subr.mxu0 0.0
    %2369 = vmatpush1.msra.mxu0 0.0
    %2370 = vmatprep.mubr.f32.mxu0 0.0
    %v2371 = vand.u32 %v1199, 4294901760
    %v2372 = vsub.f32 %v1199, %v2371
    %v2373 = vand.u32 %v2372, 4294901760
    %2374 = vmatmul.mubr.f32.gmra.mrb[0].mxu0 %v2373
    %v2375 = vpop.f32.mrb[0].mxu0
    %v2376 = vadd.f32 %v2070, %v2375
    %v2377 = vpop.f32.mrb[0].mxu0
    %2378 = vmatprep.mubr.f32.mxu0 0.0
    %v2379 = vand.u32 %v1200, 4294901760
    %v2380 = vsub.f32 %v1200, %v2379
    %v2381 = vand.u32 %v2380, 4294901760
    %2382 = vmatmul.mubr.f32.gmra.mrb[0].mxu0 %v2381
    %v2383 = vpop.f32.mrb[0].mxu0
    %v2384 = vadd.f32 %v2077, %v2383
    %v2385 = vpop.f32.mrb[0].mxu0
    %2386 = vmatprep.mubr.f32.mxu0 0.0
    %v2387 = vand.u32 %v1201, 4294901760
    %v2388 = vsub.f32 %v1201, %v2387
    %v2389 = vand.u32 %v2388, 4294901760
    %2390 = vmatmul.mubr.f32.gmra.mrb[0].mxu0 %v2389
    %v2391 = vpop.f32.mrb[0].mxu0
    %v2392 = vadd.f32 %v2084, %v2391
    %v2393 = vpop.f32.mrb[0].mxu0
    %2394 = vmatprep.mubr.f32.mxu0 0.0
    %v2395 = vand.u32 %v1202, 4294901760
    %v2396 = vsub.f32 %v1202, %v2395
    %v2397 = vand.u32 %v2396, 4294901760
    %2398 = vmatmul.mubr.f32.gmra.mrb[0].mxu0 %v2397
    %v2399 = vpop.f32.mrb[0].mxu0
    %v2400 = vadd.f32 %v2091, %v2399
    %v2401 = vpop.f32.mrb[0].mxu0
    %2402 = vmatprep.mubr.f32.mxu0 0.0
    %v2403 = vand.u32 %v1203, 4294901760
    %v2404 = vsub.f32 %v1203, %v2403
    %v2405 = vand.u32 %v2404, 4294901760
    %2406 = vmatmul.mubr.f32.gmra.mrb[0].mxu0 %v2405
    %v2407 = vpop.f32.mrb[0].mxu0
    %v2408 = vadd.f32 %v2098, %v2407
    %v2409 = vpop.f32.mrb[0].mxu0
    %2410 = vmatprep.mubr.f32.mxu0 0.0
    %v2411 = vand.u32 %v1204, 4294901760
    %v2412 = vsub.f32 %v1204, %v2411
    %v2413 = vand.u32 %v2412, 4294901760
    %2414 = vmatmul.mubr.f32.gmra.mrb[0].mxu0 %v2413
    %v2415 = vpop.f32.mrb[0].mxu0
    %v2416 = vadd.f32 %v2105, %v2415
    %v2417 = vpop.f32.mrb[0].mxu0
    %2418 = vmatprep.mubr.f32.mxu0 0.0
    %v2419 = vand.u32 %v1205, 4294901760
    %v2420 = vsub.f32 %v1205, %v2419
    %v2421 = vand.u32 %v2420, 4294901760
    %2422 = vmatmul.mubr.f32.gmra.mrb[0].mxu0 %v2421
    %v2423 = vpop.f32.mrb[0].mxu0
    %v2424 = vadd.f32 %v2112, %v2423
    %v2425 = vpop.f32.mrb[0].mxu0
    %2426 = vmatprep.mubr.f32.mxu0 0.0
    %v2427 = vand.u32 %v1206, 4294901760
    %v2428 = vsub.f32 %v1206, %v2427
    %v2429 = vand.u32 %v2428, 4294901760
    %2430 = vmatmul.mubr.f32.gmra.mrb[0].mxu0 %v2429
    %v2431 = vpop.f32.mrb[0].mxu0
    %v2432 = vadd.f32 %v2119, %v2431
    %v2433 = vpop.f32.mrb[0].mxu0
    %2434 = vmatprep.mubr.f32.mxu0 0.0
    %v2435 = vand.u32 %v1207, 4294901760
    %v2436 = vsub.f32 %v1207, %v2435
    %v2437 = vand.u32 %v2436, 4294901760
    %2438 = vmatmul.mubr.f32.gmra.mrb[0].mxu0 %v2437
    %v2439 = vpop.f32.mrb[0].mxu0
    %v2440 = vadd.f32 %v2126, %v2439
    %v2441 = vpop.f32.mrb[0].mxu0
    %2442 = vmatprep.mubr.f32.mxu0 0.0
    %v2443 = vand.u32 %v1208, 4294901760
    %v2444 = vsub.f32 %v1208, %v2443
    %v2445 = vand.u32 %v2444, 4294901760
    %2446 = vmatmul.mubr.f32.gmra.mrb[0].mxu0 %v2445
    %v2447 = vpop.f32.mrb[0].mxu0
    %v2448 = vadd.f32 %v2133, %v2447
    %v2449 = vpop.f32.mrb[0].mxu0
    %2450 = vmatprep.mubr.f32.mxu0 0.0
    %v2451 = vand.u32 %v1209, 4294901760
    %v2452 = vsub.f32 %v1209, %v2451
    %v2453 = vand.u32 %v2452, 4294901760
    %2454 = vmatmul.mubr.f32.gmra.mrb[0].mxu0 %v2453
    %v2455 = vpop.f32.mrb[0].mxu0
    %v2456 = vadd.f32 %v2140, %v2455
    %v2457 = vpop.f32.mrb[0].mxu0
    %2458 = vmatprep.mubr.f32.mxu0 0.0
    %v2459 = vand.u32 %v1210, 4294901760
    %v2460 = vsub.f32 %v1210, %v2459
    %v2461 = vand.u32 %v2460, 4294901760
    %2462 = vmatmul.mubr.f32.gmra.mrb[0].mxu0 %v2461
    %v2463 = vpop.f32.mrb[0].mxu0
    %v2464 = vadd.f32 %v2147, %v2463
    %v2465 = vpop.f32.mrb[0].mxu0
    %2466 = vmatprep.mubr.f32.mxu0 0.0
    %v2467 = vand.u32 %v1211, 4294901760
    %v2468 = vsub.f32 %v1211, %v2467
    %v2469 = vand.u32 %v2468, 4294901760
    %2470 = vmatmul.mubr.f32.gmra.mrb[0].mxu0 %v2469
    %v2471 = vpop.f32.mrb[0].mxu0
    %v2472 = vadd.f32 %v2154, %v2471
    %v2473 = vpop.f32.mrb[0].mxu0
    %2474 = vmatprep.mubr.f32.mxu0 0.0
    %v2475 = vand.u32 %v1212, 4294901760
    %v2476 = vsub.f32 %v1212, %v2475
    %v2477 = vand.u32 %v2476, 4294901760
    %2478 = vmatmul.mubr.f32.gmra.mrb[0].mxu0 %v2477
    %v2479 = vpop.f32.mrb[0].mxu0
    %v2480 = vadd.f32 %v2161, %v2479
    %v2481 = vpop.f32.mrb[0].mxu0
    %2482 = vmatprep.mubr.f32.mxu0 0.0
    %v2483 = vand.u32 %v1213, 4294901760
    %v2484 = vsub.f32 %v1213, %v2483
    %v2485 = vand.u32 %v2484, 4294901760
    %2486 = vmatmul.mubr.f32.gmra.mrb[0].mxu0 %v2485
    %v2487 = vpop.f32.mrb[0].mxu0
    %v2488 = vadd.f32 %v2168, %v2487
    %v2489 = vpop.f32.mrb[0].mxu0
    %2490 = vmatprep.mubr.f32.mxu0 0.0
    %v2491 = vand.u32 %v1214, 4294901760
    %v2492 = vsub.f32 %v1214, %v2491
    %v2493 = vand.u32 %v2492, 4294901760
    %2494 = vmatmul.mubr.f32.gmra.mrb[0].mxu0 %v2493
    %v2495 = vpop.f32.mrb[0].mxu0
    %v2496 = vadd.f32 %v2175, %v2495
    %v2497 = vpop.f32.mrb[0].mxu0
    %2498 = vmatprep.mubr.f32.mxu0 0.0
    %v2499 = vand.u32 %v1215, 4294901760
    %v2500 = vsub.f32 %v1215, %v2499
    %v2501 = vand.u32 %v2500, 4294901760
    %2502 = vmatmul.mubr.f32.gmra.mrb[0].mxu0 %v2501
    %v2503 = vpop.f32.mrb[0].mxu0
    %v2504 = vadd.f32 %v2182, %v2503
    %v2505 = vpop.f32.mrb[0].mxu0
    %2506 = vmatprep.mubr.f32.mxu0 0.0
    %v2507 = vand.u32 %v1216, 4294901760
    %v2508 = vsub.f32 %v1216, %v2507
    %v2509 = vand.u32 %v2508, 4294901760
    %2510 = vmatmul.mubr.f32.gmra.mrb[0].mxu0 %v2509
    %v2511 = vpop.f32.mrb[0].mxu0
    %v2512 = vadd.f32 %v2189, %v2511
    %v2513 = vpop.f32.mrb[0].mxu0
    %2514 = vmatprep.mubr.f32.mxu0 0.0
    %v2515 = vand.u32 %v1217, 4294901760
    %v2516 = vsub.f32 %v1217, %v2515
    %v2517 = vand.u32 %v2516, 4294901760
    %2518 = vmatmul.mubr.f32.gmra.mrb[0].mxu0 %v2517
    %v2519 = vpop.f32.mrb[0].mxu0
    %v2520 = vadd.f32 %v2196, %v2519
    %v2521 = vpop.f32.mrb[0].mxu0
    %2522 = vmatprep.mubr.f32.mxu0 0.0
    %v2523 = vand.u32 %v1218, 4294901760
    %v2524 = vsub.f32 %v1218, %v2523
    %v2525 = vand.u32 %v2524, 4294901760
    %2526 = vmatmul.mubr.f32.gmra.mrb[0].mxu0 %v2525
    %v2527 = vpop.f32.mrb[0].mxu0
    %v2528 = vadd.f32 %v2203, %v2527
    %v2529 = vpop.f32.mrb[0].mxu0
    %2530 = vmatprep.mubr.f32.mxu0 0.0
    %v2531 = vand.u32 %v1219, 4294901760
    %v2532 = vsub.f32 %v1219, %v2531
    %v2533 = vand.u32 %v2532, 4294901760
    %2534 = vmatmul.mubr.f32.gmra.mrb[0].mxu0 %v2533
    %v2535 = vpop.f32.mrb[0].mxu0
    %v2536 = vadd.f32 %v2210, %v2535
    %v2537 = vpop.f32.mrb[0].mxu0
    %2538 = vmatprep.mubr.f32.mxu0 0.0
    %v2539 = vand.u32 %v1220, 4294901760
    %v2540 = vsub.f32 %v1220, %v2539
    %v2541 = vand.u32 %v2540, 4294901760
    %2542 = vmatmul.mubr.f32.gmra.mrb[0].mxu0 %v2541
    %v2543 = vpop.f32.mrb[0].mxu0
    %v2544 = vadd.f32 %v2217, %v2543
    %v2545 = vpop.f32.mrb[0].mxu0
    %2546 = vmatprep.mubr.f32.mxu0 0.0
    %v2547 = vand.u32 %v1221, 4294901760
    %v2548 = vsub.f32 %v1221, %v2547
    %v2549 = vand.u32 %v2548, 4294901760
    %2550 = vmatmul.mubr.f32.gmra.mrb[0].mxu0 %v2549
    %v2551 = vpop.f32.mrb[0].mxu0
    %v2552 = vadd.f32 %v2224, %v2551
    %v2553 = vpop.f32.mrb[0].mxu0
    %2554 = vmatprep.mubr.f32.mxu0 0.0
    %v2555 = vand.u32 %v1222, 4294901760
    %v2556 = vsub.f32 %v1222, %v2555
    %v2557 = vand.u32 %v2556, 4294901760
    %2558 = vmatmul.mubr.f32.gmra.mrb[0].mxu0 %v2557
    %v2559 = vpop.f32.mrb[0].mxu0
    %v2560 = vadd.f32 %v2231, %v2559
    %v2561 = vpop.f32.mrb[0].mxu0
    %2562 = vmatprep.mubr.f32.mxu0 0.0
    %v2563 = vand.u32 %v1223, 4294901760
    %v2564 = vsub.f32 %v1223, %v2563
    %v2565 = vand.u32 %v2564, 4294901760
    %2566 = vmatmul.mubr.f32.gmra.mrb[0].mxu0 %v2565
    %v2567 = vpop.f32.mrb[0].mxu0
    %v2568 = vadd.f32 %v2238, %v2567
    %v2569 = vpop.f32.mrb[0].mxu0
    %2570 = vmatprep.mubr.f32.mxu0 0.0
    %v2571 = vand.u32 %v1224, 4294901760
    %v2572 = vsub.f32 %v1224, %v2571
    %v2573 = vand.u32 %v2572, 4294901760
    %2574 = vmatmul.mubr.f32.gmra.mrb[0].mxu0 %v2573
    %v2575 = vpop.f32.mrb[0].mxu0
    %v2576 = vadd.f32 %v2245, %v2575
    %v2577 = vpop.f32.mrb[0].mxu0
    %2578 = vmatprep.mubr.f32.mxu0 0.0
    %v2579 = vand.u32 %v1225, 4294901760
    %v2580 = vsub.f32 %v1225, %v2579
    %v2581 = vand.u32 %v2580, 4294901760
    %2582 = vmatmul.mubr.f32.gmra.mrb[0].mxu0 %v2581
    %v2583 = vpop.f32.mrb[0].mxu0
    %v2584 = vadd.f32 %v2252, %v2583
    %v2585 = vpop.f32.mrb[0].mxu0
    %2586 = vmatprep.mubr.f32.mxu0 0.0
    %v2587 = vand.u32 %v1226, 4294901760
    %v2588 = vsub.f32 %v1226, %v2587
    %v2589 = vand.u32 %v2588, 4294901760
    %2590 = vmatmul.mubr.f32.gmra.mrb[0].mxu0 %v2589
    %v2591 = vpop.f32.mrb[0].mxu0
    %v2592 = vadd.f32 %v2259, %v2591
    %v2593 = vpop.f32.mrb[0].mxu0
    %2594 = vmatprep.mubr.f32.mxu0 0.0
    %v2595 = vand.u32 %v1227, 4294901760
    %v2596 = vsub.f32 %v1227, %v2595
    %v2597 = vand.u32 %v2596, 4294901760
    %2598 = vmatmul.mubr.f32.gmra.mrb[0].mxu0 %v2597
    %v2599 = vpop.f32.mrb[0].mxu0
    %v2600 = vadd.f32 %v2266, %v2599
    %v2601 = vpop.f32.mrb[0].mxu0
    %2602 = vmatprep.mubr.f32.mxu0 0.0
    %v2603 = vand.u32 %v1228, 4294901760
    %v2604 = vsub.f32 %v1228, %v2603
    %v2605 = vand.u32 %v2604, 4294901760
    %2606 = vmatmul.mubr.f32.gmra.mrb[0].mxu0 %v2605
    %v2607 = vpop.f32.mrb[0].mxu0
    %v2608 = vadd.f32 %v2273, %v2607
    %v2609 = vpop.f32.mrb[0].mxu0
    %2610 = vmatprep.mubr.f32.mxu0 0.0
    %v2611 = vand.u32 %v1229, 4294901760
    %v2612 = vsub.f32 %v1229, %v2611
    %v2613 = vand.u32 %v2612, 4294901760
    %2614 = vmatmul.mubr.f32.gmra.mrb[0].mxu0 %v2613
    %v2615 = vpop.f32.mrb[0].mxu0
    %v2616 = vadd.f32 %v2280, %v2615
    %v2617 = vpop.f32.mrb[0].mxu0
    %2618 = vmatprep.mubr.f32.mxu0 0.0
    %v2619 = vand.u32 %v1230, 4294901760
    %v2620 = vsub.f32 %v1230, %v2619
    %v2621 = vand.u32 %v2620, 4294901760
    %2622 = vmatmul.mubr.f32.gmra.mrb[0].mxu0 %v2621
    %v2623 = vpop.f32.mrb[0].mxu0
    %v2624 = vadd.f32 %v2287, %v2623
    %v2625 = vpop.f32.mrb[0].mxu0
    %2626 = vdwg.mxu0
    %2627 = vmatprep.subr.mxu0 0.0
    %v2628 = vand.u32 %v1106, 4294901760
    %v2629 = vsub.f32 %v1106, %v2628
    %v2630 = vand.u32 %v2629, 4294901760
    %2631 = vmatpush1.msra.mxu0 %v2630
    %2632 = vmatprep.subr.mxu0 0.0
    %v2633 = vand.u32 %v1112, 4294901760
    %v2634 = vsub.f32 %v1112, %v2633
    %v2635 = vand.u32 %v2634, 4294901760
    %2636 = vmatpush1.msra.mxu0 %v2635
    %2637 = vmatprep.subr.mxu0 0.0
    %v2638 = vand.u32 %v1118, 4294901760
    %v2639 = vsub.f32 %v1118, %v2638
    %v2640 = vand.u32 %v2639, 4294901760
    %2641 = vmatpush1.msra.mxu0 %v2640
    %2642 = vmatprep.subr.mxu0 0.0
    %v2643 = vand.u32 %v1124, 4294901760
    %v2644 = vsub.f32 %v1124, %v2643
    %v2645 = vand.u32 %v2644, 4294901760
    %2646 = vmatpush1.msra.mxu0 %v2645
    %2647 = vmatprep.subr.mxu0 0.0
    %v2648 = vand.u32 %v1130, 4294901760
    %v2649 = vsub.f32 %v1130, %v2648
    %v2650 = vand.u32 %v2649, 4294901760
    %2651 = vmatpush1.msra.mxu0 %v2650
    %2652 = vmatprep.subr.mxu0 0.0
    %v2653 = vand.u32 %v1136, 4294901760
    %v2654 = vsub.f32 %v1136, %v2653
    %v2655 = vand.u32 %v2654, 4294901760
    %2656 = vmatpush1.msra.mxu0 %v2655
    %2657 = vmatprep.subr.mxu0 0.0
    %v2658 = vand.u32 %v1142, 4294901760
    %v2659 = vsub.f32 %v1142, %v2658
    %v2660 = vand.u32 %v2659, 4294901760
    %2661 = vmatpush1.msra.mxu0 %v2660
    %2662 = vmatprep.subr.mxu0 0.0
    %v2663 = vand.u32 %v1148, 4294901760
    %v2664 = vsub.f32 %v1148, %v2663
    %v2665 = vand.u32 %v2664, 4294901760
    %2666 = vmatpush1.msra.mxu0 %v2665
    %2667 = vmatprep.subr.mxu0 0.0
    %v2668 = vand.u32 %v1154, 4294901760
    %v2669 = vsub.f32 %v1154, %v2668
    %v2670 = vand.u32 %v2669, 4294901760
    %2671 = vmatpush1.msra.mxu0 %v2670
    %2672 = vmatprep.subr.mxu0 0.0
    %v2673 = vand.u32 %v1160, 4294901760
    %v2674 = vsub.f32 %v1160, %v2673
    %v2675 = vand.u32 %v2674, 4294901760
    %2676 = vmatpush1.msra.mxu0 %v2675
    %2677 = vmatprep.subr.mxu0 0.0
    %v2678 = vand.u32 %v1166, 4294901760
    %v2679 = vsub.f32 %v1166, %v2678
    %v2680 = vand.u32 %v2679, 4294901760
    %2681 = vmatpush1.msra.mxu0 %v2680
    %2682 = vmatprep.subr.mxu0 0.0
    %v2683 = vand.u32 %v1172, 4294901760
    %v2684 = vsub.f32 %v1172, %v2683
    %v2685 = vand.u32 %v2684, 4294901760
    %2686 = vmatpush1.msra.mxu0 %v2685
    %2687 = vmatprep.subr.mxu0 0.0
    %v2688 = vand.u32 %v1178, 4294901760
    %v2689 = vsub.f32 %v1178, %v2688
    %v2690 = vand.u32 %v2689, 4294901760
    %2691 = vmatpush1.msra.mxu0 %v2690
    %2692 = vmatprep.subr.mxu0 0.0
    %v2693 = vand.u32 %v1184, 4294901760
    %v2694 = vsub.f32 %v1184, %v2693
    %v2695 = vand.u32 %v2694, 4294901760
    %2696 = vmatpush1.msra.mxu0 %v2695
    %2697 = vmatprep.subr.mxu0 0.0
    %v2698 = vand.u32 %v1190, 4294901760
    %v2699 = vsub.f32 %v1190, %v2698
    %v2700 = vand.u32 %v2699, 4294901760
    %2701 = vmatpush1.msra.mxu0 %v2700
    %2702 = vmatprep.subr.mxu0 0.0
    %v2703 = vand.u32 %v1196, 4294901760
    %v2704 = vsub.f32 %v1196, %v2703
    %v2705 = vand.u32 %v2704, 4294901760
    %2706 = vmatpush1.msra.mxu0 %v2705
    %2707 = vmatprep.subr.mxu0 0.0
    %2708 = vmatpush1.msra.mxu0 0.0
    %2709 = vmatprep.subr.mxu0 0.0
    %2710 = vmatpush1.msra.mxu0 0.0
    %2711 = vmatprep.subr.mxu0 0.0
    %2712 = vmatpush1.msra.mxu0 0.0
    %2713 = vmatprep.subr.mxu0 0.0
    %2714 = vmatpush1.msra.mxu0 0.0
    %2715 = vmatprep.subr.mxu0 0.0
    %2716 = vmatpush1.msra.mxu0 0.0
    %2717 = vmatprep.subr.mxu0 0.0
    %2718 = vmatpush1.msra.mxu0 0.0
    %2719 = vmatprep.subr.mxu0 0.0
    %2720 = vmatpush1.msra.mxu0 0.0
    %2721 = vmatprep.subr.mxu0 0.0
    %2722 = vmatpush1.msra.mxu0 0.0
    %2723 = vmatprep.subr.mxu0 0.0
    %2724 = vmatpush1.msra.mxu0 0.0
    %2725 = vmatprep.subr.mxu0 0.0
    %2726 = vmatpush1.msra.mxu0 0.0
    %2727 = vmatprep.subr.mxu0 0.0
    %2728 = vmatpush1.msra.mxu0 0.0
    %2729 = vmatprep.subr.mxu0 0.0
    %2730 = vmatpush1.msra.mxu0 0.0
    %2731 = vmatprep.subr.mxu0 0.0
    %2732 = vmatpush1.msra.mxu0 0.0
    %2733 = vmatprep.subr.mxu0 0.0
    %2734 = vmatpush1.msra.mxu0 0.0
    %2735 = vmatprep.subr.mxu0 0.0
    %2736 = vmatpush1.msra.mxu0 0.0
    %2737 = vmatprep.subr.mxu0 0.0
    %2738 = vmatpush1.msra.mxu0 0.0
    %2739 = vmatprep.mubr.f32.mxu0 0.0
    %v2740 = vand.u32 %v1199, 4294901760
    %2741 = vmatmul.mubr.f32.gmra.mrb[0].mxu0 %v2740
    %v2742 = vpop.f32.mrb[0].mxu0
    %v2743 = vadd.f32 %v2376, %v2742
    %v2744 = vpop.f32.mrb[0].mxu0
    %2745 = vmatprep.mubr.f32.mxu0 0.0
    %v2746 = vand.u32 %v1200, 4294901760
    %2747 = vmatmul.mubr.f32.gmra.mrb[0].mxu0 %v2746
    %v2748 = vpop.f32.mrb[0].mxu0
    %v2749 = vadd.f32 %v2384, %v2748
    %v2750 = vpop.f32.mrb[0].mxu0
    %2751 = vmatprep.mubr.f32.mxu0 0.0
    %v2752 = vand.u32 %v1201, 4294901760
    %2753 = vmatmul.mubr.f32.gmra.mrb[0].mxu0 %v2752
    %v2754 = vpop.f32.mrb[0].mxu0
    %v2755 = vadd.f32 %v2392, %v2754
    %v2756 = vpop.f32.mrb[0].mxu0
    %2757 = vmatprep.mubr.f32.mxu0 0.0
    %v2758 = vand.u32 %v1202, 4294901760
    %2759 = vmatmul.mubr.f32.gmra.mrb[0].mxu0 %v2758
    %v2760 = vpop.f32.mrb[0].mxu0
    %v2761 = vadd.f32 %v2400, %v2760
    %v2762 = vpop.f32.mrb[0].mxu0
    %2763 = vmatprep.mubr.f32.mxu0 0.0
    %v2764 = vand.u32 %v1203, 4294901760
    %2765 = vmatmul.mubr.f32.gmra.mrb[0].mxu0 %v2764
    %v2766 = vpop.f32.mrb[0].mxu0
    %v2767 = vadd.f32 %v2408, %v2766
    %v2768 = vpop.f32.mrb[0].mxu0
    %2769 = vmatprep.mubr.f32.mxu0 0.0
    %v2770 = vand.u32 %v1204, 4294901760
    %2771 = vmatmul.mubr.f32.gmra.mrb[0].mxu0 %v2770
    %v2772 = vpop.f32.mrb[0].mxu0
    %v2773 = vadd.f32 %v2416, %v2772
    %v2774 = vpop.f32.mrb[0].mxu0
    %2775 = vmatprep.mubr.f32.mxu0 0.0
    %v2776 = vand.u32 %v1205, 4294901760
    %2777 = vmatmul.mubr.f32.gmra.mrb[0].mxu0 %v2776
    %v2778 = vpop.f32.mrb[0].mxu0
    %v2779 = vadd.f32 %v2424, %v2778
    %v2780 = vpop.f32.mrb[0].mxu0
    %2781 = vmatprep.mubr.f32.mxu0 0.0
    %v2782 = vand.u32 %v1206, 4294901760
    %2783 = vmatmul.mubr.f32.gmra.mrb[0].mxu0 %v2782
    %v2784 = vpop.f32.mrb[0].mxu0
    %v2785 = vadd.f32 %v2432, %v2784
    %v2786 = vpop.f32.mrb[0].mxu0
    %2787 = vmatprep.mubr.f32.mxu0 0.0
    %v2788 = vand.u32 %v1207, 4294901760
    %2789 = vmatmul.mubr.f32.gmra.mrb[0].mxu0 %v2788
    %v2790 = vpop.f32.mrb[0].mxu0
    %v2791 = vadd.f32 %v2440, %v2790
    %v2792 = vpop.f32.mrb[0].mxu0
    %2793 = vmatprep.mubr.f32.mxu0 0.0
    %v2794 = vand.u32 %v1208, 4294901760
    %2795 = vmatmul.mubr.f32.gmra.mrb[0].mxu0 %v2794
    %v2796 = vpop.f32.mrb[0].mxu0
    %v2797 = vadd.f32 %v2448, %v2796
    %v2798 = vpop.f32.mrb[0].mxu0
    %2799 = vmatprep.mubr.f32.mxu0 0.0
    %v2800 = vand.u32 %v1209, 4294901760
    %2801 = vmatmul.mubr.f32.gmra.mrb[0].mxu0 %v2800
    %v2802 = vpop.f32.mrb[0].mxu0
    %v2803 = vadd.f32 %v2456, %v2802
    %v2804 = vpop.f32.mrb[0].mxu0
    %2805 = vmatprep.mubr.f32.mxu0 0.0
    %v2806 = vand.u32 %v1210, 4294901760
    %2807 = vmatmul.mubr.f32.gmra.mrb[0].mxu0 %v2806
    %v2808 = vpop.f32.mrb[0].mxu0
    %v2809 = vadd.f32 %v2464, %v2808
    %v2810 = vpop.f32.mrb[0].mxu0
    %2811 = vmatprep.mubr.f32.mxu0 0.0
    %v2812 = vand.u32 %v1211, 4294901760
    %2813 = vmatmul.mubr.f32.gmra.mrb[0].mxu0 %v2812
    %v2814 = vpop.f32.mrb[0].mxu0
    %v2815 = vadd.f32 %v2472, %v2814
    %v2816 = vpop.f32.mrb[0].mxu0
    %2817 = vmatprep.mubr.f32.mxu0 0.0
    %v2818 = vand.u32 %v1212, 4294901760
    %2819 = vmatmul.mubr.f32.gmra.mrb[0].mxu0 %v2818
    %v2820 = vpop.f32.mrb[0].mxu0
    %v2821 = vadd.f32 %v2480, %v2820
    %v2822 = vpop.f32.mrb[0].mxu0
    %2823 = vmatprep.mubr.f32.mxu0 0.0
    %v2824 = vand.u32 %v1213, 4294901760
    %2825 = vmatmul.mubr.f32.gmra.mrb[0].mxu0 %v2824
    %v2826 = vpop.f32.mrb[0].mxu0
    %v2827 = vadd.f32 %v2488, %v2826
    %v2828 = vpop.f32.mrb[0].mxu0
    %2829 = vmatprep.mubr.f32.mxu0 0.0
    %v2830 = vand.u32 %v1214, 4294901760
    %2831 = vmatmul.mubr.f32.gmra.mrb[0].mxu0 %v2830
    %v2832 = vpop.f32.mrb[0].mxu0
    %v2833 = vadd.f32 %v2496, %v2832
    %v2834 = vpop.f32.mrb[0].mxu0
    %2835 = vmatprep.mubr.f32.mxu0 0.0
    %v2836 = vand.u32 %v1215, 4294901760
    %2837 = vmatmul.mubr.f32.gmra.mrb[0].mxu0 %v2836
    %v2838 = vpop.f32.mrb[0].mxu0
    %v2839 = vadd.f32 %v2504, %v2838
    %v2840 = vpop.f32.mrb[0].mxu0
    %2841 = vmatprep.mubr.f32.mxu0 0.0
    %v2842 = vand.u32 %v1216, 4294901760
    %2843 = vmatmul.mubr.f32.gmra.mrb[0].mxu0 %v2842
    %v2844 = vpop.f32.mrb[0].mxu0
    %v2845 = vadd.f32 %v2512, %v2844
    %v2846 = vpop.f32.mrb[0].mxu0
    %2847 = vmatprep.mubr.f32.mxu0 0.0
    %v2848 = vand.u32 %v1217, 4294901760
    %2849 = vmatmul.mubr.f32.gmra.mrb[0].mxu0 %v2848
    %v2850 = vpop.f32.mrb[0].mxu0
    %v2851 = vadd.f32 %v2520, %v2850
    %v2852 = vpop.f32.mrb[0].mxu0
    %2853 = vmatprep.mubr.f32.mxu0 0.0
    %v2854 = vand.u32 %v1218, 4294901760
    %2855 = vmatmul.mubr.f32.gmra.mrb[0].mxu0 %v2854
    %v2856 = vpop.f32.mrb[0].mxu0
    %v2857 = vadd.f32 %v2528, %v2856
    %v2858 = vpop.f32.mrb[0].mxu0
    %2859 = vmatprep.mubr.f32.mxu0 0.0
    %v2860 = vand.u32 %v1219, 4294901760
    %2861 = vmatmul.mubr.f32.gmra.mrb[0].mxu0 %v2860
    %v2862 = vpop.f32.mrb[0].mxu0
    %v2863 = vadd.f32 %v2536, %v2862
    %v2864 = vpop.f32.mrb[0].mxu0
    %2865 = vmatprep.mubr.f32.mxu0 0.0
    %v2866 = vand.u32 %v1220, 4294901760
    %2867 = vmatmul.mubr.f32.gmra.mrb[0].mxu0 %v2866
    %v2868 = vpop.f32.mrb[0].mxu0
    %v2869 = vadd.f32 %v2544, %v2868
    %v2870 = vpop.f32.mrb[0].mxu0
    %2871 = vmatprep.mubr.f32.mxu0 0.0
    %v2872 = vand.u32 %v1221, 4294901760
    %2873 = vmatmul.mubr.f32.gmra.mrb[0].mxu0 %v2872
    %v2874 = vpop.f32.mrb[0].mxu0
    %v2875 = vadd.f32 %v2552, %v2874
    %v2876 = vpop.f32.mrb[0].mxu0
    %2877 = vmatprep.mubr.f32.mxu0 0.0
    %v2878 = vand.u32 %v1222, 4294901760
    %2879 = vmatmul.mubr.f32.gmra.mrb[0].mxu0 %v2878
    %v2880 = vpop.f32.mrb[0].mxu0
    %v2881 = vadd.f32 %v2560, %v2880
    %v2882 = vpop.f32.mrb[0].mxu0
    %2883 = vmatprep.mubr.f32.mxu0 0.0
    %v2884 = vand.u32 %v1223, 4294901760
    %2885 = vmatmul.mubr.f32.gmra.mrb[0].mxu0 %v2884
    %v2886 = vpop.f32.mrb[0].mxu0
    %v2887 = vadd.f32 %v2568, %v2886
    %v2888 = vpop.f32.mrb[0].mxu0
    %2889 = vmatprep.mubr.f32.mxu0 0.0
    %v2890 = vand.u32 %v1224, 4294901760
    %2891 = vmatmul.mubr.f32.gmra.mrb[0].mxu0 %v2890
    %v2892 = vpop.f32.mrb[0].mxu0
    %v2893 = vadd.f32 %v2576, %v2892
    %v2894 = vpop.f32.mrb[0].mxu0
    %2895 = vmatprep.mubr.f32.mxu0 0.0
    %v2896 = vand.u32 %v1225, 4294901760
    %2897 = vmatmul.mubr.f32.gmra.mrb[0].mxu0 %v2896
    %v2898 = vpop.f32.mrb[0].mxu0
    %v2899 = vadd.f32 %v2584, %v2898
    %v2900 = vpop.f32.mrb[0].mxu0
    %2901 = vmatprep.mubr.f32.mxu0 0.0
    %v2902 = vand.u32 %v1226, 4294901760
    %2903 = vmatmul.mubr.f32.gmra.mrb[0].mxu0 %v2902
    %v2904 = vpop.f32.mrb[0].mxu0
    %v2905 = vadd.f32 %v2592, %v2904
    %v2906 = vpop.f32.mrb[0].mxu0
    %2907 = vmatprep.mubr.f32.mxu0 0.0
    %v2908 = vand.u32 %v1227, 4294901760
    %2909 = vmatmul.mubr.f32.gmra.mrb[0].mxu0 %v2908
    %v2910 = vpop.f32.mrb[0].mxu0
    %v2911 = vadd.f32 %v2600, %v2910
    %v2912 = vpop.f32.mrb[0].mxu0
    %2913 = vmatprep.mubr.f32.mxu0 0.0
    %v2914 = vand.u32 %v1228, 4294901760
    %2915 = vmatmul.mubr.f32.gmra.mrb[0].mxu0 %v2914
    %v2916 = vpop.f32.mrb[0].mxu0
    %v2917 = vadd.f32 %v2608, %v2916
    %v2918 = vpop.f32.mrb[0].mxu0
    %2919 = vmatprep.mubr.f32.mxu0 0.0
    %v2920 = vand.u32 %v1229, 4294901760
    %2921 = vmatmul.mubr.f32.gmra.mrb[0].mxu0 %v2920
    %v2922 = vpop.f32.mrb[0].mxu0
    %v2923 = vadd.f32 %v2616, %v2922
    %v2924 = vpop.f32.mrb[0].mxu0
    %2925 = vmatprep.mubr.f32.mxu0 0.0
    %v2926 = vand.u32 %v1230, 4294901760
    %2927 = vmatmul.mubr.f32.gmra.mrb[0].mxu0 %v2926
    %v2928 = vpop.f32.mrb[0].mxu0
    %v2929 = vadd.f32 %v2624, %v2928
    %v2930 = vpop.f32.mrb[0].mxu0
    %2931 = vdwg.mxu0
    %2932 = vmatprep.subr.mxu0 0.0
    %v2933 = vand.u32 %v1106, 4294901760
    %2934 = vmatpush1.msra.mxu0 %v2933
    %2935 = vmatprep.subr.mxu0 0.0
    %v2936 = vand.u32 %v1112, 4294901760
    %2937 = vmatpush1.msra.mxu0 %v2936
    %2938 = vmatprep.subr.mxu0 0.0
    %v2939 = vand.u32 %v1118, 4294901760
    %2940 = vmatpush1.msra.mxu0 %v2939
    %2941 = vmatprep.subr.mxu0 0.0
    %v2942 = vand.u32 %v1124, 4294901760
    %2943 = vmatpush1.msra.mxu0 %v2942
    %2944 = vmatprep.subr.mxu0 0.0
    %v2945 = vand.u32 %v1130, 4294901760
    %2946 = vmatpush1.msra.mxu0 %v2945
    %2947 = vmatprep.subr.mxu0 0.0
    %v2948 = vand.u32 %v1136, 4294901760
    %2949 = vmatpush1.msra.mxu0 %v2948
    %2950 = vmatprep.subr.mxu0 0.0
    %v2951 = vand.u32 %v1142, 4294901760
    %2952 = vmatpush1.msra.mxu0 %v2951
    %2953 = vmatprep.subr.mxu0 0.0
    %v2954 = vand.u32 %v1148, 4294901760
    %2955 = vmatpush1.msra.mxu0 %v2954
    %2956 = vmatprep.subr.mxu0 0.0
    %v2957 = vand.u32 %v1154, 4294901760
    %2958 = vmatpush1.msra.mxu0 %v2957
    %2959 = vmatprep.subr.mxu0 0.0
    %v2960 = vand.u32 %v1160, 4294901760
    %2961 = vmatpush1.msra.mxu0 %v2960
    %2962 = vmatprep.subr.mxu0 0.0
    %v2963 = vand.u32 %v1166, 4294901760
    %2964 = vmatpush1.msra.mxu0 %v2963
    %2965 = vmatprep.subr.mxu0 0.0
    %v2966 = vand.u32 %v1172, 4294901760
    %2967 = vmatpush1.msra.mxu0 %v2966
    %2968 = vmatprep.subr.mxu0 0.0
    %v2969 = vand.u32 %v1178, 4294901760
    %2970 = vmatpush1.msra.mxu0 %v2969
    %2971 = vmatprep.subr.mxu0 0.0
    %v2972 = vand.u32 %v1184, 4294901760
    %2973 = vmatpush1.msra.mxu0 %v2972
    %2974 = vmatprep.subr.mxu0 0.0
    %v2975 = vand.u32 %v1190, 4294901760
    %2976 = vmatpush1.msra.mxu0 %v2975
    %2977 = vmatprep.subr.mxu0 0.0
    %v2978 = vand.u32 %v1196, 4294901760
    %2979 = vmatpush1.msra.mxu0 %v2978
    %2980 = vmatprep.subr.mxu0 0.0
    %2981 = vmatpush1.msra.mxu0 0.0
    %2982 = vmatprep.subr.mxu0 0.0
    %2983 = vmatpush1.msra.mxu0 0.0
    %2984 = vmatprep.subr.mxu0 0.0
    %2985 = vmatpush1.msra.mxu0 0.0
    %2986 = vmatprep.subr.mxu0 0.0
    %2987 = vmatpush1.msra.mxu0 0.0
    %2988 = vmatprep.subr.mxu0 0.0
    %2989 = vmatpush1.msra.mxu0 0.0
    %2990 = vmatprep.subr.mxu0 0.0
    %2991 = vmatpush1.msra.mxu0 0.0
    %2992 = vmatprep.subr.mxu0 0.0
    %2993 = vmatpush1.msra.mxu0 0.0
    %2994 = vmatprep.subr.mxu0 0.0
    %2995 = vmatpush1.msra.mxu0 0.0
    %2996 = vmatprep.subr.mxu0 0.0
    %2997 = vmatpush1.msra.mxu0 0.0
    %2998 = vmatprep.subr.mxu0 0.0
    %2999 = vmatpush1.msra.mxu0 0.0
    %3000 = vmatprep.subr.mxu0 0.0
    %3001 = vmatpush1.msra.mxu0 0.0
    %3002 = vmatprep.subr.mxu0 0.0
    %3003 = vmatpush1.msra.mxu0 0.0
    %3004 = vmatprep.subr.mxu0 0.0
    %3005 = vmatpush1.msra.mxu0 0.0
    %3006 = vmatprep.subr.mxu0 0.0
    %3007 = vmatpush1.msra.mxu0 0.0
    %3008 = vmatprep.subr.mxu0 0.0
    %3009 = vmatpush1.msra.mxu0 0.0
    %3010 = vmatprep.subr.mxu0 0.0
    %3011 = vmatpush1.msra.mxu0 0.0
    %3012 = vmatprep.mubr.f32.mxu0 0.0
    %v3013 = vand.u32 %v1199, 4294901760
    %3014 = vmatmul.mubr.f32.gmra.mrb[0].mxu0 %v3013
    %v3015 = vpop.f32.mrb[0].mxu0
    %v3016 = vadd.f32 %v2743, %v3015
    %v3017 = vpop.f32.mrb[0].mxu0
    %3018 = vmatprep.mubr.f32.mxu0 0.0
    %v3019 = vand.u32 %v1200, 4294901760
    %3020 = vmatmul.mubr.f32.gmra.mrb[0].mxu0 %v3019
    %v3021 = vpop.f32.mrb[0].mxu0
    %v3022 = vadd.f32 %v2749, %v3021
    %v3023 = vpop.f32.mrb[0].mxu0
    %3024 = vmatprep.mubr.f32.mxu0 0.0
    %v3025 = vand.u32 %v1201, 4294901760
    %3026 = vmatmul.mubr.f32.gmra.mrb[0].mxu0 %v3025
    %v3027 = vpop.f32.mrb[0].mxu0
    %v3028 = vadd.f32 %v2755, %v3027
    %v3029 = vpop.f32.mrb[0].mxu0
    %3030 = vmatprep.mubr.f32.mxu0 0.0
    %v3031 = vand.u32 %v1202, 4294901760
    %3032 = vmatmul.mubr.f32.gmra.mrb[0].mxu0 %v3031
    %v3033 = vpop.f32.mrb[0].mxu0
    %v3034 = vadd.f32 %v2761, %v3033
    %v3035 = vpop.f32.mrb[0].mxu0
    %3036 = vmatprep.mubr.f32.mxu0 0.0
    %v3037 = vand.u32 %v1203, 4294901760
    %3038 = vmatmul.mubr.f32.gmra.mrb[0].mxu0 %v3037
    %v3039 = vpop.f32.mrb[0].mxu0
    %v3040 = vadd.f32 %v2767, %v3039
    %v3041 = vpop.f32.mrb[0].mxu0
    %3042 = vmatprep.mubr.f32.mxu0 0.0
    %v3043 = vand.u32 %v1204, 4294901760
    %3044 = vmatmul.mubr.f32.gmra.mrb[0].mxu0 %v3043
    %v3045 = vpop.f32.mrb[0].mxu0
    %v3046 = vadd.f32 %v2773, %v3045
    %v3047 = vpop.f32.mrb[0].mxu0
    %3048 = vmatprep.mubr.f32.mxu0 0.0
    %v3049 = vand.u32 %v1205, 4294901760
    %3050 = vmatmul.mubr.f32.gmra.mrb[0].mxu0 %v3049
    %v3051 = vpop.f32.mrb[0].mxu0
    %v3052 = vadd.f32 %v2779, %v3051
    %v3053 = vpop.f32.mrb[0].mxu0
    %3054 = vmatprep.mubr.f32.mxu0 0.0
    %v3055 = vand.u32 %v1206, 4294901760
    %3056 = vmatmul.mubr.f32.gmra.mrb[0].mxu0 %v3055
    %v3057 = vpop.f32.mrb[0].mxu0
    %v3058 = vadd.f32 %v2785, %v3057
    %v3059 = vpop.f32.mrb[0].mxu0
    %3060 = vmatprep.mubr.f32.mxu0 0.0
    %v3061 = vand.u32 %v1207, 4294901760
    %3062 = vmatmul.mubr.f32.gmra.mrb[0].mxu0 %v3061
    %v3063 = vpop.f32.mrb[0].mxu0
    %v3064 = vadd.f32 %v2791, %v3063
    %v3065 = vpop.f32.mrb[0].mxu0
    %3066 = vmatprep.mubr.f32.mxu0 0.0
    %v3067 = vand.u32 %v1208, 4294901760
    %3068 = vmatmul.mubr.f32.gmra.mrb[0].mxu0 %v3067
    %v3069 = vpop.f32.mrb[0].mxu0
    %v3070 = vadd.f32 %v2797, %v3069
    %v3071 = vpop.f32.mrb[0].mxu0
    %3072 = vmatprep.mubr.f32.mxu0 0.0
    %v3073 = vand.u32 %v1209, 4294901760
    %3074 = vmatmul.mubr.f32.gmra.mrb[0].mxu0 %v3073
    %v3075 = vpop.f32.mrb[0].mxu0
    %v3076 = vadd.f32 %v2803, %v3075
    %v3077 = vpop.f32.mrb[0].mxu0
    %3078 = vmatprep.mubr.f32.mxu0 0.0
    %v3079 = vand.u32 %v1210, 4294901760
    %3080 = vmatmul.mubr.f32.gmra.mrb[0].mxu0 %v3079
    %v3081 = vpop.f32.mrb[0].mxu0
    %v3082 = vadd.f32 %v2809, %v3081
    %v3083 = vpop.f32.mrb[0].mxu0
    %3084 = vmatprep.mubr.f32.mxu0 0.0
    %v3085 = vand.u32 %v1211, 4294901760
    %3086 = vmatmul.mubr.f32.gmra.mrb[0].mxu0 %v3085
    %v3087 = vpop.f32.mrb[0].mxu0
    %v3088 = vadd.f32 %v2815, %v3087
    %v3089 = vpop.f32.mrb[0].mxu0
    %3090 = vmatprep.mubr.f32.mxu0 0.0
    %v3091 = vand.u32 %v1212, 4294901760
    %3092 = vmatmul.mubr.f32.gmra.mrb[0].mxu0 %v3091
    %v3093 = vpop.f32.mrb[0].mxu0
    %v3094 = vadd.f32 %v2821, %v3093
    %v3095 = vpop.f32.mrb[0].mxu0
    %3096 = vmatprep.mubr.f32.mxu0 0.0
    %v3097 = vand.u32 %v1213, 4294901760
    %3098 = vmatmul.mubr.f32.gmra.mrb[0].mxu0 %v3097
    %v3099 = vpop.f32.mrb[0].mxu0
    %v3100 = vadd.f32 %v2827, %v3099
    %v3101 = vpop.f32.mrb[0].mxu0
    %3102 = vmatprep.mubr.f32.mxu0 0.0
    %v3103 = vand.u32 %v1214, 4294901760
    %3104 = vmatmul.mubr.f32.gmra.mrb[0].mxu0 %v3103
    %v3105 = vpop.f32.mrb[0].mxu0
    %v3106 = vadd.f32 %v2833, %v3105
    %v3107 = vpop.f32.mrb[0].mxu0
    %3108 = vmatprep.mubr.f32.mxu0 0.0
    %v3109 = vand.u32 %v1215, 4294901760
    %3110 = vmatmul.mubr.f32.gmra.mrb[0].mxu0 %v3109
    %v3111 = vpop.f32.mrb[0].mxu0
    %v3112 = vadd.f32 %v2839, %v3111
    %v3113 = vpop.f32.mrb[0].mxu0
    %3114 = vmatprep.mubr.f32.mxu0 0.0
    %v3115 = vand.u32 %v1216, 4294901760
    %3116 = vmatmul.mubr.f32.gmra.mrb[0].mxu0 %v3115
    %v3117 = vpop.f32.mrb[0].mxu0
    %v3118 = vadd.f32 %v2845, %v3117
    %v3119 = vpop.f32.mrb[0].mxu0
    %3120 = vmatprep.mubr.f32.mxu0 0.0
    %v3121 = vand.u32 %v1217, 4294901760
    %3122 = vmatmul.mubr.f32.gmra.mrb[0].mxu0 %v3121
    %v3123 = vpop.f32.mrb[0].mxu0
    %v3124 = vadd.f32 %v2851, %v3123
    %v3125 = vpop.f32.mrb[0].mxu0
    %3126 = vmatprep.mubr.f32.mxu0 0.0
    %v3127 = vand.u32 %v1218, 4294901760
    %3128 = vmatmul.mubr.f32.gmra.mrb[0].mxu0 %v3127
    %v3129 = vpop.f32.mrb[0].mxu0
    %v3130 = vadd.f32 %v2857, %v3129
    %v3131 = vpop.f32.mrb[0].mxu0
    %3132 = vmatprep.mubr.f32.mxu0 0.0
    %v3133 = vand.u32 %v1219, 4294901760
    %3134 = vmatmul.mubr.f32.gmra.mrb[0].mxu0 %v3133
    %v3135 = vpop.f32.mrb[0].mxu0
    %v3136 = vadd.f32 %v2863, %v3135
    %v3137 = vpop.f32.mrb[0].mxu0
    %3138 = vmatprep.mubr.f32.mxu0 0.0
    %v3139 = vand.u32 %v1220, 4294901760
    %3140 = vmatmul.mubr.f32.gmra.mrb[0].mxu0 %v3139
    %v3141 = vpop.f32.mrb[0].mxu0
    %v3142 = vadd.f32 %v2869, %v3141
    %v3143 = vpop.f32.mrb[0].mxu0
    %3144 = vmatprep.mubr.f32.mxu0 0.0
    %v3145 = vand.u32 %v1221, 4294901760
    %3146 = vmatmul.mubr.f32.gmra.mrb[0].mxu0 %v3145
    %v3147 = vpop.f32.mrb[0].mxu0
    %v3148 = vadd.f32 %v2875, %v3147
    %v3149 = vpop.f32.mrb[0].mxu0
    %3150 = vmatprep.mubr.f32.mxu0 0.0
    %v3151 = vand.u32 %v1222, 4294901760
    %3152 = vmatmul.mubr.f32.gmra.mrb[0].mxu0 %v3151
    %v3153 = vpop.f32.mrb[0].mxu0
    %v3154 = vadd.f32 %v2881, %v3153
    %v3155 = vpop.f32.mrb[0].mxu0
    %3156 = vmatprep.mubr.f32.mxu0 0.0
    %v3157 = vand.u32 %v1223, 4294901760
    %3158 = vmatmul.mubr.f32.gmra.mrb[0].mxu0 %v3157
    %v3159 = vpop.f32.mrb[0].mxu0
    %v3160 = vadd.f32 %v2887, %v3159
    %v3161 = vpop.f32.mrb[0].mxu0
    %3162 = vmatprep.mubr.f32.mxu0 0.0
    %v3163 = vand.u32 %v1224, 4294901760
    %3164 = vmatmul.mubr.f32.gmra.mrb[0].mxu0 %v3163
    %v3165 = vpop.f32.mrb[0].mxu0
    %v3166 = vadd.f32 %v2893, %v3165
    %v3167 = vpop.f32.mrb[0].mxu0
    %3168 = vmatprep.mubr.f32.mxu0 0.0
    %v3169 = vand.u32 %v1225, 4294901760
    %3170 = vmatmul.mubr.f32.gmra.mrb[0].mxu0 %v3169
    %v3171 = vpop.f32.mrb[0].mxu0
    %v3172 = vadd.f32 %v2899, %v3171
    %v3173 = vpop.f32.mrb[0].mxu0
    %3174 = vmatprep.mubr.f32.mxu0 0.0
    %v3175 = vand.u32 %v1226, 4294901760
    %3176 = vmatmul.mubr.f32.gmra.mrb[0].mxu0 %v3175
    %v3177 = vpop.f32.mrb[0].mxu0
    %v3178 = vadd.f32 %v2905, %v3177
    %v3179 = vpop.f32.mrb[0].mxu0
    %3180 = vmatprep.mubr.f32.mxu0 0.0
    %v3181 = vand.u32 %v1227, 4294901760
    %3182 = vmatmul.mubr.f32.gmra.mrb[0].mxu0 %v3181
    %v3183 = vpop.f32.mrb[0].mxu0
    %v3184 = vadd.f32 %v2911, %v3183
    %v3185 = vpop.f32.mrb[0].mxu0
    %3186 = vmatprep.mubr.f32.mxu0 0.0
    %v3187 = vand.u32 %v1228, 4294901760
    %3188 = vmatmul.mubr.f32.gmra.mrb[0].mxu0 %v3187
    %v3189 = vpop.f32.mrb[0].mxu0
    %v3190 = vadd.f32 %v2917, %v3189
    %v3191 = vpop.f32.mrb[0].mxu0
    %3192 = vmatprep.mubr.f32.mxu0 0.0
    %v3193 = vand.u32 %v1229, 4294901760
    %3194 = vmatmul.mubr.f32.gmra.mrb[0].mxu0 %v3193
    %v3195 = vpop.f32.mrb[0].mxu0
    %v3196 = vadd.f32 %v2923, %v3195
    %v3197 = vpop.f32.mrb[0].mxu0
    %3198 = vmatprep.mubr.f32.mxu0 0.0
    %v3199 = vand.u32 %v1230, 4294901760
    %3200 = vmatmul.mubr.f32.gmra.mrb[0].mxu0 %v3199
    %v3201 = vpop.f32.mrb[0].mxu0
    %v3202 = vadd.f32 %v2929, %v3201
    %v3203 = vpop.f32.mrb[0].mxu0
    %3204 = vdwg.mxu0
    %vm3205 = vcmask 261120
    %3206 = vst.msk [vmem:[%s3] sm:$0xff] %vm3205, %v3016
    %3207 = vst.msk [vmem:[%s3 + $0x8] sm:$0xff] %vm3205, %v3022
    %3208 = vst.msk [vmem:[%s3 + $0x10] sm:$0xff] %vm3205, %v3028
    %3209 = vst.msk [vmem:[%s3 + $0x18] sm:$0xff] %vm3205, %v3034
    %3210 = vst.msk [vmem:[%s3 + $0x20] sm:$0xff] %vm3205, %v3040
    %3211 = vst.msk [vmem:[%s3 + $0x28] sm:$0xff] %vm3205, %v3046
    %3212 = vst.msk [vmem:[%s3 + $0x30] sm:$0xff] %vm3205, %v3052
    %3213 = vst.msk [vmem:[%s3 + $0x38] sm:$0xff] %vm3205, %v3058
    %3214 = vst.msk [vmem:[%s3 + $0x40] sm:$0xff] %vm3205, %v3064
    %3215 = vst.msk [vmem:[%s3 + $0x48] sm:$0xff] %vm3205, %v3070
    %3216 = vst.msk [vmem:[%s3 + $0x50] sm:$0xff] %vm3205, %v3076
    %3217 = vst.msk [vmem:[%s3 + $0x58] sm:$0xff] %vm3205, %v3082
    %3218 = vst.msk [vmem:[%s3 + $0x60] sm:$0xff] %vm3205, %v3088
    %3219 = vst.msk [vmem:[%s3 + $0x68] sm:$0xff] %vm3205, %v3094
    %3220 = vst.msk [vmem:[%s3 + $0x70] sm:$0xff] %vm3205, %v3100
    %3221 = vst.msk [vmem:[%s3 + $0x78] sm:$0xff] %vm3205, %v3106
    %3222 = vst.msk [vmem:[%s3 + $0x80] sm:$0xff] %vm3205, %v3112
    %3223 = vst.msk [vmem:[%s3 + $0x88] sm:$0xff] %vm3205, %v3118
    %3224 = vst.msk [vmem:[%s3 + $0x90] sm:$0xff] %vm3205, %v3124
    %3225 = vst.msk [vmem:[%s3 + $0x98] sm:$0xff] %vm3205, %v3130
    %3226 = vst.msk [vmem:[%s3 + $0xa0] sm:$0xff] %vm3205, %v3136
    %3227 = vst.msk [vmem:[%s3 + $0xa8] sm:$0xff] %vm3205, %v3142
    %3228 = vst.msk [vmem:[%s3 + $0xb0] sm:$0xff] %vm3205, %v3148
    %3229 = vst.msk [vmem:[%s3 + $0xb8] sm:$0xff] %vm3205, %v3154
    %3230 = vst.msk [vmem:[%s3 + $0xc0] sm:$0xff] %vm3205, %v3160
    %3231 = vst.msk [vmem:[%s3 + $0xc8] sm:$0xff] %vm3205, %v3166
    %3232 = vst.msk [vmem:[%s3 + $0xd0] sm:$0xff] %vm3205, %v3172
    %3233 = vst.msk [vmem:[%s3 + $0xd8] sm:$0xff] %vm3205, %v3178
    %3234 = vst.msk [vmem:[%s3 + $0xe0] sm:$0xff] %vm3205, %v3184
    %3235 = vst.msk [vmem:[%s3 + $0xe8] sm:$0xff] %vm3205, %v3190
    %3236 = vst.msk [vmem:[%s3 + $0xf0] sm:$0xff] %vm3205, %v3196
    %3237 = vst.msk [vmem:[%s3 + $0xf8] sm:$0xff] %vm3205, %v3202
    // Predicated region
    $region18: #{tpu_custom_call.1} parent=1 // pred_check
      _
    $region19: #{tpu_custom_call.1} parent=1 // pred_check_branch
      %3239 = sbr.rel (0) target = $region21
    $region20: #{tpu_custom_call.1} parent=1 // pred_region
      _
    $region21: #{tpu_custom_call.1} parent=1 // pred_fallthru
      _
    // Predicated region
    $region22: #{tpu_custom_call.1} parent=1 // pred_check
      _
    $region23: #{tpu_custom_call.1} parent=1 // pred_check_branch
      %3241 = sbr.rel (0) target = $region25
    $region24: #{tpu_custom_call.1} parent=1 // pred_region
      _
    $region25: #{tpu_custom_call.1} parent=1 // pred_fallthru
      _
    %3242 = vsyncpa [#allocation3], 1

</llo_original>
